<compile_context>
chip_gen: v7x
topology: tpu7x:2x2x1
jax: 0.10.0
libtpu: 0.0.40
codegen_flags: <defaults>
</compile_context>

<pallas_src>
import math

import jax
import jax.numpy as jnp
from jax.experimental import pallas as pl
from jax.experimental.pallas import tpu as pltpu

# ----------------------------- model configuration --------------------------
B = 2             # batch
S_TXT = 8         # text sequence length
H = 32            # bert hidden_size
E = 16            # args.embed_dim
N_HEAD = 2        # bert num_attention_heads
D_K = H           # the module sets d_k = d_v = hidden_size
D_V = H
N_LABELS = 5      # len(label_list)
VIS_HW = 7        # fixed by vision_linear: Linear(7*7, 1)
S_VIS = VIS_HW * VIS_HW            # 49
S_VIS_PAD = 56                     # padded to a sublane multiple (8)
LN_EPS = 1e-5
TEMPERATURE = math.sqrt(D_K)

NKD = N_HEAD * D_K                 # 64
NVD = N_HEAD * D_V                 # 64
L_PAD = 128                        # lane-dense width of the output slab

# ---- packed weight slab (H, W_COLS) column offsets --------------------------
OUT_OFF = 0                        # classifier (0:N_LABELS) + identity (32:64)
WQ_OFF = 128                       # per-head Wq, 2 x 32
WK_OFF = 192                       # per-head Wk, 2 x 32
WV_OFF = 256                       # per-head Wv, 2 x 32
WF_OFF = 320                       # per-head fc (fc.weight.T row blocks), 2 x 32
TP_OFF = 384                       # text_proj  (H, E)
VP_OFF = 400                       # vision_proj (H, E)
W_COLS = 416

# ---- misc slab (2, MISC_COLS) offsets ---------------------------------------
LNG_OFF = 128                      # LayerNorm gamma (row 0)
LNB_OFF = 160                      # LayerNorm beta  (row 0)
BTP_OFF = 192                      # text_proj bias  (row 0)
BVP_OFF = 208                      # vision_proj bias (row 0)
BVL_OFF = 224                      # vision_linear bias scalar (row 0)
MASK_OFF = 64                      # additive seq-pad mask, row 1, width S_VIS_PAD
MISC_COLS = 256

CROSS_LANE = 32                    # where cross_output lives inside the out slab


# --------------------------- single fused kernel ----------------------------
def _fanet_fused_kernel(txt_ref, cls_ref, vis_ref, w_ref, misc_ref,
                        slab_ref, feat_ref):
    f32 = jnp.float32
    txt = txt_ref[...]                                  # (B, Sq, H)
    cls = cls_ref[...]                                  # (B, 1,  H)
    vis = vis_ref[...]                                  # (B, Skp, H), zero-padded rows
    Bn, Sq, Hd = txt.shape
    Skp = vis.shape[1]

    # Flattened row views for 2-D MXU dots (sublane-aligned reshapes).
    txt2d = txt.reshape(Bn * Sq, Hd)                    # (16, 32)
    vis2d = vis.reshape(Bn * Skp, Hd)                   # (112, 32)

    # ---- static carve-outs of the packed misc slab (zero-cost views) -------
    b_out = misc_ref[0:1, 0:L_PAD]                      # (1,128) classifier bias (padded)
    ln_g = misc_ref[0:1, LNG_OFF:LNG_OFF + Hd]          # (1,32)
    ln_b = misc_ref[0:1, LNB_OFF:LNB_OFF + Hd]          # (1,32)
    b_tp = misc_ref[0:1, BTP_OFF:BTP_OFF + E]           # (1,16)
    b_vp = misc_ref[0:1, BVP_OFF:BVP_OFF + E]           # (1,16)
    b_vl = misc_ref[0:1, BVL_OFF:BVL_OFF + 1]           # (1,1) scalar bias
    wvl = misc_ref[1:2, 0:Skp].reshape(1, 1, Skp)       # (1,1,56), zeros past 49
    seq_mask = misc_ref[1:2, MASK_OFF:MASK_OFF + Skp].reshape(1, 1, Skp)  # 0 / -1e9

    def softmax_last(x):                                # exact softmax over lanes
        e = jnp.exp(x - jnp.max(x, axis=-1, keepdims=True))
        return e / jnp.sum(e, axis=-1, keepdims=True)

    def l2_normalize(x):                                # F.normalize(dim=-1)
        return x * jax.lax.rsqrt(jnp.sum(x * x, axis=-1, keepdims=True) + 1e-24)

    # ---- text branch: compute_global_info + text_proj + normalize ----------
    pw_t = jnp.einsum('boh,bsh->bos', cls, txt, preferred_element_type=f32)   # (B,1,Sq)
    pw_t = softmax_last(pw_t)                                                 # softmax(dim=seq)
    tg = jnp.einsum('bos,bsh->boh', pw_t, txt, preferred_element_type=f32)    # (B,1,H)
    tg = tg.reshape(Bn, Hd)
    tfeat = l2_normalize(
        jnp.dot(tg, w_ref[:, TP_OFF:TP_OFF + E], preferred_element_type=f32) + b_tp)

    # ---- vision branch: MXU pooling + compute_global_info + proj + norm ----
    wvl_b = jnp.broadcast_to(wvl, (Bn, 1, Skp))                               # tiny (2x56)
    vcls = jnp.einsum('bos,bsh->boh', wvl_b, vis, preferred_element_type=f32) + b_vl  # (B,1,H)
    pw_v = jnp.einsum('boh,bsh->bos', vcls, vis, preferred_element_type=f32) + seq_mask
    pw_v = softmax_last(pw_v)                                                 # padded cols -> 0
    vg = jnp.einsum('bos,bsh->boh', pw_v, vis, preferred_element_type=f32).reshape(Bn, Hd)
    vfeat = l2_normalize(
        jnp.dot(vg, w_ref[:, VP_OFF:VP_OFF + E], preferred_element_type=f32) + b_vp)

    feat_ref[:, 0:E] = tfeat                            # packed (B, 2E) feature output
    feat_ref[:, E:2 * E] = vfeat

    # ---- Cross_atten: MultiHeadAttention(q=text, k=v=vision) ---------------
    inv_temp = 1.0 / TEMPERATURE
    o2d = jnp.zeros((Bn * Sq, Hd), f32)
    for h in range(N_HEAD):                             # static unroll, n_head = 2
        wq_h = w_ref[:, WQ_OFF + h * D_K:WQ_OFF + (h + 1) * D_K]     # (H, D_K)
        wk_h = w_ref[:, WK_OFF + h * D_K:WK_OFF + (h + 1) * D_K]
        wv_h = w_ref[:, WV_OFF + h * D_V:WV_OFF + (h + 1) * D_V]
        wf_h = w_ref[:, WF_OFF + h * Hd:WF_OFF + (h + 1) * Hd]       # (D_V, H)

        qh = jnp.dot(txt2d, wq_h, preferred_element_type=f32).reshape(Bn, Sq, D_K)
        kh = jnp.dot(vis2d, wk_h, preferred_element_type=f32).reshape(Bn, Skp, D_K)
        vh = jnp.dot(vis2d, wv_h, preferred_element_type=f32).reshape(Bn, Skp, D_V)

        s = jnp.einsum('bqd,bkd->bqk', qh, kh,
                       preferred_element_type=f32) * inv_temp + seq_mask      # (B,Sq,Skp)
        p = softmax_last(s)                             # attention dropout: identity (eval)
        oh = jnp.einsum('bqk,bkd->bqd', p, vh, preferred_element_type=f32)    # (B,Sq,D_V)
        # concat(head_0, head_1) @ fc.weight.T  ==  sum_h  oh_h @ wf_h
        o2d = o2d + jnp.dot(oh.reshape(Bn * Sq, D_V), wf_h, preferred_element_type=f32)

    # output dropout identity at inference; residual = q (raw text hidden)
    y = o2d + txt2d
    mu = jnp.mean(y, axis=-1, keepdims=True)
    var = jnp.mean((y - mu) * (y - mu), axis=-1, keepdims=True)
    ln = (y - mu) * jax.lax.rsqrt(var + LN_EPS) * ln_g + ln_b                 # (B*Sq, H)

    # classifier (-> CRF emissions, final_dropout identity) fused with an
    # identity pass-through of cross_output: single lane-dense 128-wide store.
    slab_ref[...] = jnp.dot(ln, w_ref[:, OUT_OFF:OUT_OFF + L_PAD],
                            preferred_element_type=f32) + b_out


def _build_fanet_call(Bn, Sq):
    vmem = pl.BlockSpec(memory_space=pltpu.MemorySpace.VMEM)
    return pl.pallas_call(
        _fanet_fused_kernel,
        out_shape=(
            jax.ShapeDtypeStruct((Bn * Sq, L_PAD), jnp.float32),   # emissions+cross slab
            jax.ShapeDtypeStruct((Bn, 2 * E), jnp.float32),        # [text_feat | vision_feat]
        ),
        in_specs=[vmem, vmem, vmem, vmem, vmem],
        out_specs=(vmem, vmem),
        cost_estimate=pl.CostEstimate(flops=1_500_000, transcendentals=2_500,
                                      bytes_accessed=100_000),
    )


# --------------------------------- parameters --------------------------------
def init_params(key):
    ks = jax.random.split(key, 12)
    n = lambda k, shape, std: (std * jax.random.normal(k, shape)).astype(jnp.float32)

    # raw parameters, stored pre-transposed (in, out) where applicable
    wtp = n(ks[0], (H, E), 1.0 / math.sqrt(H))
    btp = n(ks[1], (E,), 0.02)
    wvp = n(ks[2], (H, E), 1.0 / math.sqrt(H))
    bvp = n(ks[3], (E,), 0.02)
    wvl = n(ks[4], (S_VIS,), 1.0 / math.sqrt(S_VIS))      # vision_linear Linear(49 -> 1)
    bvl = n(ks[5], (1,), 0.02)
    std_qk = math.sqrt(2.0 / (H + D_K))
    std_v = math.sqrt(2.0 / (H + D_V))
    wq = n(ks[6], (H, NKD), std_qk)                       # w_qs.weight.T
    wk = n(ks[7], (H, NKD), std_qk)
    wv = n(ks[8], (H, NVD), std_v)
    wf = n(ks[9], (NVD, H), math.sqrt(2.0 / (H + NVD)))   # fc.weight.T
    ln_g = jnp.ones((H,), jnp.float32)
    ln_b = jnp.zeros((H,), jnp.float32)
    wc = n(ks[10], (H, N_LABELS), 1.0 / math.sqrt(H))     # classifier.weight.T
    bc = n(ks[11], (N_LABELS,), 0.02)

    # --- packed weight slab (H, W_COLS); every segment is what one 2-D dot needs ---
    out_w = jnp.zeros((H, L_PAD), jnp.float32)
    out_w = out_w.at[:, :N_LABELS].set(wc)                           # emissions lanes 0:5
    out_w = out_w.at[:, CROSS_LANE:CROSS_LANE + H].set(jnp.eye(H, dtype=jnp.float32))
    w_slab = jnp.concatenate(
        [out_w,
         wq[:, :D_K], wq[:, D_K:],          # per-head Wq
         wk[:, :D_K], wk[:, D_K:],          # per-head Wk
         wv[:, :D_V], wv[:, D_V:],          # per-head Wv
         wf[:D_V, :], wf[D_V:, :],          # per-head fc row blocks
         wtp, wvp], axis=1)
    assert w_slab.shape == (H, W_COLS)

    # --- misc slab (2, MISC_COLS): biases / LN params / pooling weight / pad mask ---
    misc = jnp.zeros((2, MISC_COLS), jnp.float32)
    misc = misc.at[0, :N_LABELS].set(bc)                             # classifier bias
    misc = misc.at[0, LNG_OFF:LNG_OFF + H].set(ln_g)
    misc = misc.at[0, LNB_OFF:LNB_OFF + H].set(ln_b)
    misc = misc.at[0, BTP_OFF:BTP_OFF + E].set(btp)
    misc = misc.at[0, BVP_OFF:BVP_OFF + E].set(bvp)
    misc = misc.at[0, BVL_OFF].set(bvl[0])
    misc = misc.at[1, :S_VIS].set(wvl)                               # pooling weight (pad=0)
    misc = misc.at[1, MASK_OFF + S_VIS:MASK_OFF + S_VIS_PAD].set(-1e9)  # seq-pad mask
    return {"w_slab": w_slab, "misc": misc}


# ---------------------------------- forward ----------------------------------
def fanet_forward(params, text_hidden_state, text_pooler_output, vision_output):
    """Inference-mode FANetModel.forward hot path.

    text_hidden_state : (B, S_TXT, H)   # TODO(synk): BertModel output stubbed as input
    text_pooler_output: (B, H)
    vision_output     : (B, H, 7, 7)    # TODO(synk): ImageModel backbone stubbed as input
    """
    Bn, Sq, Hd = text_hidden_state.shape

    # flatten(2) -> pad seq 49->56 (sublane alignment) -> permute(0, 2, 1)
    vis = vision_output.reshape(Bn, Hd, S_VIS)
    vis = jnp.pad(vis, ((0, 0), (0, 0), (0, S_VIS_PAD - S_VIS)))
    vis = jnp.transpose(vis, (0, 2, 1))                              # (B, 56, H)
    cls = text_pooler_output[:, None, :]                             # (B, 1, H)

    slab, feats = _build_fanet_call(Bn, Sq)(
        text_hidden_state, cls, vis, params["w_slab"], params["misc"])

    emissions = slab[:, :N_LABELS].reshape(Bn, Sq, N_LABELS)
    cross_output = slab[:, CROSS_LANE:CROSS_LANE + Hd].reshape(Bn, Sq, Hd)
    text_feat = feats[:, :E]
    vision_feat = feats[:, E:2 * E]

    # TODO(synk): train-mode ITC loss / momentum encoders / queue update skipped (mode != 'train')
    # TODO(synk): CRF decode + CRF NLL loss over `emissions` (torchcrf) not ported.
    return emissions, cross_output, text_feat, vision_feat


# ------------------------------------ main ------------------------------------
if __name__ == "__main__":
    key = jax.random.PRNGKey(0)
    k_param, k_th, k_tp, k_vis = jax.random.split(key, 4)

    params = init_params(k_param)

    text_hidden_state = jax.random.normal(k_th, (B, S_TXT, H), jnp.float32)
    text_pooler_output = jax.random.normal(k_tp, (B, H), jnp.float32)
    vision_output = jax.random.normal(k_vis, (B, H, VIS_HW, VIS_HW), jnp.float32)

    fwd = jax.jit(fanet_forward)
    emissions, cross_output, text_feat, vision_feat = fwd(
        params, text_hidden_state, text_pooler_output, vision_output)
    jax.block_until_ready((emissions, cross_output, text_feat, vision_feat))

    assert emissions.shape == (B, S_TXT, N_LABELS)
    assert cross_output.shape == (B, S_TXT, H)
    assert text_feat.shape == (B, E) and vision_feat.shape == (B, E)
    assert bool(jnp.all(jnp.isfinite(emissions)))
    assert bool(jnp.all(jnp.isfinite(cross_output)))
    assert bool(jnp.all(jnp.isfinite(text_feat))) and bool(jnp.all(jnp.isfinite(vision_feat)))
    # text_feat / vision_feat are L2-normalized rows
    assert bool(jnp.all(jnp.abs(jnp.sum(text_feat * text_feat, -1) - 1.0) < 1e-3))
    assert bool(jnp.all(jnp.abs(jnp.sum(vision_feat * vision_feat, -1) - 1.0) < 1e-3))
    print("KERNEL_OK")
</pallas_src>

<mosaic_0001>
module attributes {stable_mosaic.version = 11 : i64} {
  func.func @_fanet_fused_kernel(%arg0: memref<2x8x32xf32, #tpu.memory_space<vmem>>, %arg1: memref<2x1x32xf32, #tpu.memory_space<vmem>>, %arg2: memref<2x56x32xf32, #tpu.memory_space<vmem>>, %arg3: memref<32x416xf32, #tpu.memory_space<vmem>>, %arg4: memref<2x256xf32, #tpu.memory_space<vmem>>, %arg5: memref<16x128xf32, #tpu.memory_space<vmem>>, %arg6: memref<2x32xf32, #tpu.memory_space<vmem>>) attributes {dimension_semantics = [], scalar_prefetch = 0 : i64, scratch_operands = 0 : i64, tpu.core_type = #tpu.core_type<tc>} {
    %c0 = arith.constant 0 : index
    %c0_0 = arith.constant 0 : index
    %c0_1 = arith.constant 0 : index
    %0 = vector.load %arg0[%c0, %c0_0, %c0_1] : memref<2x8x32xf32, #tpu.memory_space<vmem>>, vector<2x8x32xf32>
    %c0_2 = arith.constant 0 : index
    %c0_3 = arith.constant 0 : index
    %c0_4 = arith.constant 0 : index
    %1 = vector.load %arg1[%c0_2, %c0_3, %c0_4] : memref<2x1x32xf32, #tpu.memory_space<vmem>>, vector<2x1x32xf32>
    %c0_5 = arith.constant 0 : index
    %c0_6 = arith.constant 0 : index
    %c0_7 = arith.constant 0 : index
    %2 = vector.load %arg2[%c0_5, %c0_6, %c0_7] : memref<2x56x32xf32, #tpu.memory_space<vmem>>, vector<2x56x32xf32>
    %3 = vector.shape_cast %0 : vector<2x8x32xf32> to vector<16x32xf32>
    %4 = vector.shape_cast %2 : vector<2x56x32xf32> to vector<112x32xf32>
    %c0_8 = arith.constant 0 : index
    %c0_9 = arith.constant 0 : index
    %5 = vector.load %arg4[%c0_8, %c0_9] : memref<2x256xf32, #tpu.memory_space<vmem>>, vector<1x128xf32>
    %c0_10 = arith.constant 0 : index
    %c128 = arith.constant 128 : index
    %6 = vector.load %arg4[%c0_10, %c128] : memref<2x256xf32, #tpu.memory_space<vmem>>, vector<1x32xf32>
    %c0_11 = arith.constant 0 : index
    %c160 = arith.constant 160 : index
    %7 = vector.load %arg4[%c0_11, %c160] : memref<2x256xf32, #tpu.memory_space<vmem>>, vector<1x32xf32>
    %c0_12 = arith.constant 0 : index
    %c192 = arith.constant 192 : index
    %8 = vector.load %arg4[%c0_12, %c192] : memref<2x256xf32, #tpu.memory_space<vmem>>, vector<1x16xf32>
    %c0_13 = arith.constant 0 : index
    %c208 = arith.constant 208 : index
    %9 = vector.load %arg4[%c0_13, %c208] : memref<2x256xf32, #tpu.memory_space<vmem>>, vector<1x16xf32>
    %c0_14 = arith.constant 0 : index
    %c224 = arith.constant 224 : index
    %10 = vector.load %arg4[%c0_14, %c224] : memref<2x256xf32, #tpu.memory_space<vmem>>, vector<1x1xf32>
    %c1 = arith.constant 1 : index
    %c0_15 = arith.constant 0 : index
    %11 = vector.load %arg4[%c1, %c0_15] : memref<2x256xf32, #tpu.memory_space<vmem>>, vector<1x56xf32>
    %12 = vector.shape_cast %11 : vector<1x56xf32> to vector<1x1x56xf32>
    %c1_16 = arith.constant 1 : index
    %c64 = arith.constant 64 : index
    %13 = vector.load %arg4[%c1_16, %c64] : memref<2x256xf32, #tpu.memory_space<vmem>>, vector<1x56xf32>
    %14 = vector.shape_cast %13 : vector<1x56xf32> to vector<1x1x56xf32>
    "tpu.trace_start"() <{level = 10 : i32, message = "boh,bsh->bos"}> : () -> ()
    %cst = arith.constant dense<0.000000e+00> : vector<2x1x8xf32>
    %15 = tpu.matmul %1, %0, %cst {dimension_numbers = #tpu.dot_dimension_numbers<[2], [2], [1], [1], [0, 0, 0, 1, 1, 1], [0], [0]>} : vector<2x1x32xf32>, vector<2x8x32xf32>, vector<2x1x8xf32> -> vector<2x1x8xf32>
    "tpu.trace_stop"() : () -> ()
    %cst_17 = arith.constant dense<0xFF800000> : vector<2x1xf32>
    %16 = vector.multi_reduction <maximumf>, %15, %cst_17 [2] : vector<2x1x8xf32> to vector<2x1xf32>
    %17 = vector.shape_cast %16 : vector<2x1xf32> to vector<2x1x1xf32>
    %18 = vector.broadcast %17 : vector<2x1x1xf32> to vector<2x1x8xf32>
    %19 = arith.subf %15, %18 : vector<2x1x8xf32>
    %20 = math.exp %19 : vector<2x1x8xf32>
    %cst_18 = arith.constant dense<0.000000e+00> : vector<2x1xf32>
    %21 = vector.multi_reduction <add>, %20, %cst_18 [2] : vector<2x1x8xf32> to vector<2x1xf32>
    %22 = vector.shape_cast %21 : vector<2x1xf32> to vector<2x1x1xf32>
    %23 = vector.broadcast %22 : vector<2x1x1xf32> to vector<2x1x8xf32>
    %24 = arith.divf %20, %23 : vector<2x1x8xf32>
    "tpu.trace_start"() <{level = 10 : i32, message = "bos,bsh->boh"}> : () -> ()
    %cst_19 = arith.constant dense<0.000000e+00> : vector<2x1x32xf32>
    %25 = tpu.matmul %24, %0, %cst_19 {dimension_numbers = #tpu.dot_dimension_numbers<[2], [1], [1], [2], [0, 0, 0, 1, 1, 2], [0], [0]>} : vector<2x1x8xf32>, vector<2x8x32xf32>, vector<2x1x32xf32> -> vector<2x1x32xf32>
    "tpu.trace_stop"() : () -> ()
    %26 = vector.shape_cast %25 : vector<2x1x32xf32> to vector<2x32xf32>
    %c0_20 = arith.constant 0 : index
    %c384 = arith.constant 384 : index
    %27 = vector.load %arg3[%c0_20, %c384] : memref<32x416xf32, #tpu.memory_space<vmem>>, vector<32x16xf32>
    %cst_21 = arith.constant dense<0.000000e+00> : vector<2x16xf32>
    %28 = tpu.matmul %26, %27, %cst_21 {dimension_numbers = #tpu.dot_dimension_numbers<[1], [0], [0], [1], [0, 0, 1, 1], [], []>} : vector<2x32xf32>, vector<32x16xf32>, vector<2x16xf32> -> vector<2x16xf32>
    %29 = vector.broadcast %8 : vector<1x16xf32> to vector<2x16xf32>
    %30 = arith.addf %28, %29 : vector<2x16xf32>
    %31 = arith.mulf %30, %30 : vector<2x16xf32>
    %cst_22 = arith.constant dense<0.000000e+00> : vector<2xf32>
    %32 = vector.multi_reduction <add>, %31, %cst_22 [1] : vector<2x16xf32> to vector<2xf32>
    %33 = vector.shape_cast %32 : vector<2xf32> to vector<2x1xf32>
    %cst_23 = arith.constant 1.000000e-24 : f32
    %34 = vector.broadcast %cst_23 : f32 to vector<2x1xf32>
    %35 = arith.addf %33, %34 : vector<2x1xf32>
    %36 = math.rsqrt %35 : vector<2x1xf32>
    %37 = vector.broadcast %36 : vector<2x1xf32> to vector<2x16xf32>
    %38 = arith.mulf %30, %37 : vector<2x16xf32>
    %39 = vector.shape_cast %12 : vector<1x1x56xf32> to vector<1x1x56xf32>
    %40 = vector.broadcast %39 : vector<1x1x56xf32> to vector<2x1x56xf32>
    "tpu.trace_start"() <{level = 10 : i32, message = "bos,bsh->boh"}> : () -> ()
    %cst_24 = arith.constant dense<0.000000e+00> : vector<2x1x32xf32>
    %41 = tpu.matmul %40, %2, %cst_24 {dimension_numbers = #tpu.dot_dimension_numbers<[2], [1], [1], [2], [0, 0, 0, 1, 1, 2], [0], [0]>} : vector<2x1x56xf32>, vector<2x56x32xf32>, vector<2x1x32xf32> -> vector<2x1x32xf32>
    "tpu.trace_stop"() : () -> ()
    %42 = vector.shape_cast %10 : vector<1x1xf32> to vector<1x1x1xf32>
    %43 = vector.broadcast %42 : vector<1x1x1xf32> to vector<2x1x32xf32>
    %44 = arith.addf %41, %43 : vector<2x1x32xf32>
    "tpu.trace_start"() <{level = 10 : i32, message = "boh,bsh->bos"}> : () -> ()
    %cst_25 = arith.constant dense<0.000000e+00> : vector<2x1x56xf32>
    %45 = tpu.matmul %44, %2, %cst_25 {dimension_numbers = #tpu.dot_dimension_numbers<[2], [2], [1], [1], [0, 0, 0, 1, 1, 1], [0], [0]>} : vector<2x1x32xf32>, vector<2x56x32xf32>, vector<2x1x56xf32> -> vector<2x1x56xf32>
    "tpu.trace_stop"() : () -> ()
    %46 = vector.broadcast %14 : vector<1x1x56xf32> to vector<2x1x56xf32>
    %47 = arith.addf %45, %46 : vector<2x1x56xf32>
    %cst_26 = arith.constant dense<0xFF800000> : vector<2x1xf32>
    %48 = vector.multi_reduction <maximumf>, %47, %cst_26 [2] : vector<2x1x56xf32> to vector<2x1xf32>
    %49 = vector.shape_cast %48 : vector<2x1xf32> to vector<2x1x1xf32>
    %50 = vector.broadcast %49 : vector<2x1x1xf32> to vector<2x1x56xf32>
    %51 = arith.subf %47, %50 : vector<2x1x56xf32>
    %52 = math.exp %51 : vector<2x1x56xf32>
    %cst_27 = arith.constant dense<0.000000e+00> : vector<2x1xf32>
    %53 = vector.multi_reduction <add>, %52, %cst_27 [2] : vector<2x1x56xf32> to vector<2x1xf32>
    %54 = vector.shape_cast %53 : vector<2x1xf32> to vector<2x1x1xf32>
    %55 = vector.broadcast %54 : vector<2x1x1xf32> to vector<2x1x56xf32>
    %56 = arith.divf %52, %55 : vector<2x1x56xf32>
    "tpu.trace_start"() <{level = 10 : i32, message = "bos,bsh->boh"}> : () -> ()
    %cst_28 = arith.constant dense<0.000000e+00> : vector<2x1x32xf32>
    %57 = tpu.matmul %56, %2, %cst_28 {dimension_numbers = #tpu.dot_dimension_numbers<[2], [1], [1], [2], [0, 0, 0, 1, 1, 2], [0], [0]>} : vector<2x1x56xf32>, vector<2x56x32xf32>, vector<2x1x32xf32> -> vector<2x1x32xf32>
    "tpu.trace_stop"() : () -> ()
    %58 = vector.shape_cast %57 : vector<2x1x32xf32> to vector<2x32xf32>
    %c0_29 = arith.constant 0 : index
    %c400 = arith.constant 400 : index
    %59 = vector.load %arg3[%c0_29, %c400] : memref<32x416xf32, #tpu.memory_space<vmem>>, vector<32x16xf32>
    %cst_30 = arith.constant dense<0.000000e+00> : vector<2x16xf32>
    %60 = tpu.matmul %58, %59, %cst_30 {dimension_numbers = #tpu.dot_dimension_numbers<[1], [0], [0], [1], [0, 0, 1, 1], [], []>} : vector<2x32xf32>, vector<32x16xf32>, vector<2x16xf32> -> vector<2x16xf32>
    %61 = vector.broadcast %9 : vector<1x16xf32> to vector<2x16xf32>
    %62 = arith.addf %60, %61 : vector<2x16xf32>
    %63 = arith.mulf %62, %62 : vector<2x16xf32>
    %cst_31 = arith.constant dense<0.000000e+00> : vector<2xf32>
    %64 = vector.multi_reduction <add>, %63, %cst_31 [1] : vector<2x16xf32> to vector<2xf32>
    %65 = vector.shape_cast %64 : vector<2xf32> to vector<2x1xf32>
    %cst_32 = arith.constant 1.000000e-24 : f32
    %66 = vector.broadcast %cst_32 : f32 to vector<2x1xf32>
    %67 = arith.addf %65, %66 : vector<2x1xf32>
    %68 = math.rsqrt %67 : vector<2x1xf32>
    %69 = vector.broadcast %68 : vector<2x1xf32> to vector<2x16xf32>
    %70 = arith.mulf %62, %69 : vector<2x16xf32>
    %c0_33 = arith.constant 0 : index
    %c0_34 = arith.constant 0 : index
    %71 = vector.load %arg6[%c0_33, %c0_34] : memref<2x32xf32, #tpu.memory_space<vmem>>, vector<2x16xf32>
    tpu.vector_store %arg6[%c0_33, %c0_34], %38 {strides = array<i32>} : memref<2x32xf32, #tpu.memory_space<vmem>>, vector<2x16xf32>,
    %c0_35 = arith.constant 0 : index
    %c16 = arith.constant 16 : index
    %72 = vector.load %arg6[%c0_35, %c16] : memref<2x32xf32, #tpu.memory_space<vmem>>, vector<2x16xf32>
    tpu.vector_store %arg6[%c0_35, %c16], %70 {strides = array<i32>} : memref<2x32xf32, #tpu.memory_space<vmem>>, vector<2x16xf32>,
    %cst_36 = arith.constant 0.000000e+00 : f32
    %73 = vector.broadcast %cst_36 : f32 to vector<16x32xf32>
    %c0_37 = arith.constant 0 : index
    %c128_38 = arith.constant 128 : index
    %74 = vector.load %arg3[%c0_37, %c128_38] : memref<32x416xf32, #tpu.memory_space<vmem>>, vector<32x32xf32>
    %c0_39 = arith.constant 0 : index
    %c192_40 = arith.constant 192 : index
    %75 = vector.load %arg3[%c0_39, %c192_40] : memref<32x416xf32, #tpu.memory_space<vmem>>, vector<32x32xf32>
    %c0_41 = arith.constant 0 : index
    %c256 = arith.constant 256 : index
    %76 = vector.load %arg3[%c0_41, %c256] : memref<32x416xf32, #tpu.memory_space<vmem>>, vector<32x32xf32>
    %c0_42 = arith.constant 0 : index
    %c320 = arith.constant 320 : index
    %77 = vector.load %arg3[%c0_42, %c320] : memref<32x416xf32, #tpu.memory_space<vmem>>, vector<32x32xf32>
    %cst_43 = arith.constant dense<0.000000e+00> : vector<16x32xf32>
    %78 = tpu.matmul %3, %74, %cst_43 {dimension_numbers = #tpu.dot_dimension_numbers<[1], [0], [0], [1], [0, 0, 1, 1], [], []>} : vector<16x32xf32>, vector<32x32xf32>, vector<16x32xf32> -> vector<16x32xf32>
    %79 = vector.shape_cast %78 : vector<16x32xf32> to vector<2x8x32xf32>
    %cst_44 = arith.constant dense<0.000000e+00> : vector<112x32xf32>
    %80 = tpu.matmul %4, %75, %cst_44 {dimension_numbers = #tpu.dot_dimension_numbers<[1], [0], [0], [1], [0, 0, 1, 1], [], []>} : vector<112x32xf32>, vector<32x32xf32>, vector<112x32xf32> -> vector<112x32xf32>
    %81 = vector.shape_cast %80 : vector<112x32xf32> to vector<2x56x32xf32>
    %cst_45 = arith.constant dense<0.000000e+00> : vector<112x32xf32>
    %82 = tpu.matmul %4, %76, %cst_45 {dimension_numbers = #tpu.dot_dimension_numbers<[1], [0], [0], [1], [0, 0, 1, 1], [], []>} : vector<112x32xf32>, vector<32x32xf32>, vector<112x32xf32> -> vector<112x32xf32>
    %83 = vector.shape_cast %82 : vector<112x32xf32> to vector<2x56x32xf32>
    "tpu.trace_start"() <{level = 10 : i32, message = "bqd,bkd->bqk"}> : () -> ()
    %cst_46 = arith.constant dense<0.000000e+00> : vector<2x8x56xf32>
    %84 = tpu.matmul %79, %81, %cst_46 {dimension_numbers = #tpu.dot_dimension_numbers<[2], [2], [1], [1], [0, 0, 0, 1, 1, 1], [0], [0]>} : vector<2x8x32xf32>, vector<2x56x32xf32>, vector<2x8x56xf32> -> vector<2x8x56xf32>
    "tpu.trace_stop"() : () -> ()
    %cst_47 = arith.constant 0.176776692 : f32
    %85 = vector.broadcast %cst_47 : f32 to vector<2x8x56xf32>
    %86 = arith.mulf %84, %85 : vector<2x8x56xf32>
    %87 = vector.broadcast %14 : vector<1x1x56xf32> to vector<2x8x56xf32>
    %88 = arith.addf %86, %87 : vector<2x8x56xf32>
    %cst_48 = arith.constant dense<0xFF800000> : vector<2x8xf32>
    %89 = vector.multi_reduction <maximumf>, %88, %cst_48 [2] : vector<2x8x56xf32> to vector<2x8xf32>
    %90 = vector.shape_cast %89 : vector<2x8xf32> to vector<2x8x1xf32>
    %91 = vector.broadcast %90 : vector<2x8x1xf32> to vector<2x8x56xf32>
    %92 = arith.subf %88, %91 : vector<2x8x56xf32>
    %93 = math.exp %92 : vector<2x8x56xf32>
    %cst_49 = arith.constant dense<0.000000e+00> : vector<2x8xf32>
    %94 = vector.multi_reduction <add>, %93, %cst_49 [2] : vector<2x8x56xf32> to vector<2x8xf32>
    %95 = vector.shape_cast %94 : vector<2x8xf32> to vector<2x8x1xf32>
    %96 = vector.broadcast %95 : vector<2x8x1xf32> to vector<2x8x56xf32>
    %97 = arith.divf %93, %96 : vector<2x8x56xf32>
    "tpu.trace_start"() <{level = 10 : i32, message = "bqk,bkd->bqd"}> : () -> ()
    %cst_50 = arith.constant dense<0.000000e+00> : vector<2x8x32xf32>
    %98 = tpu.matmul %97, %83, %cst_50 {dimension_numbers = #tpu.dot_dimension_numbers<[2], [1], [1], [2], [0, 0, 0, 1, 1, 2], [0], [0]>} : vector<2x8x56xf32>, vector<2x56x32xf32>, vector<2x8x32xf32> -> vector<2x8x32xf32>
    "tpu.trace_stop"() : () -> ()
    %99 = vector.shape_cast %98 : vector<2x8x32xf32> to vector<16x32xf32>
    %cst_51 = arith.constant dense<0.000000e+00> : vector<16x32xf32>
    %100 = tpu.matmul %99, %77, %cst_51 {dimension_numbers = #tpu.dot_dimension_numbers<[1], [0], [0], [1], [0, 0, 1, 1], [], []>} : vector<16x32xf32>, vector<32x32xf32>, vector<16x32xf32> -> vector<16x32xf32>
    %101 = arith.addf %73, %100 : vector<16x32xf32>
    %c0_52 = arith.constant 0 : index
    %c160_53 = arith.constant 160 : index
    %102 = vector.load %arg3[%c0_52, %c160_53] : memref<32x416xf32, #tpu.memory_space<vmem>>, vector<32x32xf32>
    %c0_54 = arith.constant 0 : index
    %c224_55 = arith.constant 224 : index
    %103 = vector.load %arg3[%c0_54, %c224_55] : memref<32x416xf32, #tpu.memory_space<vmem>>, vector<32x32xf32>
    %c0_56 = arith.constant 0 : index
    %c288 = arith.constant 288 : index
    %104 = vector.load %arg3[%c0_56, %c288] : memref<32x416xf32, #tpu.memory_space<vmem>>, vector<32x32xf32>
    %c0_57 = arith.constant 0 : index
    %c352 = arith.constant 352 : index
    %105 = vector.load %arg3[%c0_57, %c352] : memref<32x416xf32, #tpu.memory_space<vmem>>, vector<32x32xf32>
    %cst_58 = arith.constant dense<0.000000e+00> : vector<16x32xf32>
    %106 = tpu.matmul %3, %102, %cst_58 {dimension_numbers = #tpu.dot_dimension_numbers<[1], [0], [0], [1], [0, 0, 1, 1], [], []>} : vector<16x32xf32>, vector<32x32xf32>, vector<16x32xf32> -> vector<16x32xf32>
    %107 = vector.shape_cast %106 : vector<16x32xf32> to vector<2x8x32xf32>
    %cst_59 = arith.constant dense<0.000000e+00> : vector<112x32xf32>
    %108 = tpu.matmul %4, %103, %cst_59 {dimension_numbers = #tpu.dot_dimension_numbers<[1], [0], [0], [1], [0, 0, 1, 1], [], []>} : vector<112x32xf32>, vector<32x32xf32>, vector<112x32xf32> -> vector<112x32xf32>
    %109 = vector.shape_cast %108 : vector<112x32xf32> to vector<2x56x32xf32>
    %cst_60 = arith.constant dense<0.000000e+00> : vector<112x32xf32>
    %110 = tpu.matmul %4, %104, %cst_60 {dimension_numbers = #tpu.dot_dimension_numbers<[1], [0], [0], [1], [0, 0, 1, 1], [], []>} : vector<112x32xf32>, vector<32x32xf32>, vector<112x32xf32> -> vector<112x32xf32>
    %111 = vector.shape_cast %110 : vector<112x32xf32> to vector<2x56x32xf32>
    "tpu.trace_start"() <{level = 10 : i32, message = "bqd,bkd->bqk"}> : () -> ()
    %cst_61 = arith.constant dense<0.000000e+00> : vector<2x8x56xf32>
    %112 = tpu.matmul %107, %109, %cst_61 {dimension_numbers = #tpu.dot_dimension_numbers<[2], [2], [1], [1], [0, 0, 0, 1, 1, 1], [0], [0]>} : vector<2x8x32xf32>, vector<2x56x32xf32>, vector<2x8x56xf32> -> vector<2x8x56xf32>
    "tpu.trace_stop"() : () -> ()
    %cst_62 = arith.constant 0.176776692 : f32
    %113 = vector.broadcast %cst_62 : f32 to vector<2x8x56xf32>
    %114 = arith.mulf %112, %113 : vector<2x8x56xf32>
    %115 = vector.broadcast %14 : vector<1x1x56xf32> to vector<2x8x56xf32>
    %116 = arith.addf %114, %115 : vector<2x8x56xf32>
    %cst_63 = arith.constant dense<0xFF800000> : vector<2x8xf32>
    %117 = vector.multi_reduction <maximumf>, %116, %cst_63 [2] : vector<2x8x56xf32> to vector<2x8xf32>
    %118 = vector.shape_cast %117 : vector<2x8xf32> to vector<2x8x1xf32>
    %119 = vector.broadcast %118 : vector<2x8x1xf32> to vector<2x8x56xf32>
    %120 = arith.subf %116, %119 : vector<2x8x56xf32>
    %121 = math.exp %120 : vector<2x8x56xf32>
    %cst_64 = arith.constant dense<0.000000e+00> : vector<2x8xf32>
    %122 = vector.multi_reduction <add>, %121, %cst_64 [2] : vector<2x8x56xf32> to vector<2x8xf32>
    %123 = vector.shape_cast %122 : vector<2x8xf32> to vector<2x8x1xf32>
    %124 = vector.broadcast %123 : vector<2x8x1xf32> to vector<2x8x56xf32>
    %125 = arith.divf %121, %124 : vector<2x8x56xf32>
    "tpu.trace_start"() <{level = 10 : i32, message = "bqk,bkd->bqd"}> : () -> ()
    %cst_65 = arith.constant dense<0.000000e+00> : vector<2x8x32xf32>
    %126 = tpu.matmul %125, %111, %cst_65 {dimension_numbers = #tpu.dot_dimension_numbers<[2], [1], [1], [2], [0, 0, 0, 1, 1, 2], [0], [0]>} : vector<2x8x56xf32>, vector<2x56x32xf32>, vector<2x8x32xf32> -> vector<2x8x32xf32>
    "tpu.trace_stop"() : () -> ()
    %127 = vector.shape_cast %126 : vector<2x8x32xf32> to vector<16x32xf32>
    %cst_66 = arith.constant dense<0.000000e+00> : vector<16x32xf32>
    %128 = tpu.matmul %127, %105, %cst_66 {dimension_numbers = #tpu.dot_dimension_numbers<[1], [0], [0], [1], [0, 0, 1, 1], [], []>} : vector<16x32xf32>, vector<32x32xf32>, vector<16x32xf32> -> vector<16x32xf32>
    %129 = arith.addf %101, %128 : vector<16x32xf32>
    %130 = arith.addf %129, %3 : vector<16x32xf32>
    %cst_67 = arith.constant dense<0.000000e+00> : vector<16xf32>
    %131 = vector.multi_reduction <add>, %130, %cst_67 [1] : vector<16x32xf32> to vector<16xf32>
    %132 = vector.shape_cast %131 : vector<16xf32> to vector<16x1xf32>
    %cst_68 = arith.constant 3.200000e+01 : f32
    %133 = vector.broadcast %cst_68 : f32 to vector<16x1xf32>
    %134 = arith.divf %132, %133 : vector<16x1xf32>
    %135 = vector.broadcast %134 : vector<16x1xf32> to vector<16x32xf32>
    %136 = arith.subf %130, %135 : vector<16x32xf32>
    %137 = vector.broadcast %134 : vector<16x1xf32> to vector<16x32xf32>
    %138 = arith.subf %130, %137 : vector<16x32xf32>
    %139 = arith.mulf %136, %138 : vector<16x32xf32>
    %cst_69 = arith.constant dense<0.000000e+00> : vector<16xf32>
    %140 = vector.multi_reduction <add>, %139, %cst_69 [1] : vector<16x32xf32> to vector<16xf32>
    %141 = vector.shape_cast %140 : vector<16xf32> to vector<16x1xf32>
    %cst_70 = arith.constant 3.200000e+01 : f32
    %142 = vector.broadcast %cst_70 : f32 to vector<16x1xf32>
    %143 = arith.divf %141, %142 : vector<16x1xf32>
    %144 = vector.broadcast %134 : vector<16x1xf32> to vector<16x32xf32>
    %145 = arith.subf %130, %144 : vector<16x32xf32>
    %cst_71 = arith.constant 9.99999974E-6 : f32
    %146 = vector.broadcast %cst_71 : f32 to vector<16x1xf32>
    %147 = arith.addf %143, %146 : vector<16x1xf32>
    %148 = math.rsqrt %147 : vector<16x1xf32>
    %149 = vector.broadcast %148 : vector<16x1xf32> to vector<16x32xf32>
    %150 = arith.mulf %145, %149 : vector<16x32xf32>
    %151 = vector.broadcast %6 : vector<1x32xf32> to vector<16x32xf32>
    %152 = arith.mulf %150, %151 : vector<16x32xf32>
    %153 = vector.broadcast %7 : vector<1x32xf32> to vector<16x32xf32>
    %154 = arith.addf %152, %153 : vector<16x32xf32>
    %c0_72 = arith.constant 0 : index
    %c0_73 = arith.constant 0 : index
    %155 = vector.load %arg3[%c0_72, %c0_73] : memref<32x416xf32, #tpu.memory_space<vmem>>, vector<32x128xf32>
    %cst_74 = arith.constant dense<0.000000e+00> : vector<16x128xf32>
    %156 = tpu.matmul %154, %155, %cst_74 {dimension_numbers = #tpu.dot_dimension_numbers<[1], [0], [0], [1], [0, 0, 1, 1], [], []>} : vector<16x32xf32>, vector<32x128xf32>, vector<16x128xf32> -> vector<16x128xf32>
    %157 = vector.broadcast %5 : vector<1x128xf32> to vector<16x128xf32>
    %158 = arith.addf %156, %157 : vector<16x128xf32>
    %c0_75 = arith.constant 0 : index
    %c0_76 = arith.constant 0 : index
    %159 = vector.load %arg5[%c0_75, %c0_76] : memref<16x128xf32, #tpu.memory_space<vmem>>, vector<16x128xf32>
    tpu.vector_store %arg5[%c0_75, %c0_76], %158 {strides = array<i32>} : memref<16x128xf32, #tpu.memory_space<vmem>>, vector<16x128xf32>,
    return
  }
}

</mosaic_0001>

<llo_original>
// kernel: fanet_forward.1
$region0: #{fanet_forward.1}
  #allocation0 [shape = 'u32[]', space=smem, size = 0x4, offset = 0x4, fixed_abs, tag = 'smem constant byte address 0x4 - core index']
  #allocation1 [shape = 'u32[144,128]{1,0:T(1,128)}', space=vmem, size = 0x12000, scoped, tag = 'internal scratch']
  %s0 = inlined_call_operand.vmem [shape: f32[2,8,32], index: 0, kind: input, shape index: {}]
  %s1 = inlined_call_operand.vmem [shape: f32[2,1,32], index: 1, kind: input, shape index: {}]
  %s2 = inlined_call_operand.vmem [shape: f32[2,56,32], index: 2, kind: input, shape index: {}]
  %s3 = inlined_call_operand.vmem [shape: f32[32,416], index: 3, kind: input, shape index: {}]
  %s4 = inlined_call_operand.vmem [shape: f32[2,256], index: 4, kind: input, shape index: {}]
  %s5 = inlined_call_operand.vmem [shape: f32[16,128], index: 5, kind: output, shape index: {0}]
  %s6 = inlined_call_operand.vmem [shape: f32[2,32], index: 6, kind: output, shape index: {1}]
  %7 = xla_tuple %s5, %s6
  %s8 = sld [smem:[#allocation0]]
  $region38: #{fanet_forward.1} parent=0
    _
  %s10 = ssub.s32 1, %s8
  %s11 = scalar_select 0, %s10, %s8
  // Predicated region
  $region2: #{fanet_forward.1} parent=0 // pred_check
    _
  $region3: #{fanet_forward.1} parent=0 // pred_check_branch
    %13 = sbr.rel (0) target = $region5
  $region4: #{fanet_forward.1} parent=0 // pred_region
    _
  $region5: #{fanet_forward.1} parent=0 // pred_fallthru
    _
  // Predicated region
  $region6: #{fanet_forward.1} parent=0 // pred_check
    _
  $region7: #{fanet_forward.1} parent=0 // pred_check_branch
    %15 = sbr.rel (0) target = $region9
  $region8: #{fanet_forward.1} parent=0 // pred_region
    _
  $region9: #{fanet_forward.1} parent=0 // pred_fallthru
    _
  // Predicated region
  $region10: #{fanet_forward.1} parent=0 // pred_check
    _
  $region11: #{fanet_forward.1} parent=0 // pred_check_branch
    %17 = sbr.rel (0) target = $region13
  $region12: #{fanet_forward.1} parent=0 // pred_region
    _
  $region13: #{fanet_forward.1} parent=0 // pred_fallthru
    _
  // Predicated region
  $region14: #{fanet_forward.1} parent=0 // pred_check
    _
  $region15: #{fanet_forward.1} parent=0 // pred_check_branch
    %19 = sbr.rel (0) target = $region17
  $region16: #{fanet_forward.1} parent=0 // pred_region
    _
  $region17: #{fanet_forward.1} parent=0 // pred_fallthru
    _
  // Predicated region
  $region18: #{fanet_forward.1} parent=0 // pred_check
    _
  $region19: #{fanet_forward.1} parent=0 // pred_check_branch
    %21 = sbr.rel (0) target = $region21
  $region20: #{fanet_forward.1} parent=0 // pred_region
    _
  $region21: #{fanet_forward.1} parent=0 // pred_fallthru
    _
  %v22 = vld [vmem:[%s0] sm:$0xff]
  %v23 = vld [vmem:[%s0 + $0x8] sm:$0xff]
  %v24 = vld [vmem:[%s1] sm:$0x1]
  %v25 = vld [vmem:[%s1 + $0x1] sm:$0x1]
  %v26 = vld [vmem:[%s2] sm:$0xff]
  %v27 = vld [vmem:[%s2 + $0x8] sm:$0xff]
  %v28 = vld [vmem:[%s2 + $0x10] sm:$0xff]
  %v29 = vld [vmem:[%s2 + $0x18] sm:$0xff]
  %v30 = vld [vmem:[%s2 + $0x20] sm:$0xff]
  %v31 = vld [vmem:[%s2 + $0x28] sm:$0xff]
  %v32 = vld [vmem:[%s2 + $0x30] sm:$0xff]
  %v33 = vld [vmem:[%s2 + $0x38] sm:$0xff]
  %v34 = vld [vmem:[%s2 + $0x40] sm:$0xff]
  %v35 = vld [vmem:[%s2 + $0x48] sm:$0xff]
  %v36 = vld [vmem:[%s2 + $0x50] sm:$0xff]
  %v37 = vld [vmem:[%s2 + $0x58] sm:$0xff]
  %v38 = vld [vmem:[%s2 + $0x60] sm:$0xff]
  %v39 = vld [vmem:[%s2 + $0x68] sm:$0xff]
  %v40 = vld [vmem:[%s4] sm:$0x1]
  %v41 = vld [vmem:[%s4 + $0x2] sm:$0x1]
  %v42 = vld [vmem:[%s4 + $0x1] sm:$0x1]
  %vm43 = vcmask 261120
  %v45 = vsel %vm43, %v24, 0
  %v48 = vsel %vm43, %v22, 0
  %50 = vmatprep.subr.mxu0 0.0
  %51 = vmatpush1.xpose.msra.mxu0 %v48
  %52 = vmatprep.subr.mxu0 0.0
  %53 = vmatpush1.xpose.msra.mxu0 0.0
  %54 = vmatprep.subr.mxu0 0.0
  %55 = vmatpush1.xpose.msra.mxu0 0.0
  %56 = vmatprep.subr.mxu0 0.0
  %57 = vmatpush1.xpose.msra.mxu0 0.0
  %58 = vmatprep.subr.mxu0 0.0
  %59 = vmatpush1.xpose.msra.mxu0 0.0
  %60 = vmatprep.subr.mxu0 0.0
  %61 = vmatpush1.xpose.msra.mxu0 0.0
  %62 = vmatprep.subr.mxu0 0.0
  %63 = vmatpush1.xpose.msra.mxu0 0.0
  %64 = vmatprep.subr.mxu0 0.0
  %65 = vmatpush1.xpose.msra.mxu0 0.0
  %66 = vmatprep.subr.mxu0 0.0
  %67 = vmatpush1.xpose.msra.mxu0 0.0
  %68 = vmatprep.subr.mxu0 0.0
  %69 = vmatpush1.xpose.msra.mxu0 0.0
  %70 = vmatprep.subr.mxu0 0.0
  %71 = vmatpush1.xpose.msra.mxu0 0.0
  %72 = vmatprep.subr.mxu0 0.0
  %73 = vmatpush1.xpose.msra.mxu0 0.0
  %74 = vmatprep.subr.mxu0 0.0
  %75 = vmatpush1.xpose.msra.mxu0 0.0
  %76 = vmatprep.subr.mxu0 0.0
  %77 = vmatpush1.xpose.msra.mxu0 0.0
  %78 = vmatprep.subr.mxu0 0.0
  %79 = vmatpush1.xpose.msra.mxu0 0.0
  %80 = vmatprep.subr.mxu0 0.0
  %81 = vmatpush1.xpose.msra.mxu0 0.0
  %82 = vmatprep.subr.mxu0 0.0
  %83 = vmatpush1.xpose.msra.mxu0 0.0
  %84 = vmatprep.subr.mxu0 0.0
  %85 = vmatpush1.xpose.msra.mxu0 0.0
  %86 = vmatprep.subr.mxu0 0.0
  %87 = vmatpush1.xpose.msra.mxu0 0.0
  %88 = vmatprep.subr.mxu0 0.0
  %89 = vmatpush1.xpose.msra.mxu0 0.0
  %90 = vmatprep.subr.mxu0 0.0
  %91 = vmatpush1.xpose.msra.mxu0 0.0
  %92 = vmatprep.subr.mxu0 0.0
  %93 = vmatpush1.xpose.msra.mxu0 0.0
  %94 = vmatprep.subr.mxu0 0.0
  %95 = vmatpush1.xpose.msra.mxu0 0.0
  %96 = vmatprep.subr.mxu0 0.0
  %97 = vmatpush1.xpose.msra.mxu0 0.0
  %98 = vmatprep.subr.mxu0 0.0
  %99 = vmatpush1.xpose.msra.mxu0 0.0
  %100 = vmatprep.subr.mxu0 0.0
  %101 = vmatpush1.xpose.msra.mxu0 0.0
  %102 = vmatprep.subr.mxu0 0.0
  %103 = vmatpush1.xpose.msra.mxu0 0.0
  %104 = vmatprep.subr.mxu0 0.0
  %105 = vmatpush1.xpose.msra.mxu0 0.0
  %106 = vmatprep.subr.mxu0 0.0
  %107 = vmatpush1.xpose.msra.mxu0 0.0
  %108 = vmatprep.subr.mxu0 0.0
  %109 = vmatpush1.xpose.msra.mxu0 0.0
  %110 = vmatprep.subr.mxu0 0.0
  %111 = vmatpush1.xpose.msra.mxu0 0.0
  %112 = vmatprep.subr.mxu0 0.0
  %113 = vmatpush1.xpose.msra.mxu0 0.0
  %114 = vmatprep.mubr.f32.mxu0 0.0
  %115 = vmatmul.mubr.f32.gmra.mrb[0].mxu0 %v45
  %v116 = vpop.f32.mrb[0].mxu0
  %v117 = vadd.f32 0.0, %v116
  %v118 = vpop.f32.mrb[0].mxu0
  %119 = vdwg.mxu0
  %v121 = vsel %vm43, %v25, 0
  %v124 = vsel %vm43, %v23, 0
  %126 = vmatprep.subr.mxu0 0.0
  %127 = vmatpush1.xpose.msra.mxu0 %v124
  %128 = vmatprep.subr.mxu0 0.0
  %129 = vmatpush1.xpose.msra.mxu0 0.0
  %130 = vmatprep.subr.mxu0 0.0
  %131 = vmatpush1.xpose.msra.mxu0 0.0
  %132 = vmatprep.subr.mxu0 0.0
  %133 = vmatpush1.xpose.msra.mxu0 0.0
  %134 = vmatprep.subr.mxu0 0.0
  %135 = vmatpush1.xpose.msra.mxu0 0.0
  %136 = vmatprep.subr.mxu0 0.0
  %137 = vmatpush1.xpose.msra.mxu0 0.0
  %138 = vmatprep.subr.mxu0 0.0
  %139 = vmatpush1.xpose.msra.mxu0 0.0
  %140 = vmatprep.subr.mxu0 0.0
  %141 = vmatpush1.xpose.msra.mxu0 0.0
  %142 = vmatprep.subr.mxu0 0.0
  %143 = vmatpush1.xpose.msra.mxu0 0.0
  %144 = vmatprep.subr.mxu0 0.0
  %145 = vmatpush1.xpose.msra.mxu0 0.0
  %146 = vmatprep.subr.mxu0 0.0
  %147 = vmatpush1.xpose.msra.mxu0 0.0
  %148 = vmatprep.subr.mxu0 0.0
  %149 = vmatpush1.xpose.msra.mxu0 0.0
  %150 = vmatprep.subr.mxu0 0.0
  %151 = vmatpush1.xpose.msra.mxu0 0.0
  %152 = vmatprep.subr.mxu0 0.0
  %153 = vmatpush1.xpose.msra.mxu0 0.0
  %154 = vmatprep.subr.mxu0 0.0
  %155 = vmatpush1.xpose.msra.mxu0 0.0
  %156 = vmatprep.subr.mxu0 0.0
  %157 = vmatpush1.xpose.msra.mxu0 0.0
  %158 = vmatprep.subr.mxu0 0.0
  %159 = vmatpush1.xpose.msra.mxu0 0.0
  %160 = vmatprep.subr.mxu0 0.0
  %161 = vmatpush1.xpose.msra.mxu0 0.0
  %162 = vmatprep.subr.mxu0 0.0
  %163 = vmatpush1.xpose.msra.mxu0 0.0
  %164 = vmatprep.subr.mxu0 0.0
  %165 = vmatpush1.xpose.msra.mxu0 0.0
  %166 = vmatprep.subr.mxu0 0.0
  %167 = vmatpush1.xpose.msra.mxu0 0.0
  %168 = vmatprep.subr.mxu0 0.0
  %169 = vmatpush1.xpose.msra.mxu0 0.0
  %170 = vmatprep.subr.mxu0 0.0
  %171 = vmatpush1.xpose.msra.mxu0 0.0
  %172 = vmatprep.subr.mxu0 0.0
  %173 = vmatpush1.xpose.msra.mxu0 0.0
  %174 = vmatprep.subr.mxu0 0.0
  %175 = vmatpush1.xpose.msra.mxu0 0.0
  %176 = vmatprep.subr.mxu0 0.0
  %177 = vmatpush1.xpose.msra.mxu0 0.0
  %178 = vmatprep.subr.mxu0 0.0
  %179 = vmatpush1.xpose.msra.mxu0 0.0
  %180 = vmatprep.subr.mxu0 0.0
  %181 = vmatpush1.xpose.msra.mxu0 0.0
  %182 = vmatprep.subr.mxu0 0.0
  %183 = vmatpush1.xpose.msra.mxu0 0.0
  %184 = vmatprep.subr.mxu0 0.0
  %185 = vmatpush1.xpose.msra.mxu0 0.0
  %186 = vmatprep.subr.mxu0 0.0
  %187 = vmatpush1.xpose.msra.mxu0 0.0
  %188 = vmatprep.subr.mxu0 0.0
  %189 = vmatpush1.xpose.msra.mxu0 0.0
  %190 = vmatprep.mubr.f32.mxu0 0.0
  %191 = vmatmul.mubr.f32.gmra.mrb[0].mxu0 %v121
  %v192 = vpop.f32.mrb[0].mxu0
  %v193 = vadd.f32 0.0, %v192
  %v194 = vpop.f32.mrb[0].mxu0
  %195 = vdwg.mxu0
  %vm196 = vcmask 57344
  %v197 = vsel %vm196, %v117, -inf
  %198 = vmax.xlane.f32.xlu0 %v197
  %v199 = vpop.xlane.xlu0 %198
  %v200 = vsel %vm196, %v193, -inf
  %201 = vmax.xlane.f32.xlu0 %v200
  %v202 = vpop.xlane.xlu0 %201
  %v203 = vsub.f32 %v117, %v199
  %v204 = vsub.f32 %v193, %v202
  %v205 = vmul.f32 %v203, 1.442695
  %v206 = vpow.pop %v205
  %v207 = vmul.f32 %v204, 1.442695
  %v208 = vpow.pop %v207
  %v209 = vsel %vm196, %v206, 0.0
  %210 = vadd.xlane.f32.xlu0 %v209
  %v211 = vpop.xlane.xlu0 %210
  %v212 = vsel %vm196, %v208, 0.0
  %213 = vadd.xlane.f32.xlu0 %v212
  %v214 = vpop.xlane.xlu0 %213
  %v215 = vrcp.pop %v211
  %v216 = vmul.f32 %v206, %v215
  %v217 = vrcp.pop %v214
  %v218 = vmul.f32 %v208, %v217
  %vm219 = vcmask 64512
  %v221 = vsel %vm219, %v216, 0
  %223 = vmatprep.subr.mxu0 0.0
  %224 = vmatpush1.msra.mxu0 %v22
  %225 = vmatprep.subr.mxu0 0.0
  %226 = vmatpush1.msra.mxu0 0.0
  %227 = vmatprep.subr.mxu0 0.0
  %228 = vmatpush1.msra.mxu0 0.0
  %229 = vmatprep.subr.mxu0 0.0
  %230 = vmatpush1.msra.mxu0 0.0
  %231 = vmatprep.subr.mxu0 0.0
  %232 = vmatpush1.msra.mxu0 0.0
  %233 = vmatprep.subr.mxu0 0.0
  %234 = vmatpush1.msra.mxu0 0.0
  %235 = vmatprep.subr.mxu0 0.0
  %236 = vmatpush1.msra.mxu0 0.0
  %237 = vmatprep.subr.mxu0 0.0
  %238 = vmatpush1.msra.mxu0 0.0
  %239 = vmatprep.subr.mxu0 0.0
  %240 = vmatpush1.msra.mxu0 0.0
  %241 = vmatprep.subr.mxu0 0.0
  %242 = vmatpush1.msra.mxu0 0.0
  %243 = vmatprep.subr.mxu0 0.0
  %244 = vmatpush1.msra.mxu0 0.0
  %245 = vmatprep.subr.mxu0 0.0
  %246 = vmatpush1.msra.mxu0 0.0
  %247 = vmatprep.subr.mxu0 0.0
  %248 = vmatpush1.msra.mxu0 0.0
  %249 = vmatprep.subr.mxu0 0.0
  %250 = vmatpush1.msra.mxu0 0.0
  %251 = vmatprep.subr.mxu0 0.0
  %252 = vmatpush1.msra.mxu0 0.0
  %253 = vmatprep.subr.mxu0 0.0
  %254 = vmatpush1.msra.mxu0 0.0
  %255 = vmatprep.subr.mxu0 0.0
  %256 = vmatpush1.msra.mxu0 0.0
  %257 = vmatprep.subr.mxu0 0.0
  %258 = vmatpush1.msra.mxu0 0.0
  %259 = vmatprep.subr.mxu0 0.0
  %260 = vmatpush1.msra.mxu0 0.0
  %261 = vmatprep.subr.mxu0 0.0
  %262 = vmatpush1.msra.mxu0 0.0
  %263 = vmatprep.subr.mxu0 0.0
  %264 = vmatpush1.msra.mxu0 0.0
  %265 = vmatprep.subr.mxu0 0.0
  %266 = vmatpush1.msra.mxu0 0.0
  %267 = vmatprep.subr.mxu0 0.0
  %268 = vmatpush1.msra.mxu0 0.0
  %269 = vmatprep.subr.mxu0 0.0
  %270 = vmatpush1.msra.mxu0 0.0
  %271 = vmatprep.subr.mxu0 0.0
  %272 = vmatpush1.msra.mxu0 0.0
  %273 = vmatprep.subr.mxu0 0.0
  %274 = vmatpush1.msra.mxu0 0.0
  %275 = vmatprep.subr.mxu0 0.0
  %276 = vmatpush1.msra.mxu0 0.0
  %277 = vmatprep.subr.mxu0 0.0
  %278 = vmatpush1.msra.mxu0 0.0
  %279 = vmatprep.subr.mxu0 0.0
  %280 = vmatpush1.msra.mxu0 0.0
  %281 = vmatprep.subr.mxu0 0.0
  %282 = vmatpush1.msra.mxu0 0.0
  %283 = vmatprep.subr.mxu0 0.0
  %284 = vmatpush1.msra.mxu0 0.0
  %285 = vmatprep.subr.mxu0 0.0
  %286 = vmatpush1.msra.mxu0 0.0
  %287 = vmatprep.mubr.f32.mxu0 0.0
  %288 = vmatmul.mubr.f32.gmra.mrb[0].mxu0 %v221
  %v289 = vpop.f32.mrb[0].mxu0
  %v290 = vadd.f32 0.0, %v289
  %v291 = vpop.f32.mrb[0].mxu0
  %292 = vdwg.mxu0
  %v294 = vsel %vm219, %v218, 0
  %296 = vmatprep.subr.mxu0 0.0
  %297 = vmatpush1.msra.mxu0 %v23
  %298 = vmatprep.subr.mxu0 0.0
  %299 = vmatpush1.msra.mxu0 0.0
  %300 = vmatprep.subr.mxu0 0.0
  %301 = vmatpush1.msra.mxu0 0.0
  %302 = vmatprep.subr.mxu0 0.0
  %303 = vmatpush1.msra.mxu0 0.0
  %304 = vmatprep.subr.mxu0 0.0
  %305 = vmatpush1.msra.mxu0 0.0
  %306 = vmatprep.subr.mxu0 0.0
  %307 = vmatpush1.msra.mxu0 0.0
  %308 = vmatprep.subr.mxu0 0.0
  %309 = vmatpush1.msra.mxu0 0.0
  %310 = vmatprep.subr.mxu0 0.0
  %311 = vmatpush1.msra.mxu0 0.0
  %312 = vmatprep.subr.mxu0 0.0
  %313 = vmatpush1.msra.mxu0 0.0
  %314 = vmatprep.subr.mxu0 0.0
  %315 = vmatpush1.msra.mxu0 0.0
  %316 = vmatprep.subr.mxu0 0.0
  %317 = vmatpush1.msra.mxu0 0.0
  %318 = vmatprep.subr.mxu0 0.0
  %319 = vmatpush1.msra.mxu0 0.0
  %320 = vmatprep.subr.mxu0 0.0
  %321 = vmatpush1.msra.mxu0 0.0
  %322 = vmatprep.subr.mxu0 0.0
  %323 = vmatpush1.msra.mxu0 0.0
  %324 = vmatprep.subr.mxu0 0.0
  %325 = vmatpush1.msra.mxu0 0.0
  %326 = vmatprep.subr.mxu0 0.0
  %327 = vmatpush1.msra.mxu0 0.0
  %328 = vmatprep.subr.mxu0 0.0
  %329 = vmatpush1.msra.mxu0 0.0
  %330 = vmatprep.subr.mxu0 0.0
  %331 = vmatpush1.msra.mxu0 0.0
  %332 = vmatprep.subr.mxu0 0.0
  %333 = vmatpush1.msra.mxu0 0.0
  %334 = vmatprep.subr.mxu0 0.0
  %335 = vmatpush1.msra.mxu0 0.0
  %336 = vmatprep.subr.mxu0 0.0
  %337 = vmatpush1.msra.mxu0 0.0
  %338 = vmatprep.subr.mxu0 0.0
  %339 = vmatpush1.msra.mxu0 0.0
  %340 = vmatprep.subr.mxu0 0.0
  %341 = vmatpush1.msra.mxu0 0.0
  %342 = vmatprep.subr.mxu0 0.0
  %343 = vmatpush1.msra.mxu0 0.0
  %344 = vmatprep.subr.mxu0 0.0
  %345 = vmatpush1.msra.mxu0 0.0
  %346 = vmatprep.subr.mxu0 0.0
  %347 = vmatpush1.msra.mxu0 0.0
  %348 = vmatprep.subr.mxu0 0.0
  %349 = vmatpush1.msra.mxu0 0.0
  %350 = vmatprep.subr.mxu0 0.0
  %351 = vmatpush1.msra.mxu0 0.0
  %352 = vmatprep.subr.mxu0 0.0
  %353 = vmatpush1.msra.mxu0 0.0
  %354 = vmatprep.subr.mxu0 0.0
  %355 = vmatpush1.msra.mxu0 0.0
  %356 = vmatprep.subr.mxu0 0.0
  %357 = vmatpush1.msra.mxu0 0.0
  %358 = vmatprep.subr.mxu0 0.0
  %359 = vmatpush1.msra.mxu0 0.0
  %360 = vmatprep.mubr.f32.mxu0 0.0
  %361 = vmatmul.mubr.f32.gmra.mrb[0].mxu0 %v294
  %v362 = vpop.f32.mrb[0].mxu0
  %v363 = vadd.f32 0.0, %v362
  %v364 = vpop.f32.mrb[0].mxu0
  %365 = vdwg.mxu0
  %v366 = vld [vmem:[%s3 + $0x18] sm:$0xff]
  %v367 = vld [vmem:[%s3 + $0x38] sm:$0xff]
  %v368 = vld [vmem:[%s3 + $0x58] sm:$0xff]
  %v369 = vld [vmem:[%s3 + $0x78] sm:$0xff]
  %v370 = vlaneseq
  %v371 = vshrl.u32 %v370, 7
  %v372 = vsub.s32 0, %v371
  %v373 = vrot.slane %v41, %v372
  %v376 = vrot.slane %v363, 7
  %vm377 = vcmask 1041409
  %v378 = vsel %vm377, %v376, %v290
  %380 = vrot.lane.b32.xlu0 %v373, 64
  %v381 = vpop.permute.xlu0 %380
  %v383 = vsel %vm43, %v378, 0
  %385 = vmatprep.subr.mxu0 0.0
  %386 = vmatpush1.msra.mxu0 %v366
  %387 = vmatprep.subr.mxu0 0.0
  %388 = vmatpush1.msra.mxu0 %v367
  %389 = vmatprep.subr.mxu0 0.0
  %390 = vmatpush1.msra.mxu0 %v368
  %391 = vmatprep.subr.mxu0 0.0
  %392 = vmatpush1.msra.mxu0 %v369
  %393 = vmatprep.subr.mxu0 0.0
  %394 = vmatpush1.msra.mxu0 0.0
  %395 = vmatprep.subr.mxu0 0.0
  %396 = vmatpush1.msra.mxu0 0.0
  %397 = vmatprep.subr.mxu0 0.0
  %398 = vmatpush1.msra.mxu0 0.0
  %399 = vmatprep.subr.mxu0 0.0
  %400 = vmatpush1.msra.mxu0 0.0
  %401 = vmatprep.subr.mxu0 0.0
  %402 = vmatpush1.msra.mxu0 0.0
  %403 = vmatprep.subr.mxu0 0.0
  %404 = vmatpush1.msra.mxu0 0.0
  %405 = vmatprep.subr.mxu0 0.0
  %406 = vmatpush1.msra.mxu0 0.0
  %407 = vmatprep.subr.mxu0 0.0
  %408 = vmatpush1.msra.mxu0 0.0
  %409 = vmatprep.subr.mxu0 0.0
  %410 = vmatpush1.msra.mxu0 0.0
  %411 = vmatprep.subr.mxu0 0.0
  %412 = vmatpush1.msra.mxu0 0.0
  %413 = vmatprep.subr.mxu0 0.0
  %414 = vmatpush1.msra.mxu0 0.0
  %415 = vmatprep.subr.mxu0 0.0
  %416 = vmatpush1.msra.mxu0 0.0
  %417 = vmatprep.subr.mxu0 0.0
  %418 = vmatpush1.msra.mxu0 0.0
  %419 = vmatprep.subr.mxu0 0.0
  %420 = vmatpush1.msra.mxu0 0.0
  %421 = vmatprep.subr.mxu0 0.0
  %422 = vmatpush1.msra.mxu0 0.0
  %423 = vmatprep.subr.mxu0 0.0
  %424 = vmatpush1.msra.mxu0 0.0
  %425 = vmatprep.subr.mxu0 0.0
  %426 = vmatpush1.msra.mxu0 0.0
  %427 = vmatprep.subr.mxu0 0.0
  %428 = vmatpush1.msra.mxu0 0.0
  %429 = vmatprep.subr.mxu0 0.0
  %430 = vmatpush1.msra.mxu0 0.0
  %431 = vmatprep.subr.mxu0 0.0
  %432 = vmatpush1.msra.mxu0 0.0
  %433 = vmatprep.subr.mxu0 0.0
  %434 = vmatpush1.msra.mxu0 0.0
  %435 = vmatprep.subr.mxu0 0.0
  %436 = vmatpush1.msra.mxu0 0.0
  %437 = vmatprep.subr.mxu0 0.0
  %438 = vmatpush1.msra.mxu0 0.0
  %439 = vmatprep.subr.mxu0 0.0
  %440 = vmatpush1.msra.mxu0 0.0
  %441 = vmatprep.subr.mxu0 0.0
  %442 = vmatpush1.msra.mxu0 0.0
  %443 = vmatprep.subr.mxu0 0.0
  %444 = vmatpush1.msra.mxu0 0.0
  %445 = vmatprep.subr.mxu0 0.0
  %446 = vmatpush1.msra.mxu0 0.0
  %447 = vmatprep.subr.mxu0 0.0
  %448 = vmatpush1.msra.mxu0 0.0
  %449 = vmatprep.mubr.f32.mxu0 0.0
  %450 = vmatmul.mubr.f32.gmra.mrb[0].mxu0 %v383
  %v451 = vpop.f32.mrb[0].mxu0
  %v452 = vadd.f32 %v381, %v451
  %v453 = vpop.f32.mrb[0].mxu0
  %454 = vdwg.mxu0
  %v455 = vmul.f32 %v452, %v452
  %vm456 = vcmask 123904
  %v457 = vsel %vm456, %v455, 0.0
  %458 = vadd.xlane.f32.xlu0 %v457
  %v459 = vpop.xlane.xlu0 %458
  %v460 = vadd.f32 %v459, 1e-24
  %v461 = vrsqrt.pop %v460
  %v462 = vmul.f32 %v452, %v461
  %464 = vset.pattern.permute.xlu0 96
  %465 = vperm.xlu0 %464, %v41
  %v466 = vpop.permute.xlu0 %465
  %v469 = vunpack.c.l.s4 269488144
  %v470 = vunpack.c.0.s8 %v469
  %v471 = vlaneseq
  %v472 = vshrl.u32 %v471, 7
  %v473 = vsub.s32 %v470, %v472
  %v474 = vrot.slane %v466, %v473
  %vm475 = vcmask 457728
  %v477 = vsel %vm475, %v42, 0
  %479 = vmatprep.subr.mxu0 0.0
  %480 = vmatpush1.msra.mxu0 %v26
  %481 = vmatprep.subr.mxu0 0.0
  %482 = vmatpush1.msra.mxu0 %v27
  %483 = vmatprep.subr.mxu0 0.0
  %484 = vmatpush1.msra.mxu0 %v28
  %485 = vmatprep.subr.mxu0 0.0
  %486 = vmatpush1.msra.mxu0 %v29
  %487 = vmatprep.subr.mxu0 0.0
  %488 = vmatpush1.msra.mxu0 %v30
  %489 = vmatprep.subr.mxu0 0.0
  %490 = vmatpush1.msra.mxu0 %v31
  %491 = vmatprep.subr.mxu0 0.0
  %492 = vmatpush1.msra.mxu0 %v32
  %493 = vmatprep.subr.mxu0 0.0
  %494 = vmatpush1.msra.mxu0 0.0
  %495 = vmatprep.subr.mxu0 0.0
  %496 = vmatpush1.msra.mxu0 0.0
  %497 = vmatprep.subr.mxu0 0.0
  %498 = vmatpush1.msra.mxu0 0.0
  %499 = vmatprep.subr.mxu0 0.0
  %500 = vmatpush1.msra.mxu0 0.0
  %501 = vmatprep.subr.mxu0 0.0
  %502 = vmatpush1.msra.mxu0 0.0
  %503 = vmatprep.subr.mxu0 0.0
  %504 = vmatpush1.msra.mxu0 0.0
  %505 = vmatprep.subr.mxu0 0.0
  %506 = vmatpush1.msra.mxu0 0.0
  %507 = vmatprep.subr.mxu0 0.0
  %508 = vmatpush1.msra.mxu0 0.0
  %509 = vmatprep.subr.mxu0 0.0
  %510 = vmatpush1.msra.mxu0 0.0
  %511 = vmatprep.subr.mxu0 0.0
  %512 = vmatpush1.msra.mxu0 0.0
  %513 = vmatprep.subr.mxu0 0.0
  %514 = vmatpush1.msra.mxu0 0.0
  %515 = vmatprep.subr.mxu0 0.0
  %516 = vmatpush1.msra.mxu0 0.0
  %517 = vmatprep.subr.mxu0 0.0
  %518 = vmatpush1.msra.mxu0 0.0
  %519 = vmatprep.subr.mxu0 0.0
  %520 = vmatpush1.msra.mxu0 0.0
  %521 = vmatprep.subr.mxu0 0.0
  %522 = vmatpush1.msra.mxu0 0.0
  %523 = vmatprep.subr.mxu0 0.0
  %524 = vmatpush1.msra.mxu0 0.0
  %525 = vmatprep.subr.mxu0 0.0
  %526 = vmatpush1.msra.mxu0 0.0
  %527 = vmatprep.subr.mxu0 0.0
  %528 = vmatpush1.msra.mxu0 0.0
  %529 = vmatprep.subr.mxu0 0.0
  %530 = vmatpush1.msra.mxu0 0.0
  %531 = vmatprep.subr.mxu0 0.0
  %532 = vmatpush1.msra.mxu0 0.0
  %533 = vmatprep.subr.mxu0 0.0
  %534 = vmatpush1.msra.mxu0 0.0
  %535 = vmatprep.subr.mxu0 0.0
  %536 = vmatpush1.msra.mxu0 0.0
  %537 = vmatprep.subr.mxu0 0.0
  %538 = vmatpush1.msra.mxu0 0.0
  %539 = vmatprep.subr.mxu0 0.0
  %540 = vmatpush1.msra.mxu0 0.0
  %541 = vmatprep.subr.mxu0 0.0
  %542 = vmatpush1.msra.mxu0 0.0
  %543 = vmatprep.mubr.f32.mxu0 0.0
  %544 = vmatmul.mubr.f32.gmra.mrb[0].mxu0 %v477
  %v545 = vpop.f32.mrb[0].mxu0
  %v546 = vadd.f32 %v474, %v545
  %v547 = vpop.f32.mrb[0].mxu0
  %548 = vdwg.mxu0
  %549 = vmatprep.subr.mxu0 0.0
  %550 = vmatpush1.msra.mxu0 %v33
  %551 = vmatprep.subr.mxu0 0.0
  %552 = vmatpush1.msra.mxu0 %v34
  %553 = vmatprep.subr.mxu0 0.0
  %554 = vmatpush1.msra.mxu0 %v35
  %555 = vmatprep.subr.mxu0 0.0
  %556 = vmatpush1.msra.mxu0 %v36
  %557 = vmatprep.subr.mxu0 0.0
  %558 = vmatpush1.msra.mxu0 %v37
  %559 = vmatprep.subr.mxu0 0.0
  %560 = vmatpush1.msra.mxu0 %v38
  %561 = vmatprep.subr.mxu0 0.0
  %562 = vmatpush1.msra.mxu0 %v39
  %563 = vmatprep.subr.mxu0 0.0
  %564 = vmatpush1.msra.mxu0 0.0
  %565 = vmatprep.subr.mxu0 0.0
  %566 = vmatpush1.msra.mxu0 0.0
  %567 = vmatprep.subr.mxu0 0.0
  %568 = vmatpush1.msra.mxu0 0.0
  %569 = vmatprep.subr.mxu0 0.0
  %570 = vmatpush1.msra.mxu0 0.0
  %571 = vmatprep.subr.mxu0 0.0
  %572 = vmatpush1.msra.mxu0 0.0
  %573 = vmatprep.subr.mxu0 0.0
  %574 = vmatpush1.msra.mxu0 0.0
  %575 = vmatprep.subr.mxu0 0.0
  %576 = vmatpush1.msra.mxu0 0.0
  %577 = vmatprep.subr.mxu0 0.0
  %578 = vmatpush1.msra.mxu0 0.0
  %579 = vmatprep.subr.mxu0 0.0
  %580 = vmatpush1.msra.mxu0 0.0
  %581 = vmatprep.subr.mxu0 0.0
  %582 = vmatpush1.msra.mxu0 0.0
  %583 = vmatprep.subr.mxu0 0.0
  %584 = vmatpush1.msra.mxu0 0.0
  %585 = vmatprep.subr.mxu0 0.0
  %586 = vmatpush1.msra.mxu0 0.0
  %587 = vmatprep.subr.mxu0 0.0
  %588 = vmatpush1.msra.mxu0 0.0
  %589 = vmatprep.subr.mxu0 0.0
  %590 = vmatpush1.msra.mxu0 0.0
  %591 = vmatprep.subr.mxu0 0.0
  %592 = vmatpush1.msra.mxu0 0.0
  %593 = vmatprep.subr.mxu0 0.0
  %594 = vmatpush1.msra.mxu0 0.0
  %595 = vmatprep.subr.mxu0 0.0
  %596 = vmatpush1.msra.mxu0 0.0
  %597 = vmatprep.subr.mxu0 0.0
  %598 = vmatpush1.msra.mxu0 0.0
  %599 = vmatprep.subr.mxu0 0.0
  %600 = vmatpush1.msra.mxu0 0.0
  %601 = vmatprep.subr.mxu0 0.0
  %602 = vmatpush1.msra.mxu0 0.0
  %603 = vmatprep.subr.mxu0 0.0
  %604 = vmatpush1.msra.mxu0 0.0
  %605 = vmatprep.subr.mxu0 0.0
  %606 = vmatpush1.msra.mxu0 0.0
  %607 = vmatprep.subr.mxu0 0.0
  %608 = vmatpush1.msra.mxu0 0.0
  %609 = vmatprep.subr.mxu0 0.0
  %610 = vmatpush1.msra.mxu0 0.0
  %611 = vmatprep.subr.mxu0 0.0
  %612 = vmatpush1.msra.mxu0 0.0
  %613 = vmatprep.mubr.f32.mxu0 0.0
  %614 = vmatmul.mubr.f32.gmra.mrb[0].mxu0 %v477
  %v615 = vpop.f32.mrb[0].mxu0
  %v616 = vadd.f32 %v474, %v615
  %v617 = vpop.f32.mrb[0].mxu0
  %618 = vdwg.mxu0
  %v619 = vlaneseq
  %v620 = vshrl.u32 %v619, 7
  %v621 = vsub.s32 0, %v620
  %v622 = vrot.slane %v42, %v621
  %623 = vrot.lane.b32.xlu0 %v622, 64
  %v624 = vpop.permute.xlu0 %623
  %v627 = vsel %vm43, %v546, 0
  %v630 = vsel %vm43, %v26, 0
  %v633 = vsel %vm43, %v27, 0
  %v636 = vsel %vm43, %v28, 0
  %v639 = vsel %vm43, %v29, 0
  %v642 = vsel %vm43, %v30, 0
  %v645 = vsel %vm43, %v31, 0
  %v648 = vsel %vm43, %v32, 0
  %650 = vmatprep.subr.mxu0 0.0
  %651 = vmatpush1.xpose.msra.mxu0 %v630
  %652 = vmatprep.subr.mxu0 0.0
  %653 = vmatpush1.xpose.msra.mxu0 %v633
  %654 = vmatprep.subr.mxu0 0.0
  %655 = vmatpush1.xpose.msra.mxu0 %v636
  %656 = vmatprep.subr.mxu0 0.0
  %657 = vmatpush1.xpose.msra.mxu0 %v639
  %658 = vmatprep.subr.mxu0 0.0
  %659 = vmatpush1.xpose.msra.mxu0 %v642
  %660 = vmatprep.subr.mxu0 0.0
  %661 = vmatpush1.xpose.msra.mxu0 %v645
  %662 = vmatprep.subr.mxu0 0.0
  %663 = vmatpush1.xpose.msra.mxu0 %v648
  %664 = vmatprep.subr.mxu0 0.0
  %665 = vmatpush1.xpose.msra.mxu0 0.0
  %666 = vmatprep.subr.mxu0 0.0
  %667 = vmatpush1.xpose.msra.mxu0 0.0
  %668 = vmatprep.subr.mxu0 0.0
  %669 = vmatpush1.xpose.msra.mxu0 0.0
  %670 = vmatprep.subr.mxu0 0.0
  %671 = vmatpush1.xpose.msra.mxu0 0.0
  %672 = vmatprep.subr.mxu0 0.0
  %673 = vmatpush1.xpose.msra.mxu0 0.0
  %674 = vmatprep.subr.mxu0 0.0
  %675 = vmatpush1.xpose.msra.mxu0 0.0
  %676 = vmatprep.subr.mxu0 0.0
  %677 = vmatpush1.xpose.msra.mxu0 0.0
  %678 = vmatprep.subr.mxu0 0.0
  %679 = vmatpush1.xpose.msra.mxu0 0.0
  %680 = vmatprep.subr.mxu0 0.0
  %681 = vmatpush1.xpose.msra.mxu0 0.0
  %682 = vmatprep.subr.mxu0 0.0
  %683 = vmatpush1.xpose.msra.mxu0 0.0
  %684 = vmatprep.subr.mxu0 0.0
  %685 = vmatpush1.xpose.msra.mxu0 0.0
  %686 = vmatprep.subr.mxu0 0.0
  %687 = vmatpush1.xpose.msra.mxu0 0.0
  %688 = vmatprep.subr.mxu0 0.0
  %689 = vmatpush1.xpose.msra.mxu0 0.0
  %690 = vmatprep.subr.mxu0 0.0
  %691 = vmatpush1.xpose.msra.mxu0 0.0
  %692 = vmatprep.subr.mxu0 0.0
  %693 = vmatpush1.xpose.msra.mxu0 0.0
  %694 = vmatprep.subr.mxu0 0.0
  %695 = vmatpush1.xpose.msra.mxu0 0.0
  %696 = vmatprep.subr.mxu0 0.0
  %697 = vmatpush1.xpose.msra.mxu0 0.0
  %698 = vmatprep.subr.mxu0 0.0
  %699 = vmatpush1.xpose.msra.mxu0 0.0
  %700 = vmatprep.subr.mxu0 0.0
  %701 = vmatpush1.xpose.msra.mxu0 0.0
  %702 = vmatprep.subr.mxu0 0.0
  %703 = vmatpush1.xpose.msra.mxu0 0.0
  %704 = vmatprep.subr.mxu0 0.0
  %705 = vmatpush1.xpose.msra.mxu0 0.0
  %706 = vmatprep.subr.mxu0 0.0
  %707 = vmatpush1.xpose.msra.mxu0 0.0
  %708 = vmatprep.subr.mxu0 0.0
  %709 = vmatpush1.xpose.msra.mxu0 0.0
  %710 = vmatprep.subr.mxu0 0.0
  %711 = vmatpush1.xpose.msra.mxu0 0.0
  %712 = vmatprep.subr.mxu0 0.0
  %713 = vmatpush1.xpose.msra.mxu0 0.0
  %714 = vmatprep.mubr.f32.mxu0 0.0
  %715 = vmatmul.mubr.f32.gmra.mrb[0].mxu0 %v627
  %v716 = vpop.f32.mrb[0].mxu0
  %v717 = vadd.f32 %v624, %v716
  %v718 = vpop.f32.mrb[0].mxu0
  %719 = vdwg.mxu0
  %v721 = vsel %vm43, %v616, 0
  %v724 = vsel %vm43, %v33, 0
  %v727 = vsel %vm43, %v34, 0
  %v730 = vsel %vm43, %v35, 0
  %v733 = vsel %vm43, %v36, 0
  %v736 = vsel %vm43, %v37, 0
  %v739 = vsel %vm43, %v38, 0
  %v742 = vsel %vm43, %v39, 0
  %744 = vmatprep.subr.mxu0 0.0
  %745 = vmatpush1.xpose.msra.mxu0 %v724
  %746 = vmatprep.subr.mxu0 0.0
  %747 = vmatpush1.xpose.msra.mxu0 %v727
  %748 = vmatprep.subr.mxu0 0.0
  %749 = vmatpush1.xpose.msra.mxu0 %v730
  %750 = vmatprep.subr.mxu0 0.0
  %751 = vmatpush1.xpose.msra.mxu0 %v733
  %752 = vmatprep.subr.mxu0 0.0
  %753 = vmatpush1.xpose.msra.mxu0 %v736
  %754 = vmatprep.subr.mxu0 0.0
  %755 = vmatpush1.xpose.msra.mxu0 %v739
  %756 = vmatprep.subr.mxu0 0.0
  %757 = vmatpush1.xpose.msra.mxu0 %v742
  %758 = vmatprep.subr.mxu0 0.0
  %759 = vmatpush1.xpose.msra.mxu0 0.0
  %760 = vmatprep.subr.mxu0 0.0
  %761 = vmatpush1.xpose.msra.mxu0 0.0
  %762 = vmatprep.subr.mxu0 0.0
  %763 = vmatpush1.xpose.msra.mxu0 0.0
  %764 = vmatprep.subr.mxu0 0.0
  %765 = vmatpush1.xpose.msra.mxu0 0.0
  %766 = vmatprep.subr.mxu0 0.0
  %767 = vmatpush1.xpose.msra.mxu0 0.0
  %768 = vmatprep.subr.mxu0 0.0
  %769 = vmatpush1.xpose.msra.mxu0 0.0
  %770 = vmatprep.subr.mxu0 0.0
  %771 = vmatpush1.xpose.msra.mxu0 0.0
  %772 = vmatprep.subr.mxu0 0.0
  %773 = vmatpush1.xpose.msra.mxu0 0.0
  %774 = vmatprep.subr.mxu0 0.0
  %775 = vmatpush1.xpose.msra.mxu0 0.0
  %776 = vmatprep.subr.mxu0 0.0
  %777 = vmatpush1.xpose.msra.mxu0 0.0
  %778 = vmatprep.subr.mxu0 0.0
  %779 = vmatpush1.xpose.msra.mxu0 0.0
  %780 = vmatprep.subr.mxu0 0.0
  %781 = vmatpush1.xpose.msra.mxu0 0.0
  %782 = vmatprep.subr.mxu0 0.0
  %783 = vmatpush1.xpose.msra.mxu0 0.0
  %784 = vmatprep.subr.mxu0 0.0
  %785 = vmatpush1.xpose.msra.mxu0 0.0
  %786 = vmatprep.subr.mxu0 0.0
  %787 = vmatpush1.xpose.msra.mxu0 0.0
  %788 = vmatprep.subr.mxu0 0.0
  %789 = vmatpush1.xpose.msra.mxu0 0.0
  %790 = vmatprep.subr.mxu0 0.0
  %791 = vmatpush1.xpose.msra.mxu0 0.0
  %792 = vmatprep.subr.mxu0 0.0
  %793 = vmatpush1.xpose.msra.mxu0 0.0
  %794 = vmatprep.subr.mxu0 0.0
  %795 = vmatpush1.xpose.msra.mxu0 0.0
  %796 = vmatprep.subr.mxu0 0.0
  %797 = vmatpush1.xpose.msra.mxu0 0.0
  %798 = vmatprep.subr.mxu0 0.0
  %799 = vmatpush1.xpose.msra.mxu0 0.0
  %800 = vmatprep.subr.mxu0 0.0
  %801 = vmatpush1.xpose.msra.mxu0 0.0
  %802 = vmatprep.subr.mxu0 0.0
  %803 = vmatpush1.xpose.msra.mxu0 0.0
  %804 = vmatprep.subr.mxu0 0.0
  %805 = vmatpush1.xpose.msra.mxu0 0.0
  %806 = vmatprep.subr.mxu0 0.0
  %807 = vmatpush1.xpose.msra.mxu0 0.0
  %808 = vmatprep.mubr.f32.mxu0 0.0
  %809 = vmatmul.mubr.f32.gmra.mrb[0].mxu0 %v721
  %v810 = vpop.f32.mrb[0].mxu0
  %v811 = vadd.f32 %v624, %v810
  %v812 = vpop.f32.mrb[0].mxu0
  %813 = vdwg.mxu0
  %vm814 = vcmask 450560
  %v815 = vsel %vm814, %v717, -inf
  %816 = vmax.xlane.f32.xlu0 %v815
  %v817 = vpop.xlane.xlu0 %816
  %v818 = vsel %vm814, %v811, -inf
  %819 = vmax.xlane.f32.xlu0 %v818
  %v820 = vpop.xlane.xlu0 %819
  %v821 = vsub.f32 %v717, %v817
  %v822 = vsub.f32 %v811, %v820
  %v823 = vmul.f32 %v821, 1.442695
  %v824 = vpow.pop %v823
  %v825 = vmul.f32 %v822, 1.442695
  %v826 = vpow.pop %v825
  %v827 = vsel %vm814, %v824, 0.0
  %828 = vadd.xlane.f32.xlu0 %v827
  %v829 = vpop.xlane.xlu0 %828
  %v830 = vsel %vm814, %v826, 0.0
  %831 = vadd.xlane.f32.xlu0 %v830
  %v832 = vpop.xlane.xlu0 %831
  %v833 = vrcp.pop %v829
  %v834 = vmul.f32 %v824, %v833
  %v835 = vrcp.pop %v832
  %v836 = vmul.f32 %v826, %v835
  %v838 = vsel %vm475, %v834, 0
  %840 = vmatprep.subr.mxu0 0.0
  %841 = vmatpush1.msra.mxu0 %v26
  %842 = vmatprep.subr.mxu0 0.0
  %843 = vmatpush1.msra.mxu0 %v27
  %844 = vmatprep.subr.mxu0 0.0
  %845 = vmatpush1.msra.mxu0 %v28
  %846 = vmatprep.subr.mxu0 0.0
  %847 = vmatpush1.msra.mxu0 %v29
  %848 = vmatprep.subr.mxu0 0.0
  %849 = vmatpush1.msra.mxu0 %v30
  %850 = vmatprep.subr.mxu0 0.0
  %851 = vmatpush1.msra.mxu0 %v31
  %852 = vmatprep.subr.mxu0 0.0
  %853 = vmatpush1.msra.mxu0 %v32
  %854 = vmatprep.subr.mxu0 0.0
  %855 = vmatpush1.msra.mxu0 0.0
  %856 = vmatprep.subr.mxu0 0.0
  %857 = vmatpush1.msra.mxu0 0.0
  %858 = vmatprep.subr.mxu0 0.0
  %859 = vmatpush1.msra.mxu0 0.0
  %860 = vmatprep.subr.mxu0 0.0
  %861 = vmatpush1.msra.mxu0 0.0
  %862 = vmatprep.subr.mxu0 0.0
  %863 = vmatpush1.msra.mxu0 0.0
  %864 = vmatprep.subr.mxu0 0.0
  %865 = vmatpush1.msra.mxu0 0.0
  %866 = vmatprep.subr.mxu0 0.0
  %867 = vmatpush1.msra.mxu0 0.0
  %868 = vmatprep.subr.mxu0 0.0
  %869 = vmatpush1.msra.mxu0 0.0
  %870 = vmatprep.subr.mxu0 0.0
  %871 = vmatpush1.msra.mxu0 0.0
  %872 = vmatprep.subr.mxu0 0.0
  %873 = vmatpush1.msra.mxu0 0.0
  %874 = vmatprep.subr.mxu0 0.0
  %875 = vmatpush1.msra.mxu0 0.0
  %876 = vmatprep.subr.mxu0 0.0
  %877 = vmatpush1.msra.mxu0 0.0
  %878 = vmatprep.subr.mxu0 0.0
  %879 = vmatpush1.msra.mxu0 0.0
  %880 = vmatprep.subr.mxu0 0.0
  %881 = vmatpush1.msra.mxu0 0.0
  %882 = vmatprep.subr.mxu0 0.0
  %883 = vmatpush1.msra.mxu0 0.0
  %884 = vmatprep.subr.mxu0 0.0
  %885 = vmatpush1.msra.mxu0 0.0
  %886 = vmatprep.subr.mxu0 0.0
  %887 = vmatpush1.msra.mxu0 0.0
  %888 = vmatprep.subr.mxu0 0.0
  %889 = vmatpush1.msra.mxu0 0.0
  %890 = vmatprep.subr.mxu0 0.0
  %891 = vmatpush1.msra.mxu0 0.0
  %892 = vmatprep.subr.mxu0 0.0
  %893 = vmatpush1.msra.mxu0 0.0
  %894 = vmatprep.subr.mxu0 0.0
  %895 = vmatpush1.msra.mxu0 0.0
  %896 = vmatprep.subr.mxu0 0.0
  %897 = vmatpush1.msra.mxu0 0.0
  %898 = vmatprep.subr.mxu0 0.0
  %899 = vmatpush1.msra.mxu0 0.0
  %900 = vmatprep.subr.mxu0 0.0
  %901 = vmatpush1.msra.mxu0 0.0
  %902 = vmatprep.subr.mxu0 0.0
  %903 = vmatpush1.msra.mxu0 0.0
  %904 = vmatprep.mubr.f32.mxu0 0.0
  %905 = vmatmul.mubr.f32.gmra.mrb[0].mxu0 %v838
  %v906 = vpop.f32.mrb[0].mxu0
  %v907 = vadd.f32 0.0, %v906
  %v908 = vpop.f32.mrb[0].mxu0
  %909 = vdwg.mxu0
  %v911 = vsel %vm475, %v836, 0
  %913 = vmatprep.subr.mxu0 0.0
  %914 = vmatpush1.msra.mxu0 %v33
  %915 = vmatprep.subr.mxu0 0.0
  %916 = vmatpush1.msra.mxu0 %v34
  %917 = vmatprep.subr.mxu0 0.0
  %918 = vmatpush1.msra.mxu0 %v35
  %919 = vmatprep.subr.mxu0 0.0
  %920 = vmatpush1.msra.mxu0 %v36
  %921 = vmatprep.subr.mxu0 0.0
  %922 = vmatpush1.msra.mxu0 %v37
  %923 = vmatprep.subr.mxu0 0.0
  %924 = vmatpush1.msra.mxu0 %v38
  %925 = vmatprep.subr.mxu0 0.0
  %926 = vmatpush1.msra.mxu0 %v39
  %927 = vmatprep.subr.mxu0 0.0
  %928 = vmatpush1.msra.mxu0 0.0
  %929 = vmatprep.subr.mxu0 0.0
  %930 = vmatpush1.msra.mxu0 0.0
  %931 = vmatprep.subr.mxu0 0.0
  %932 = vmatpush1.msra.mxu0 0.0
  %933 = vmatprep.subr.mxu0 0.0
  %934 = vmatpush1.msra.mxu0 0.0
  %935 = vmatprep.subr.mxu0 0.0
  %936 = vmatpush1.msra.mxu0 0.0
  %937 = vmatprep.subr.mxu0 0.0
  %938 = vmatpush1.msra.mxu0 0.0
  %939 = vmatprep.subr.mxu0 0.0
  %940 = vmatpush1.msra.mxu0 0.0
  %941 = vmatprep.subr.mxu0 0.0
  %942 = vmatpush1.msra.mxu0 0.0
  %943 = vmatprep.subr.mxu0 0.0
  %944 = vmatpush1.msra.mxu0 0.0
  %945 = vmatprep.subr.mxu0 0.0
  %946 = vmatpush1.msra.mxu0 0.0
  %947 = vmatprep.subr.mxu0 0.0
  %948 = vmatpush1.msra.mxu0 0.0
  %949 = vmatprep.subr.mxu0 0.0
  %950 = vmatpush1.msra.mxu0 0.0
  %951 = vmatprep.subr.mxu0 0.0
  %952 = vmatpush1.msra.mxu0 0.0
  %953 = vmatprep.subr.mxu0 0.0
  %954 = vmatpush1.msra.mxu0 0.0
  %955 = vmatprep.subr.mxu0 0.0
  %956 = vmatpush1.msra.mxu0 0.0
  %957 = vmatprep.subr.mxu0 0.0
  %958 = vmatpush1.msra.mxu0 0.0
  %959 = vmatprep.subr.mxu0 0.0
  %960 = vmatpush1.msra.mxu0 0.0
  %961 = vmatprep.subr.mxu0 0.0
  %962 = vmatpush1.msra.mxu0 0.0
  %963 = vmatprep.subr.mxu0 0.0
  %964 = vmatpush1.msra.mxu0 0.0
  %965 = vmatprep.subr.mxu0 0.0
  %966 = vmatpush1.msra.mxu0 0.0
  %967 = vmatprep.subr.mxu0 0.0
  %968 = vmatpush1.msra.mxu0 0.0
  %969 = vmatprep.subr.mxu0 0.0
  %970 = vmatpush1.msra.mxu0 0.0
  %971 = vmatprep.subr.mxu0 0.0
  %972 = vmatpush1.msra.mxu0 0.0
  %973 = vmatprep.subr.mxu0 0.0
  %974 = vmatpush1.msra.mxu0 0.0
  %975 = vmatprep.subr.mxu0 0.0
  %976 = vmatpush1.msra.mxu0 0.0
  %977 = vmatprep.mubr.f32.mxu0 0.0
  %978 = vmatmul.mubr.f32.gmra.mrb[0].mxu0 %v911
  %v979 = vpop.f32.mrb[0].mxu0
  %v980 = vadd.f32 0.0, %v979
  %v981 = vpop.f32.mrb[0].mxu0
  %982 = vdwg.mxu0
  %v983 = vld [vmem:[%s3 + $0x18] sm:$0xff]
  %v984 = vld [vmem:[%s3 + $0x38] sm:$0xff]
  %v985 = vld [vmem:[%s3 + $0x58] sm:$0xff]
  %v986 = vld [vmem:[%s3 + $0x78] sm:$0xff]
  %v989 = vrot.slane %v980, 7
  %v990 = vsel %vm377, %v989, %v907
  %995 = vrot.lane.b32.xlu0 %v983, 112
  %v996 = vpop.permute.xlu0 %995
  %997 = vrot.lane.b32.xlu0 %v984, 112
  %v998 = vpop.permute.xlu0 %997
  %999 = vrot.lane.b32.xlu0 %v985, 112
  %v1000 = vpop.permute.xlu0 %999
  %1001 = vrot.lane.b32.xlu0 %v986, 112
  %v1002 = vpop.permute.xlu0 %1001
  %1007 = vrot.lane.b32.xlu0 %v373, 48
  %v1008 = vpop.permute.xlu0 %1007
  %v1010 = vsel %vm43, %v990, 0
  %1012 = vmatprep.subr.mxu0 0.0
  %1013 = vmatpush1.msra.mxu0 %v996
  %1014 = vmatprep.subr.mxu0 0.0
  %1015 = vmatpush1.msra.mxu0 %v998
  %1016 = vmatprep.subr.mxu0 0.0
  %1017 = vmatpush1.msra.mxu0 %v1000
  %1018 = vmatprep.subr.mxu0 0.0
  %1019 = vmatpush1.msra.mxu0 %v1002
  %1020 = vmatprep.subr.mxu0 0.0
  %1021 = vmatpush1.msra.mxu0 0.0
  %1022 = vmatprep.subr.mxu0 0.0
  %1023 = vmatpush1.msra.mxu0 0.0
  %1024 = vmatprep.subr.mxu0 0.0
  %1025 = vmatpush1.msra.mxu0 0.0
  %1026 = vmatprep.subr.mxu0 0.0
  %1027 = vmatpush1.msra.mxu0 0.0
  %1028 = vmatprep.subr.mxu0 0.0
  %1029 = vmatpush1.msra.mxu0 0.0
  %1030 = vmatprep.subr.mxu0 0.0
  %1031 = vmatpush1.msra.mxu0 0.0
  %1032 = vmatprep.subr.mxu0 0.0
  %1033 = vmatpush1.msra.mxu0 0.0
  %1034 = vmatprep.subr.mxu0 0.0
  %1035 = vmatpush1.msra.mxu0 0.0
  %1036 = vmatprep.subr.mxu0 0.0
  %1037 = vmatpush1.msra.mxu0 0.0
  %1038 = vmatprep.subr.mxu0 0.0
  %1039 = vmatpush1.msra.mxu0 0.0
  %1040 = vmatprep.subr.mxu0 0.0
  %1041 = vmatpush1.msra.mxu0 0.0
  %1042 = vmatprep.subr.mxu0 0.0
  %1043 = vmatpush1.msra.mxu0 0.0
  %1044 = vmatprep.subr.mxu0 0.0
  %1045 = vmatpush1.msra.mxu0 0.0
  %1046 = vmatprep.subr.mxu0 0.0
  %1047 = vmatpush1.msra.mxu0 0.0
  %1048 = vmatprep.subr.mxu0 0.0
  %1049 = vmatpush1.msra.mxu0 0.0
  %1050 = vmatprep.subr.mxu0 0.0
  %1051 = vmatpush1.msra.mxu0 0.0
  %1052 = vmatprep.subr.mxu0 0.0
  %1053 = vmatpush1.msra.mxu0 0.0
  %1054 = vmatprep.subr.mxu0 0.0
  %1055 = vmatpush1.msra.mxu0 0.0
  %1056 = vmatprep.subr.mxu0 0.0
  %1057 = vmatpush1.msra.mxu0 0.0
  %1058 = vmatprep.subr.mxu0 0.0
  %1059 = vmatpush1.msra.mxu0 0.0
  %1060 = vmatprep.subr.mxu0 0.0
  %1061 = vmatpush1.msra.mxu0 0.0
  %1062 = vmatprep.subr.mxu0 0.0
  %1063 = vmatpush1.msra.mxu0 0.0
  %1064 = vmatprep.subr.mxu0 0.0
  %1065 = vmatpush1.msra.mxu0 0.0
  %1066 = vmatprep.subr.mxu0 0.0
  %1067 = vmatpush1.msra.mxu0 0.0
  %1068 = vmatprep.subr.mxu0 0.0
  %1069 = vmatpush1.msra.mxu0 0.0
  %1070 = vmatprep.subr.mxu0 0.0
  %1071 = vmatpush1.msra.mxu0 0.0
  %1072 = vmatprep.subr.mxu0 0.0
  %1073 = vmatpush1.msra.mxu0 0.0
  %1074 = vmatprep.subr.mxu0 0.0
  %1075 = vmatpush1.msra.mxu0 0.0
  %1076 = vmatprep.mubr.f32.mxu0 0.0
  %1077 = vmatmul.mubr.f32.gmra.mrb[0].mxu0 %v1010
  %v1078 = vpop.f32.mrb[0].mxu0
  %v1079 = vadd.f32 %v1008, %v1078
  %v1080 = vpop.f32.mrb[0].mxu0
  %1081 = vdwg.mxu0
  %v1082 = vmul.f32 %v1079, %v1079
  %v1083 = vsel %vm456, %v1082, 0.0
  %1084 = vadd.xlane.f32.xlu0 %v1083
  %v1085 = vpop.xlane.xlu0 %1084
  %v1086 = vadd.f32 %v1085, 1e-24
  %v1087 = vrsqrt.pop %v1086
  %v1088 = vmul.f32 %v1079, %v1087
  %1089 = vst.msk [vmem:[%s6] sm:$0x3] %vm456, %v462
  %1091 = vrot.lane.b32.xlu0 %v1088, 16
  %v1092 = vpop.permute.xlu0 %1091
  %vm1094 = vcmask 255104
  %1095 = vst.msk [vmem:[%s6] sm:$0x3] %vm1094, %v1092
  %v1096 = vld [vmem:[%s3 + $0x8] sm:$0xff]
  %v1097 = vld [vmem:[%s3 + $0x28] sm:$0xff]
  %v1098 = vld [vmem:[%s3 + $0x48] sm:$0xff]
  %v1099 = vld [vmem:[%s3 + $0x68] sm:$0xff]
  %v1100 = vld [vmem:[%s3 + $0x10] sm:$0xff]
  %v1101 = vld [vmem:[%s3 + $0x30] sm:$0xff]
  %v1102 = vld [vmem:[%s3 + $0x50] sm:$0xff]
  %v1103 = vld [vmem:[%s3 + $0x70] sm:$0xff]
  %1104 = vmatprep.subr.mxu0 0.0
  %1105 = vmatpush1.msra.mxu0 %v1096
  %1106 = vmatprep.subr.mxu0 0.0
  %1107 = vmatpush1.msra.mxu0 %v1097
  %1108 = vmatprep.subr.mxu0 0.0
  %1109 = vmatpush1.msra.mxu0 %v1098
  %1110 = vmatprep.subr.mxu0 0.0
  %1111 = vmatpush1.msra.mxu0 %v1099
  %1112 = vmatprep.subr.mxu0 0.0
  %1113 = vmatpush1.msra.mxu0 0.0
  %1114 = vmatprep.subr.mxu0 0.0
  %1115 = vmatpush1.msra.mxu0 0.0
  %1116 = vmatprep.subr.mxu0 0.0
  %1117 = vmatpush1.msra.mxu0 0.0
  %1118 = vmatprep.subr.mxu0 0.0
  %1119 = vmatpush1.msra.mxu0 0.0
  %1120 = vmatprep.subr.mxu0 0.0
  %1121 = vmatpush1.msra.mxu0 0.0
  %1122 = vmatprep.subr.mxu0 0.0
  %1123 = vmatpush1.msra.mxu0 0.0
  %1124 = vmatprep.subr.mxu0 0.0
  %1125 = vmatpush1.msra.mxu0 0.0
  %1126 = vmatprep.subr.mxu0 0.0
  %1127 = vmatpush1.msra.mxu0 0.0
  %1128 = vmatprep.subr.mxu0 0.0
  %1129 = vmatpush1.msra.mxu0 0.0
  %1130 = vmatprep.subr.mxu0 0.0
  %1131 = vmatpush1.msra.mxu0 0.0
  %1132 = vmatprep.subr.mxu0 0.0
  %1133 = vmatpush1.msra.mxu0 0.0
  %1134 = vmatprep.subr.mxu0 0.0
  %1135 = vmatpush1.msra.mxu0 0.0
  %1136 = vmatprep.subr.mxu0 0.0
  %1137 = vmatpush1.msra.mxu0 0.0
  %1138 = vmatprep.subr.mxu0 0.0
  %1139 = vmatpush1.msra.mxu0 0.0
  %1140 = vmatprep.subr.mxu0 0.0
  %1141 = vmatpush1.msra.mxu0 0.0
  %1142 = vmatprep.subr.mxu0 0.0
  %1143 = vmatpush1.msra.mxu0 0.0
  %1144 = vmatprep.subr.mxu0 0.0
  %1145 = vmatpush1.msra.mxu0 0.0
  %1146 = vmatprep.subr.mxu0 0.0
  %1147 = vmatpush1.msra.mxu0 0.0
  %1148 = vmatprep.subr.mxu0 0.0
  %1149 = vmatpush1.msra.mxu0 0.0
  %1150 = vmatprep.subr.mxu0 0.0
  %1151 = vmatpush1.msra.mxu0 0.0
  %1152 = vmatprep.subr.mxu0 0.0
  %1153 = vmatpush1.msra.mxu0 0.0
  %1154 = vmatprep.subr.mxu0 0.0
  %1155 = vmatpush1.msra.mxu0 0.0
  %1156 = vmatprep.subr.mxu0 0.0
  %1157 = vmatpush1.msra.mxu0 0.0
  %1158 = vmatprep.subr.mxu0 0.0
  %1159 = vmatpush1.msra.mxu0 0.0
  %1160 = vmatprep.subr.mxu0 0.0
  %1161 = vmatpush1.msra.mxu0 0.0
  %1162 = vmatprep.subr.mxu0 0.0
  %1163 = vmatpush1.msra.mxu0 0.0
  %1164 = vmatprep.subr.mxu0 0.0
  %1165 = vmatpush1.msra.mxu0 0.0
  %1166 = vmatprep.subr.mxu0 0.0
  %1167 = vmatpush1.msra.mxu0 0.0
  %1168 = vmatprep.mubr.f32.mxu0 0.0
  %1169 = vmatmul.mubr.f32.gmra.mrb[0].mxu0 %v48
  %v1170 = vpop.f32.mrb[0].mxu0
  %v1171 = vadd.f32 0.0, %v1170
  %v1172 = vpop.f32.mrb[0].mxu0
  %1173 = vmatprep.mubr.f32.mxu0 0.0
  %1174 = vmatmul.mubr.f32.gmra.mrb[0].mxu0 %v124
  %v1175 = vpop.f32.mrb[0].mxu0
  %v1176 = vadd.f32 0.0, %v1175
  %v1177 = vpop.f32.mrb[0].mxu0
  %1178 = vdwg.mxu0
  %1183 = vrot.lane.b32.xlu0 %v1096, 64
  %v1184 = vpop.permute.xlu0 %1183
  %1185 = vrot.lane.b32.xlu0 %v1097, 64
  %v1186 = vpop.permute.xlu0 %1185
  %1187 = vrot.lane.b32.xlu0 %v1098, 64
  %v1188 = vpop.permute.xlu0 %1187
  %1189 = vrot.lane.b32.xlu0 %v1099, 64
  %v1190 = vpop.permute.xlu0 %1189
  %1195 = vmatprep.subr.mxu0 0.0
  %1196 = vmatpush1.msra.mxu0 %v1184
  %1197 = vmatprep.subr.mxu0 0.0
  %1198 = vmatpush1.msra.mxu0 %v1186
  %1199 = vmatprep.subr.mxu0 0.0
  %1200 = vmatpush1.msra.mxu0 %v1188
  %1201 = vmatprep.subr.mxu0 0.0
  %1202 = vmatpush1.msra.mxu0 %v1190
  %1203 = vmatprep.subr.mxu0 0.0
  %1204 = vmatpush1.msra.mxu0 0.0
  %1205 = vmatprep.subr.mxu0 0.0
  %1206 = vmatpush1.msra.mxu0 0.0
  %1207 = vmatprep.subr.mxu0 0.0
  %1208 = vmatpush1.msra.mxu0 0.0
  %1209 = vmatprep.subr.mxu0 0.0
  %1210 = vmatpush1.msra.mxu0 0.0
  %1211 = vmatprep.subr.mxu0 0.0
  %1212 = vmatpush1.msra.mxu0 0.0
  %1213 = vmatprep.subr.mxu0 0.0
  %1214 = vmatpush1.msra.mxu0 0.0
  %1215 = vmatprep.subr.mxu0 0.0
  %1216 = vmatpush1.msra.mxu0 0.0
  %1217 = vmatprep.subr.mxu0 0.0
  %1218 = vmatpush1.msra.mxu0 0.0
  %1219 = vmatprep.subr.mxu0 0.0
  %1220 = vmatpush1.msra.mxu0 0.0
  %1221 = vmatprep.subr.mxu0 0.0
  %1222 = vmatpush1.msra.mxu0 0.0
  %1223 = vmatprep.subr.mxu0 0.0
  %1224 = vmatpush1.msra.mxu0 0.0
  %1225 = vmatprep.subr.mxu0 0.0
  %1226 = vmatpush1.msra.mxu0 0.0
  %1227 = vmatprep.subr.mxu0 0.0
  %1228 = vmatpush1.msra.mxu0 0.0
  %1229 = vmatprep.subr.mxu0 0.0
  %1230 = vmatpush1.msra.mxu0 0.0
  %1231 = vmatprep.subr.mxu0 0.0
  %1232 = vmatpush1.msra.mxu0 0.0
  %1233 = vmatprep.subr.mxu0 0.0
  %1234 = vmatpush1.msra.mxu0 0.0
  %1235 = vmatprep.subr.mxu0 0.0
  %1236 = vmatpush1.msra.mxu0 0.0
  %1237 = vmatprep.subr.mxu0 0.0
  %1238 = vmatpush1.msra.mxu0 0.0
  %1239 = vmatprep.subr.mxu0 0.0
  %1240 = vmatpush1.msra.mxu0 0.0
  %1241 = vmatprep.subr.mxu0 0.0
  %1242 = vmatpush1.msra.mxu0 0.0
  %1243 = vmatprep.subr.mxu0 0.0
  %1244 = vmatpush1.msra.mxu0 0.0
  %1245 = vmatprep.subr.mxu0 0.0
  %1246 = vmatpush1.msra.mxu0 0.0
  %1247 = vmatprep.subr.mxu0 0.0
  %1248 = vmatpush1.msra.mxu0 0.0
  %1249 = vmatprep.subr.mxu0 0.0
  %1250 = vmatpush1.msra.mxu0 0.0
  %1251 = vmatprep.subr.mxu0 0.0
  %1252 = vmatpush1.msra.mxu0 0.0
  %1253 = vmatprep.subr.mxu0 0.0
  %1254 = vmatpush1.msra.mxu0 0.0
  %1255 = vmatprep.subr.mxu0 0.0
  %1256 = vmatpush1.msra.mxu0 0.0
  %1257 = vmatprep.subr.mxu0 0.0
  %1258 = vmatpush1.msra.mxu0 0.0
  %1259 = vmatprep.mubr.f32.mxu0 0.0
  %1260 = vmatmul.mubr.f32.gmra.mrb[0].mxu0 %v630
  %v1261 = vpop.f32.mrb[0].mxu0
  %v1262 = vadd.f32 0.0, %v1261
  %v1263 = vpop.f32.mrb[0].mxu0
  %1264 = vmatprep.mubr.f32.mxu0 0.0
  %1265 = vmatmul.mubr.f32.gmra.mrb[0].mxu0 %v633
  %v1266 = vpop.f32.mrb[0].mxu0
  %v1267 = vadd.f32 0.0, %v1266
  %v1268 = vpop.f32.mrb[0].mxu0
  %1269 = vmatprep.mubr.f32.mxu0 0.0
  %1270 = vmatmul.mubr.f32.gmra.mrb[0].mxu0 %v636
  %v1271 = vpop.f32.mrb[0].mxu0
  %v1272 = vadd.f32 0.0, %v1271
  %v1273 = vpop.f32.mrb[0].mxu0
  %1274 = vmatprep.mubr.f32.mxu0 0.0
  %1275 = vmatmul.mubr.f32.gmra.mrb[0].mxu0 %v639
  %v1276 = vpop.f32.mrb[0].mxu0
  %v1277 = vadd.f32 0.0, %v1276
  %v1278 = vpop.f32.mrb[0].mxu0
  %1279 = vmatprep.mubr.f32.mxu0 0.0
  %1280 = vmatmul.mubr.f32.gmra.mrb[0].mxu0 %v642
  %v1281 = vpop.f32.mrb[0].mxu0
  %v1282 = vadd.f32 0.0, %v1281
  %v1283 = vpop.f32.mrb[0].mxu0
  %1284 = vmatprep.mubr.f32.mxu0 0.0
  %1285 = vmatmul.mubr.f32.gmra.mrb[0].mxu0 %v645
  %v1286 = vpop.f32.mrb[0].mxu0
  %v1287 = vadd.f32 0.0, %v1286
  %v1288 = vpop.f32.mrb[0].mxu0
  %1289 = vmatprep.mubr.f32.mxu0 0.0
  %1290 = vmatmul.mubr.f32.gmra.mrb[0].mxu0 %v648
  %v1291 = vpop.f32.mrb[0].mxu0
  %v1292 = vadd.f32 0.0, %v1291
  %v1293 = vpop.f32.mrb[0].mxu0
  %1294 = vmatprep.mubr.f32.mxu0 0.0
  %1295 = vmatmul.mubr.f32.gmra.mrb[0].mxu0 %v724
  %v1296 = vpop.f32.mrb[0].mxu0
  %v1297 = vadd.f32 0.0, %v1296
  %v1298 = vpop.f32.mrb[0].mxu0
  %1299 = vmatprep.mubr.f32.mxu0 0.0
  %1300 = vmatmul.mubr.f32.gmra.mrb[0].mxu0 %v727
  %v1301 = vpop.f32.mrb[0].mxu0
  %v1302 = vadd.f32 0.0, %v1301
  %v1303 = vpop.f32.mrb[0].mxu0
  %1304 = vmatprep.mubr.f32.mxu0 0.0
  %1305 = vmatmul.mubr.f32.gmra.mrb[0].mxu0 %v730
  %v1306 = vpop.f32.mrb[0].mxu0
  %v1307 = vadd.f32 0.0, %v1306
  %v1308 = vpop.f32.mrb[0].mxu0
  %1309 = vmatprep.mubr.f32.mxu0 0.0
  %1310 = vmatmul.mubr.f32.gmra.mrb[0].mxu0 %v733
  %v1311 = vpop.f32.mrb[0].mxu0
  %v1312 = vadd.f32 0.0, %v1311
  %v1313 = vpop.f32.mrb[0].mxu0
  %1314 = vmatprep.mubr.f32.mxu0 0.0
  %1315 = vmatmul.mubr.f32.gmra.mrb[0].mxu0 %v736
  %v1316 = vpop.f32.mrb[0].mxu0
  %v1317 = vadd.f32 0.0, %v1316
  %v1318 = vpop.f32.mrb[0].mxu0
  %1319 = vmatprep.mubr.f32.mxu0 0.0
  %1320 = vmatmul.mubr.f32.gmra.mrb[0].mxu0 %v739
  %v1321 = vpop.f32.mrb[0].mxu0
  %v1322 = vadd.f32 0.0, %v1321
  %v1323 = vpop.f32.mrb[0].mxu0
  %1324 = vmatprep.mubr.f32.mxu0 0.0
  %1325 = vmatmul.mubr.f32.gmra.mrb[0].mxu0 %v742
  %v1326 = vpop.f32.mrb[0].mxu0
  %v1327 = vadd.f32 0.0, %v1326
  %v1328 = vpop.f32.mrb[0].mxu0
  %1329 = vdwg.mxu0
  %1330 = vmatprep.subr.mxu0 0.0
  %1331 = vmatpush1.msra.mxu0 %v1100
  %1332 = vmatprep.subr.mxu0 0.0
  %1333 = vmatpush1.msra.mxu0 %v1101
  %1334 = vmatprep.subr.mxu0 0.0
  %1335 = vmatpush1.msra.mxu0 %v1102
  %1336 = vmatprep.subr.mxu0 0.0
  %1337 = vmatpush1.msra.mxu0 %v1103
  %1338 = vmatprep.subr.mxu0 0.0
  %1339 = vmatpush1.msra.mxu0 0.0
  %1340 = vmatprep.subr.mxu0 0.0
  %1341 = vmatpush1.msra.mxu0 0.0
  %1342 = vmatprep.subr.mxu0 0.0
  %1343 = vmatpush1.msra.mxu0 0.0
  %1344 = vmatprep.subr.mxu0 0.0
  %1345 = vmatpush1.msra.mxu0 0.0
  %1346 = vmatprep.subr.mxu0 0.0
  %1347 = vmatpush1.msra.mxu0 0.0
  %1348 = vmatprep.subr.mxu0 0.0
  %1349 = vmatpush1.msra.mxu0 0.0
  %1350 = vmatprep.subr.mxu0 0.0
  %1351 = vmatpush1.msra.mxu0 0.0
  %1352 = vmatprep.subr.mxu0 0.0
  %1353 = vmatpush1.msra.mxu0 0.0
  %1354 = vmatprep.subr.mxu0 0.0
  %1355 = vmatpush1.msra.mxu0 0.0
  %1356 = vmatprep.subr.mxu0 0.0
  %1357 = vmatpush1.msra.mxu0 0.0
  %1358 = vmatprep.subr.mxu0 0.0
  %1359 = vmatpush1.msra.mxu0 0.0
  %1360 = vmatprep.subr.mxu0 0.0
  %1361 = vmatpush1.msra.mxu0 0.0
  %1362 = vmatprep.subr.mxu0 0.0
  %1363 = vmatpush1.msra.mxu0 0.0
  %1364 = vmatprep.subr.mxu0 0.0
  %1365 = vmatpush1.msra.mxu0 0.0
  %1366 = vmatprep.subr.mxu0 0.0
  %1367 = vmatpush1.msra.mxu0 0.0
  %1368 = vmatprep.subr.mxu0 0.0
  %1369 = vmatpush1.msra.mxu0 0.0
  %1370 = vmatprep.subr.mxu0 0.0
  %1371 = vmatpush1.msra.mxu0 0.0
  %1372 = vmatprep.subr.mxu0 0.0
  %1373 = vmatpush1.msra.mxu0 0.0
  %1374 = vmatprep.subr.mxu0 0.0
  %1375 = vmatpush1.msra.mxu0 0.0
  %1376 = vmatprep.subr.mxu0 0.0
  %1377 = vmatpush1.msra.mxu0 0.0
  %1378 = vmatprep.subr.mxu0 0.0
  %1379 = vmatpush1.msra.mxu0 0.0
  %1380 = vmatprep.subr.mxu0 0.0
  %1381 = vmatpush1.msra.mxu0 0.0
  %1382 = vmatprep.subr.mxu0 0.0
  %1383 = vmatpush1.msra.mxu0 0.0
  %1384 = vmatprep.subr.mxu0 0.0
  %1385 = vmatpush1.msra.mxu0 0.0
  %1386 = vmatprep.subr.mxu0 0.0
  %1387 = vmatpush1.msra.mxu0 0.0
  %1388 = vmatprep.subr.mxu0 0.0
  %1389 = vmatpush1.msra.mxu0 0.0
  %1390 = vmatprep.subr.mxu0 0.0
  %1391 = vmatpush1.msra.mxu0 0.0
  %1392 = vmatprep.subr.mxu0 0.0
  %1393 = vmatpush1.msra.mxu0 0.0
  %1394 = vmatprep.mubr.f32.mxu0 0.0
  %1395 = vmatmul.mubr.f32.gmra.mrb[0].mxu0 %v630
  %v1396 = vpop.f32.mrb[0].mxu0
  %v1397 = vadd.f32 0.0, %v1396
  %v1398 = vpop.f32.mrb[0].mxu0
  %1399 = vmatprep.mubr.f32.mxu0 0.0
  %1400 = vmatmul.mubr.f32.gmra.mrb[0].mxu0 %v633
  %v1401 = vpop.f32.mrb[0].mxu0
  %v1402 = vadd.f32 0.0, %v1401
  %v1403 = vpop.f32.mrb[0].mxu0
  %1404 = vmatprep.mubr.f32.mxu0 0.0
  %1405 = vmatmul.mubr.f32.gmra.mrb[0].mxu0 %v636
  %v1406 = vpop.f32.mrb[0].mxu0
  %v1407 = vadd.f32 0.0, %v1406
  %v1408 = vpop.f32.mrb[0].mxu0
  %1409 = vmatprep.mubr.f32.mxu0 0.0
  %1410 = vmatmul.mubr.f32.gmra.mrb[0].mxu0 %v639
  %v1411 = vpop.f32.mrb[0].mxu0
  %v1412 = vadd.f32 0.0, %v1411
  %v1413 = vpop.f32.mrb[0].mxu0
  %1414 = vmatprep.mubr.f32.mxu0 0.0
  %1415 = vmatmul.mubr.f32.gmra.mrb[0].mxu0 %v642
  %v1416 = vpop.f32.mrb[0].mxu0
  %v1417 = vadd.f32 0.0, %v1416
  %v1418 = vpop.f32.mrb[0].mxu0
  %1419 = vmatprep.mubr.f32.mxu0 0.0
  %1420 = vmatmul.mubr.f32.gmra.mrb[0].mxu0 %v645
  %v1421 = vpop.f32.mrb[0].mxu0
  %v1422 = vadd.f32 0.0, %v1421
  %v1423 = vpop.f32.mrb[0].mxu0
  %1424 = vmatprep.mubr.f32.mxu0 0.0
  %1425 = vmatmul.mubr.f32.gmra.mrb[0].mxu0 %v648
  %v1426 = vpop.f32.mrb[0].mxu0
  %v1427 = vadd.f32 0.0, %v1426
  %v1428 = vpop.f32.mrb[0].mxu0
  %1429 = vmatprep.mubr.f32.mxu0 0.0
  %1430 = vmatmul.mubr.f32.gmra.mrb[0].mxu0 %v724
  %v1431 = vpop.f32.mrb[0].mxu0
  %v1432 = vadd.f32 0.0, %v1431
  %v1433 = vpop.f32.mrb[0].mxu0
  %1434 = vmatprep.mubr.f32.mxu0 0.0
  %1435 = vmatmul.mubr.f32.gmra.mrb[0].mxu0 %v727
  %v1436 = vpop.f32.mrb[0].mxu0
  %v1437 = vadd.f32 0.0, %v1436
  %v1438 = vpop.f32.mrb[0].mxu0
  %1439 = vmatprep.mubr.f32.mxu0 0.0
  %1440 = vmatmul.mubr.f32.gmra.mrb[0].mxu0 %v730
  %v1441 = vpop.f32.mrb[0].mxu0
  %v1442 = vadd.f32 0.0, %v1441
  %v1443 = vpop.f32.mrb[0].mxu0
  %1444 = vmatprep.mubr.f32.mxu0 0.0
  %1445 = vmatmul.mubr.f32.gmra.mrb[0].mxu0 %v733
  %v1446 = vpop.f32.mrb[0].mxu0
  %v1447 = vadd.f32 0.0, %v1446
  %v1448 = vpop.f32.mrb[0].mxu0
  %1449 = vmatprep.mubr.f32.mxu0 0.0
  %1450 = vmatmul.mubr.f32.gmra.mrb[0].mxu0 %v736
  %v1451 = vpop.f32.mrb[0].mxu0
  %v1452 = vadd.f32 0.0, %v1451
  %v1453 = vpop.f32.mrb[0].mxu0
  %1454 = vmatprep.mubr.f32.mxu0 0.0
  %1455 = vmatmul.mubr.f32.gmra.mrb[0].mxu0 %v739
  %v1456 = vpop.f32.mrb[0].mxu0
  %v1457 = vadd.f32 0.0, %v1456
  %v1458 = vpop.f32.mrb[0].mxu0
  %1459 = vmatprep.mubr.f32.mxu0 0.0
  %1460 = vmatmul.mubr.f32.gmra.mrb[0].mxu0 %v742
  %v1461 = vpop.f32.mrb[0].mxu0
  %v1462 = vadd.f32 0.0, %v1461
  %v1463 = vpop.f32.mrb[0].mxu0
  %1464 = vdwg.mxu0
  %v1466 = vsel %vm43, %v1171, 0
  %v1469 = vsel %vm43, %v1262, 0
  %v1472 = vsel %vm43, %v1267, 0
  %v1475 = vsel %vm43, %v1272, 0
  %v1478 = vsel %vm43, %v1277, 0
  %v1481 = vsel %vm43, %v1282, 0
  %v1484 = vsel %vm43, %v1287, 0
  %v1487 = vsel %vm43, %v1292, 0
  %1489 = vmatprep.subr.mxu0 0.0
  %1490 = vmatpush1.xpose.msra.mxu0 %v1469
  %1491 = vmatprep.subr.mxu0 0.0
  %1492 = vmatpush1.xpose.msra.mxu0 %v1472
  %1493 = vmatprep.subr.mxu0 0.0
  %1494 = vmatpush1.xpose.msra.mxu0 %v1475
  %1495 = vmatprep.subr.mxu0 0.0
  %1496 = vmatpush1.xpose.msra.mxu0 %v1478
  %1497 = vmatprep.subr.mxu0 0.0
  %1498 = vmatpush1.xpose.msra.mxu0 %v1481
  %1499 = vmatprep.subr.mxu0 0.0
  %1500 = vmatpush1.xpose.msra.mxu0 %v1484
  %1501 = vmatprep.subr.mxu0 0.0
  %1502 = vmatpush1.xpose.msra.mxu0 %v1487
  %1503 = vmatprep.subr.mxu0 0.0
  %1504 = vmatpush1.xpose.msra.mxu0 0.0
  %1505 = vmatprep.subr.mxu0 0.0
  %1506 = vmatpush1.xpose.msra.mxu0 0.0
  %1507 = vmatprep.subr.mxu0 0.0
  %1508 = vmatpush1.xpose.msra.mxu0 0.0
  %1509 = vmatprep.subr.mxu0 0.0
  %1510 = vmatpush1.xpose.msra.mxu0 0.0
  %1511 = vmatprep.subr.mxu0 0.0
  %1512 = vmatpush1.xpose.msra.mxu0 0.0
  %1513 = vmatprep.subr.mxu0 0.0
  %1514 = vmatpush1.xpose.msra.mxu0 0.0
  %1515 = vmatprep.subr.mxu0 0.0
  %1516 = vmatpush1.xpose.msra.mxu0 0.0
  %1517 = vmatprep.subr.mxu0 0.0
  %1518 = vmatpush1.xpose.msra.mxu0 0.0
  %1519 = vmatprep.subr.mxu0 0.0
  %1520 = vmatpush1.xpose.msra.mxu0 0.0
  %1521 = vmatprep.subr.mxu0 0.0
  %1522 = vmatpush1.xpose.msra.mxu0 0.0
  %1523 = vmatprep.subr.mxu0 0.0
  %1524 = vmatpush1.xpose.msra.mxu0 0.0
  %1525 = vmatprep.subr.mxu0 0.0
  %1526 = vmatpush1.xpose.msra.mxu0 0.0
  %1527 = vmatprep.subr.mxu0 0.0
  %1528 = vmatpush1.xpose.msra.mxu0 0.0
  %1529 = vmatprep.subr.mxu0 0.0
  %1530 = vmatpush1.xpose.msra.mxu0 0.0
  %1531 = vmatprep.subr.mxu0 0.0
  %1532 = vmatpush1.xpose.msra.mxu0 0.0
  %1533 = vmatprep.subr.mxu0 0.0
  %1534 = vmatpush1.xpose.msra.mxu0 0.0
  %1535 = vmatprep.subr.mxu0 0.0
  %1536 = vmatpush1.xpose.msra.mxu0 0.0
  %1537 = vmatprep.subr.mxu0 0.0
  %1538 = vmatpush1.xpose.msra.mxu0 0.0
  %1539 = vmatprep.subr.mxu0 0.0
  %1540 = vmatpush1.xpose.msra.mxu0 0.0
  %1541 = vmatprep.subr.mxu0 0.0
  %1542 = vmatpush1.xpose.msra.mxu0 0.0
  %1543 = vmatprep.subr.mxu0 0.0
  %1544 = vmatpush1.xpose.msra.mxu0 0.0
  %1545 = vmatprep.subr.mxu0 0.0
  %1546 = vmatpush1.xpose.msra.mxu0 0.0
  %1547 = vmatprep.subr.mxu0 0.0
  %1548 = vmatpush1.xpose.msra.mxu0 0.0
  %1549 = vmatprep.subr.mxu0 0.0
  %1550 = vmatpush1.xpose.msra.mxu0 0.0
  %1551 = vmatprep.subr.mxu0 0.0
  %1552 = vmatpush1.xpose.msra.mxu0 0.0
  %1553 = vmatprep.mubr.f32.mxu0 0.0
  %1554 = vmatmul.mubr.f32.gmra.mrb[0].mxu0 %v1466
  %v1555 = vpop.f32.mrb[0].mxu0
  %v1556 = vadd.f32 0.0, %v1555
  %v1557 = vpop.f32.mrb[0].mxu0
  %1558 = vdwg.mxu0
  %v1560 = vsel %vm43, %v1176, 0
  %v1563 = vsel %vm43, %v1297, 0
  %v1566 = vsel %vm43, %v1302, 0
  %v1569 = vsel %vm43, %v1307, 0
  %v1572 = vsel %vm43, %v1312, 0
  %v1575 = vsel %vm43, %v1317, 0
  %v1578 = vsel %vm43, %v1322, 0
  %v1581 = vsel %vm43, %v1327, 0
  %1583 = vmatprep.subr.mxu0 0.0
  %1584 = vmatpush1.xpose.msra.mxu0 %v1563
  %1585 = vmatprep.subr.mxu0 0.0
  %1586 = vmatpush1.xpose.msra.mxu0 %v1566
  %1587 = vmatprep.subr.mxu0 0.0
  %1588 = vmatpush1.xpose.msra.mxu0 %v1569
  %1589 = vmatprep.subr.mxu0 0.0
  %1590 = vmatpush1.xpose.msra.mxu0 %v1572
  %1591 = vmatprep.subr.mxu0 0.0
  %1592 = vmatpush1.xpose.msra.mxu0 %v1575
  %1593 = vmatprep.subr.mxu0 0.0
  %1594 = vmatpush1.xpose.msra.mxu0 %v1578
  %1595 = vmatprep.subr.mxu0 0.0
  %1596 = vmatpush1.xpose.msra.mxu0 %v1581
  %1597 = vmatprep.subr.mxu0 0.0
  %1598 = vmatpush1.xpose.msra.mxu0 0.0
  %1599 = vmatprep.subr.mxu0 0.0
  %1600 = vmatpush1.xpose.msra.mxu0 0.0
  %1601 = vmatprep.subr.mxu0 0.0
  %1602 = vmatpush1.xpose.msra.mxu0 0.0
  %1603 = vmatprep.subr.mxu0 0.0
  %1604 = vmatpush1.xpose.msra.mxu0 0.0
  %1605 = vmatprep.subr.mxu0 0.0
  %1606 = vmatpush1.xpose.msra.mxu0 0.0
  %1607 = vmatprep.subr.mxu0 0.0
  %1608 = vmatpush1.xpose.msra.mxu0 0.0
  %1609 = vmatprep.subr.mxu0 0.0
  %1610 = vmatpush1.xpose.msra.mxu0 0.0
  %1611 = vmatprep.subr.mxu0 0.0
  %1612 = vmatpush1.xpose.msra.mxu0 0.0
  %1613 = vmatprep.subr.mxu0 0.0
  %1614 = vmatpush1.xpose.msra.mxu0 0.0
  %1615 = vmatprep.subr.mxu0 0.0
  %1616 = vmatpush1.xpose.msra.mxu0 0.0
  %1617 = vmatprep.subr.mxu0 0.0
  %1618 = vmatpush1.xpose.msra.mxu0 0.0
  %1619 = vmatprep.subr.mxu0 0.0
  %1620 = vmatpush1.xpose.msra.mxu0 0.0
  %1621 = vmatprep.subr.mxu0 0.0
  %1622 = vmatpush1.xpose.msra.mxu0 0.0
  %1623 = vmatprep.subr.mxu0 0.0
  %1624 = vmatpush1.xpose.msra.mxu0 0.0
  %1625 = vmatprep.subr.mxu0 0.0
  %1626 = vmatpush1.xpose.msra.mxu0 0.0
  %1627 = vmatprep.subr.mxu0 0.0
  %1628 = vmatpush1.xpose.msra.mxu0 0.0
  %1629 = vmatprep.subr.mxu0 0.0
  %1630 = vmatpush1.xpose.msra.mxu0 0.0
  %1631 = vmatprep.subr.mxu0 0.0
  %1632 = vmatpush1.xpose.msra.mxu0 0.0
  %1633 = vmatprep.subr.mxu0 0.0
  %1634 = vmatpush1.xpose.msra.mxu0 0.0
  %1635 = vmatprep.subr.mxu0 0.0
  %1636 = vmatpush1.xpose.msra.mxu0 0.0
  %1637 = vmatprep.subr.mxu0 0.0
  %1638 = vmatpush1.xpose.msra.mxu0 0.0
  %1639 = vmatprep.subr.mxu0 0.0
  %1640 = vmatpush1.xpose.msra.mxu0 0.0
  %1641 = vmatprep.subr.mxu0 0.0
  %1642 = vmatpush1.xpose.msra.mxu0 0.0
  %1643 = vmatprep.subr.mxu0 0.0
  %1644 = vmatpush1.xpose.msra.mxu0 0.0
  %1645 = vmatprep.subr.mxu0 0.0
  %1646 = vmatpush1.xpose.msra.mxu0 0.0
  %1647 = vmatprep.mubr.f32.mxu0 0.0
  %1648 = vmatmul.mubr.f32.gmra.mrb[0].mxu0 %v1560
  %v1649 = vpop.f32.mrb[0].mxu0
  %v1650 = vadd.f32 0.0, %v1649
  %v1651 = vpop.f32.mrb[0].mxu0
  %1652 = vdwg.mxu0
  %v1653 = vmul.f32 %v1556, 0.17677669
  %v1654 = vmul.f32 %v1650, 0.17677669
  %v1655 = vlaneseq
  %v1656 = vshrl.u32 %v1655, 7
  %v1657 = vsub.s32 0, %v1656
  %v1658 = vrot.slane %v42, %v1657
  %1660 = vrot.lane.b32.xlu0 %v1658, 64
  %v1661 = vpop.permute.xlu0 %1660
  %v1663 = vadd.f32 %v1653, %v1661
  %v1664 = vadd.f32 %v1654, %v1661
  %v1665 = vsel %vm475, %v1663, -inf
  %1666 = vmax.xlane.f32.xlu0 %v1665
  %v1667 = vpop.xlane.xlu0 %1666
  %v1668 = vsel %vm475, %v1664, -inf
  %1669 = vmax.xlane.f32.xlu0 %v1668
  %v1670 = vpop.xlane.xlu0 %1669
  %v1671 = vsub.f32 %v1663, %v1667
  %v1672 = vsub.f32 %v1664, %v1670
  %v1673 = vmul.f32 %v1671, 1.442695
  %v1674 = vpow.pop %v1673
  %v1675 = vmul.f32 %v1672, 1.442695
  %v1676 = vpow.pop %v1675
  %v1677 = vsel %vm475, %v1674, 0.0
  %1678 = vadd.xlane.f32.xlu0 %v1677
  %v1679 = vpop.xlane.xlu0 %1678
  %v1680 = vsel %vm475, %v1676, 0.0
  %1681 = vadd.xlane.f32.xlu0 %v1680
  %v1682 = vpop.xlane.xlu0 %1681
  %v1683 = vrcp.pop %v1679
  %v1684 = vmul.f32 %v1674, %v1683
  %v1685 = vrcp.pop %v1682
  %v1686 = vmul.f32 %v1676, %v1685
  %v1688 = vsel %vm475, %v1684, 0
  %1690 = vmatprep.subr.mxu0 0.0
  %1691 = vmatpush1.msra.mxu0 %v1397
  %1692 = vmatprep.subr.mxu0 0.0
  %1693 = vmatpush1.msra.mxu0 %v1402
  %1694 = vmatprep.subr.mxu0 0.0
  %1695 = vmatpush1.msra.mxu0 %v1407
  %1696 = vmatprep.subr.mxu0 0.0
  %1697 = vmatpush1.msra.mxu0 %v1412
  %1698 = vmatprep.subr.mxu0 0.0
  %1699 = vmatpush1.msra.mxu0 %v1417
  %1700 = vmatprep.subr.mxu0 0.0
  %1701 = vmatpush1.msra.mxu0 %v1422
  %1702 = vmatprep.subr.mxu0 0.0
  %1703 = vmatpush1.msra.mxu0 %v1427
  %1704 = vmatprep.subr.mxu0 0.0
  %1705 = vmatpush1.msra.mxu0 0.0
  %1706 = vmatprep.subr.mxu0 0.0
  %1707 = vmatpush1.msra.mxu0 0.0
  %1708 = vmatprep.subr.mxu0 0.0
  %1709 = vmatpush1.msra.mxu0 0.0
  %1710 = vmatprep.subr.mxu0 0.0
  %1711 = vmatpush1.msra.mxu0 0.0
  %1712 = vmatprep.subr.mxu0 0.0
  %1713 = vmatpush1.msra.mxu0 0.0
  %1714 = vmatprep.subr.mxu0 0.0
  %1715 = vmatpush1.msra.mxu0 0.0
  %1716 = vmatprep.subr.mxu0 0.0
  %1717 = vmatpush1.msra.mxu0 0.0
  %1718 = vmatprep.subr.mxu0 0.0
  %1719 = vmatpush1.msra.mxu0 0.0
  %1720 = vmatprep.subr.mxu0 0.0
  %1721 = vmatpush1.msra.mxu0 0.0
  %1722 = vmatprep.subr.mxu0 0.0
  %1723 = vmatpush1.msra.mxu0 0.0
  %1724 = vmatprep.subr.mxu0 0.0
  %1725 = vmatpush1.msra.mxu0 0.0
  %1726 = vmatprep.subr.mxu0 0.0
  %1727 = vmatpush1.msra.mxu0 0.0
  %1728 = vmatprep.subr.mxu0 0.0
  %1729 = vmatpush1.msra.mxu0 0.0
  %1730 = vmatprep.subr.mxu0 0.0
  %1731 = vmatpush1.msra.mxu0 0.0
  %1732 = vmatprep.subr.mxu0 0.0
  %1733 = vmatpush1.msra.mxu0 0.0
  %1734 = vmatprep.subr.mxu0 0.0
  %1735 = vmatpush1.msra.mxu0 0.0
  %1736 = vmatprep.subr.mxu0 0.0
  %1737 = vmatpush1.msra.mxu0 0.0
  %1738 = vmatprep.subr.mxu0 0.0
  %1739 = vmatpush1.msra.mxu0 0.0
  %1740 = vmatprep.subr.mxu0 0.0
  %1741 = vmatpush1.msra.mxu0 0.0
  %1742 = vmatprep.subr.mxu0 0.0
  %1743 = vmatpush1.msra.mxu0 0.0
  %1744 = vmatprep.subr.mxu0 0.0
  %1745 = vmatpush1.msra.mxu0 0.0
  %1746 = vmatprep.subr.mxu0 0.0
  %1747 = vmatpush1.msra.mxu0 0.0
  %1748 = vmatprep.subr.mxu0 0.0
  %1749 = vmatpush1.msra.mxu0 0.0
  %1750 = vmatprep.subr.mxu0 0.0
  %1751 = vmatpush1.msra.mxu0 0.0
  %1752 = vmatprep.subr.mxu0 0.0
  %1753 = vmatpush1.msra.mxu0 0.0
  %1754 = vmatprep.mubr.f32.mxu0 0.0
  %1755 = vmatmul.mubr.f32.gmra.mrb[0].mxu0 %v1688
  %v1756 = vpop.f32.mrb[0].mxu0
  %v1757 = vadd.f32 0.0, %v1756
  %v1758 = vpop.f32.mrb[0].mxu0
  %1759 = vdwg.mxu0
  %v1761 = vsel %vm475, %v1686, 0
  %1763 = vmatprep.subr.mxu0 0.0
  %1764 = vmatpush1.msra.mxu0 %v1432
  %1765 = vmatprep.subr.mxu0 0.0
  %1766 = vmatpush1.msra.mxu0 %v1437
  %1767 = vmatprep.subr.mxu0 0.0
  %1768 = vmatpush1.msra.mxu0 %v1442
  %1769 = vmatprep.subr.mxu0 0.0
  %1770 = vmatpush1.msra.mxu0 %v1447
  %1771 = vmatprep.subr.mxu0 0.0
  %1772 = vmatpush1.msra.mxu0 %v1452
  %1773 = vmatprep.subr.mxu0 0.0
  %1774 = vmatpush1.msra.mxu0 %v1457
  %1775 = vmatprep.subr.mxu0 0.0
  %1776 = vmatpush1.msra.mxu0 %v1462
  %1777 = vmatprep.subr.mxu0 0.0
  %1778 = vmatpush1.msra.mxu0 0.0
  %1779 = vmatprep.subr.mxu0 0.0
  %1780 = vmatpush1.msra.mxu0 0.0
  %1781 = vmatprep.subr.mxu0 0.0
  %1782 = vmatpush1.msra.mxu0 0.0
  %1783 = vmatprep.subr.mxu0 0.0
  %1784 = vmatpush1.msra.mxu0 0.0
  %1785 = vmatprep.subr.mxu0 0.0
  %1786 = vmatpush1.msra.mxu0 0.0
  %1787 = vmatprep.subr.mxu0 0.0
  %1788 = vmatpush1.msra.mxu0 0.0
  %1789 = vmatprep.subr.mxu0 0.0
  %1790 = vmatpush1.msra.mxu0 0.0
  %1791 = vmatprep.subr.mxu0 0.0
  %1792 = vmatpush1.msra.mxu0 0.0
  %1793 = vmatprep.subr.mxu0 0.0
  %1794 = vmatpush1.msra.mxu0 0.0
  %1795 = vmatprep.subr.mxu0 0.0
  %1796 = vmatpush1.msra.mxu0 0.0
  %1797 = vmatprep.subr.mxu0 0.0
  %1798 = vmatpush1.msra.mxu0 0.0
  %1799 = vmatprep.subr.mxu0 0.0
  %1800 = vmatpush1.msra.mxu0 0.0
  %1801 = vmatprep.subr.mxu0 0.0
  %1802 = vmatpush1.msra.mxu0 0.0
  %1803 = vmatprep.subr.mxu0 0.0
  %1804 = vmatpush1.msra.mxu0 0.0
  %1805 = vmatprep.subr.mxu0 0.0
  %1806 = vmatpush1.msra.mxu0 0.0
  %1807 = vmatprep.subr.mxu0 0.0
  %1808 = vmatpush1.msra.mxu0 0.0
  %1809 = vmatprep.subr.mxu0 0.0
  %1810 = vmatpush1.msra.mxu0 0.0
  %1811 = vmatprep.subr.mxu0 0.0
  %1812 = vmatpush1.msra.mxu0 0.0
  %1813 = vmatprep.subr.mxu0 0.0
  %1814 = vmatpush1.msra.mxu0 0.0
  %1815 = vmatprep.subr.mxu0 0.0
  %1816 = vmatpush1.msra.mxu0 0.0
  %1817 = vmatprep.subr.mxu0 0.0
  %1818 = vmatpush1.msra.mxu0 0.0
  %1819 = vmatprep.subr.mxu0 0.0
  %1820 = vmatpush1.msra.mxu0 0.0
  %1821 = vmatprep.subr.mxu0 0.0
  %1822 = vmatpush1.msra.mxu0 0.0
  %1823 = vmatprep.subr.mxu0 0.0
  %1824 = vmatpush1.msra.mxu0 0.0
  %1825 = vmatprep.subr.mxu0 0.0
  %1826 = vmatpush1.msra.mxu0 0.0
  %1827 = vmatprep.mubr.f32.mxu0 0.0
  %1828 = vmatmul.mubr.f32.gmra.mrb[0].mxu0 %v1761
  %v1829 = vpop.f32.mrb[0].mxu0
  %v1830 = vadd.f32 0.0, %v1829
  %v1831 = vpop.f32.mrb[0].mxu0
  %1832 = vdwg.mxu0
  %v1833 = vld [vmem:[%s3 + $0x8] sm:$0xff]
  %v1834 = vld [vmem:[%s3 + $0x28] sm:$0xff]
  %v1835 = vld [vmem:[%s3 + $0x48] sm:$0xff]
  %v1836 = vld [vmem:[%s3 + $0x68] sm:$0xff]
  %v1837 = vld [vmem:[%s3 + $0x10] sm:$0xff]
  %v1838 = vld [vmem:[%s3 + $0x30] sm:$0xff]
  %v1839 = vld [vmem:[%s3 + $0x50] sm:$0xff]
  %v1840 = vld [vmem:[%s3 + $0x70] sm:$0xff]
  %1845 = vrot.lane.b32.xlu0 %v1833, 96
  %v1846 = vpop.permute.xlu0 %1845
  %1847 = vrot.lane.b32.xlu0 %v1834, 96
  %v1848 = vpop.permute.xlu0 %1847
  %1849 = vrot.lane.b32.xlu0 %v1835, 96
  %v1850 = vpop.permute.xlu0 %1849
  %1851 = vrot.lane.b32.xlu0 %v1836, 96
  %v1852 = vpop.permute.xlu0 %1851
  %1857 = vmatprep.subr.mxu0 0.0
  %1858 = vmatpush1.msra.mxu0 %v1846
  %1859 = vmatprep.subr.mxu0 0.0
  %1860 = vmatpush1.msra.mxu0 %v1848
  %1861 = vmatprep.subr.mxu0 0.0
  %1862 = vmatpush1.msra.mxu0 %v1850
  %1863 = vmatprep.subr.mxu0 0.0
  %1864 = vmatpush1.msra.mxu0 %v1852
  %1865 = vmatprep.subr.mxu0 0.0
  %1866 = vmatpush1.msra.mxu0 0.0
  %1867 = vmatprep.subr.mxu0 0.0
  %1868 = vmatpush1.msra.mxu0 0.0
  %1869 = vmatprep.subr.mxu0 0.0
  %1870 = vmatpush1.msra.mxu0 0.0
  %1871 = vmatprep.subr.mxu0 0.0
  %1872 = vmatpush1.msra.mxu0 0.0
  %1873 = vmatprep.subr.mxu0 0.0
  %1874 = vmatpush1.msra.mxu0 0.0
  %1875 = vmatprep.subr.mxu0 0.0
  %1876 = vmatpush1.msra.mxu0 0.0
  %1877 = vmatprep.subr.mxu0 0.0
  %1878 = vmatpush1.msra.mxu0 0.0
  %1879 = vmatprep.subr.mxu0 0.0
  %1880 = vmatpush1.msra.mxu0 0.0
  %1881 = vmatprep.subr.mxu0 0.0
  %1882 = vmatpush1.msra.mxu0 0.0
  %1883 = vmatprep.subr.mxu0 0.0
  %1884 = vmatpush1.msra.mxu0 0.0
  %1885 = vmatprep.subr.mxu0 0.0
  %1886 = vmatpush1.msra.mxu0 0.0
  %1887 = vmatprep.subr.mxu0 0.0
  %1888 = vmatpush1.msra.mxu0 0.0
  %1889 = vmatprep.subr.mxu0 0.0
  %1890 = vmatpush1.msra.mxu0 0.0
  %1891 = vmatprep.subr.mxu0 0.0
  %1892 = vmatpush1.msra.mxu0 0.0
  %1893 = vmatprep.subr.mxu0 0.0
  %1894 = vmatpush1.msra.mxu0 0.0
  %1895 = vmatprep.subr.mxu0 0.0
  %1896 = vmatpush1.msra.mxu0 0.0
  %1897 = vmatprep.subr.mxu0 0.0
  %1898 = vmatpush1.msra.mxu0 0.0
  %1899 = vmatprep.subr.mxu0 0.0
  %1900 = vmatpush1.msra.mxu0 0.0
  %1901 = vmatprep.subr.mxu0 0.0
  %1902 = vmatpush1.msra.mxu0 0.0
  %1903 = vmatprep.subr.mxu0 0.0
  %1904 = vmatpush1.msra.mxu0 0.0
  %1905 = vmatprep.subr.mxu0 0.0
  %1906 = vmatpush1.msra.mxu0 0.0
  %1907 = vmatprep.subr.mxu0 0.0
  %1908 = vmatpush1.msra.mxu0 0.0
  %1909 = vmatprep.subr.mxu0 0.0
  %1910 = vmatpush1.msra.mxu0 0.0
  %1911 = vmatprep.subr.mxu0 0.0
  %1912 = vmatpush1.msra.mxu0 0.0
  %1913 = vmatprep.subr.mxu0 0.0
  %1914 = vmatpush1.msra.mxu0 0.0
  %1915 = vmatprep.subr.mxu0 0.0
  %1916 = vmatpush1.msra.mxu0 0.0
  %1917 = vmatprep.subr.mxu0 0.0
  %1918 = vmatpush1.msra.mxu0 0.0
  %1919 = vmatprep.subr.mxu0 0.0
  %1920 = vmatpush1.msra.mxu0 0.0
  %1921 = vmatprep.mubr.f32.mxu0 0.0
  %1922 = vmatmul.mubr.f32.gmra.mrb[0].mxu0 %v48
  %v1923 = vpop.f32.mrb[0].mxu0
  %v1924 = vadd.f32 0.0, %v1923
  %v1925 = vpop.f32.mrb[0].mxu0
  %1926 = vmatprep.mubr.f32.mxu0 0.0
  %1927 = vmatmul.mubr.f32.gmra.mrb[0].mxu0 %v124
  %v1928 = vpop.f32.mrb[0].mxu0
  %v1929 = vadd.f32 0.0, %v1928
  %v1930 = vpop.f32.mrb[0].mxu0
  %1931 = vdwg.mxu0
  %1932 = vrot.lane.b32.xlu0 %v1833, 32
  %v1933 = vpop.permute.xlu0 %1932
  %1934 = vrot.lane.b32.xlu0 %v1834, 32
  %v1935 = vpop.permute.xlu0 %1934
  %1936 = vrot.lane.b32.xlu0 %v1835, 32
  %v1937 = vpop.permute.xlu0 %1936
  %1938 = vrot.lane.b32.xlu0 %v1836, 32
  %v1939 = vpop.permute.xlu0 %1938
  %1944 = vmatprep.subr.mxu0 0.0
  %1945 = vmatpush1.msra.mxu0 %v1933
  %1946 = vmatprep.subr.mxu0 0.0
  %1947 = vmatpush1.msra.mxu0 %v1935
  %1948 = vmatprep.subr.mxu0 0.0
  %1949 = vmatpush1.msra.mxu0 %v1937
  %1950 = vmatprep.subr.mxu0 0.0
  %1951 = vmatpush1.msra.mxu0 %v1939
  %1952 = vmatprep.subr.mxu0 0.0
  %1953 = vmatpush1.msra.mxu0 0.0
  %1954 = vmatprep.subr.mxu0 0.0
  %1955 = vmatpush1.msra.mxu0 0.0
  %1956 = vmatprep.subr.mxu0 0.0
  %1957 = vmatpush1.msra.mxu0 0.0
  %1958 = vmatprep.subr.mxu0 0.0
  %1959 = vmatpush1.msra.mxu0 0.0
  %1960 = vmatprep.subr.mxu0 0.0
  %1961 = vmatpush1.msra.mxu0 0.0
  %1962 = vmatprep.subr.mxu0 0.0
  %1963 = vmatpush1.msra.mxu0 0.0
  %1964 = vmatprep.subr.mxu0 0.0
  %1965 = vmatpush1.msra.mxu0 0.0
  %1966 = vmatprep.subr.mxu0 0.0
  %1967 = vmatpush1.msra.mxu0 0.0
  %1968 = vmatprep.subr.mxu0 0.0
  %1969 = vmatpush1.msra.mxu0 0.0
  %1970 = vmatprep.subr.mxu0 0.0
  %1971 = vmatpush1.msra.mxu0 0.0
  %1972 = vmatprep.subr.mxu0 0.0
  %1973 = vmatpush1.msra.mxu0 0.0
  %1974 = vmatprep.subr.mxu0 0.0
  %1975 = vmatpush1.msra.mxu0 0.0
  %1976 = vmatprep.subr.mxu0 0.0
  %1977 = vmatpush1.msra.mxu0 0.0
  %1978 = vmatprep.subr.mxu0 0.0
  %1979 = vmatpush1.msra.mxu0 0.0
  %1980 = vmatprep.subr.mxu0 0.0
  %1981 = vmatpush1.msra.mxu0 0.0
  %1982 = vmatprep.subr.mxu0 0.0
  %1983 = vmatpush1.msra.mxu0 0.0
  %1984 = vmatprep.subr.mxu0 0.0
  %1985 = vmatpush1.msra.mxu0 0.0
  %1986 = vmatprep.subr.mxu0 0.0
  %1987 = vmatpush1.msra.mxu0 0.0
  %1988 = vmatprep.subr.mxu0 0.0
  %1989 = vmatpush1.msra.mxu0 0.0
  %1990 = vmatprep.subr.mxu0 0.0
  %1991 = vmatpush1.msra.mxu0 0.0
  %1992 = vmatprep.subr.mxu0 0.0
  %1993 = vmatpush1.msra.mxu0 0.0
  %1994 = vmatprep.subr.mxu0 0.0
  %1995 = vmatpush1.msra.mxu0 0.0
  %1996 = vmatprep.subr.mxu0 0.0
  %1997 = vmatpush1.msra.mxu0 0.0
  %1998 = vmatprep.subr.mxu0 0.0
  %1999 = vmatpush1.msra.mxu0 0.0
  %2000 = vmatprep.subr.mxu0 0.0
  %2001 = vmatpush1.msra.mxu0 0.0
  %2002 = vmatprep.subr.mxu0 0.0
  %2003 = vmatpush1.msra.mxu0 0.0
  %2004 = vmatprep.subr.mxu0 0.0
  %2005 = vmatpush1.msra.mxu0 0.0
  %2006 = vmatprep.subr.mxu0 0.0
  %2007 = vmatpush1.msra.mxu0 0.0
  %2008 = vmatprep.mubr.f32.mxu0 0.0
  %2009 = vmatmul.mubr.f32.gmra.mrb[0].mxu0 %v630
  %v2010 = vpop.f32.mrb[0].mxu0
  %v2011 = vadd.f32 0.0, %v2010
  %v2012 = vpop.f32.mrb[0].mxu0
  %2013 = vmatprep.mubr.f32.mxu0 0.0
  %2014 = vmatmul.mubr.f32.gmra.mrb[0].mxu0 %v633
  %v2015 = vpop.f32.mrb[0].mxu0
  %v2016 = vadd.f32 0.0, %v2015
  %v2017 = vpop.f32.mrb[0].mxu0
  %2018 = vmatprep.mubr.f32.mxu0 0.0
  %2019 = vmatmul.mubr.f32.gmra.mrb[0].mxu0 %v636
  %v2020 = vpop.f32.mrb[0].mxu0
  %v2021 = vadd.f32 0.0, %v2020
  %v2022 = vpop.f32.mrb[0].mxu0
  %2023 = vmatprep.mubr.f32.mxu0 0.0
  %2024 = vmatmul.mubr.f32.gmra.mrb[0].mxu0 %v639
  %v2025 = vpop.f32.mrb[0].mxu0
  %v2026 = vadd.f32 0.0, %v2025
  %v2027 = vpop.f32.mrb[0].mxu0
  %2028 = vmatprep.mubr.f32.mxu0 0.0
  %2029 = vmatmul.mubr.f32.gmra.mrb[0].mxu0 %v642
  %v2030 = vpop.f32.mrb[0].mxu0
  %v2031 = vadd.f32 0.0, %v2030
  %v2032 = vpop.f32.mrb[0].mxu0
  %2033 = vmatprep.mubr.f32.mxu0 0.0
  %2034 = vmatmul.mubr.f32.gmra.mrb[0].mxu0 %v645
  %v2035 = vpop.f32.mrb[0].mxu0
  %v2036 = vadd.f32 0.0, %v2035
  %v2037 = vpop.f32.mrb[0].mxu0
  %2038 = vmatprep.mubr.f32.mxu0 0.0
  %2039 = vmatmul.mubr.f32.gmra.mrb[0].mxu0 %v648
  %v2040 = vpop.f32.mrb[0].mxu0
  %v2041 = vadd.f32 0.0, %v2040
  %v2042 = vpop.f32.mrb[0].mxu0
  %2043 = vmatprep.mubr.f32.mxu0 0.0
  %2044 = vmatmul.mubr.f32.gmra.mrb[0].mxu0 %v724
  %v2045 = vpop.f32.mrb[0].mxu0
  %v2046 = vadd.f32 0.0, %v2045
  %v2047 = vpop.f32.mrb[0].mxu0
  %2048 = vmatprep.mubr.f32.mxu0 0.0
  %2049 = vmatmul.mubr.f32.gmra.mrb[0].mxu0 %v727
  %v2050 = vpop.f32.mrb[0].mxu0
  %v2051 = vadd.f32 0.0, %v2050
  %v2052 = vpop.f32.mrb[0].mxu0
  %2053 = vmatprep.mubr.f32.mxu0 0.0
  %2054 = vmatmul.mubr.f32.gmra.mrb[0].mxu0 %v730
  %v2055 = vpop.f32.mrb[0].mxu0
  %v2056 = vadd.f32 0.0, %v2055
  %v2057 = vpop.f32.mrb[0].mxu0
  %2058 = vmatprep.mubr.f32.mxu0 0.0
  %2059 = vmatmul.mubr.f32.gmra.mrb[0].mxu0 %v733
  %v2060 = vpop.f32.mrb[0].mxu0
  %v2061 = vadd.f32 0.0, %v2060
  %v2062 = vpop.f32.mrb[0].mxu0
  %2063 = vmatprep.mubr.f32.mxu0 0.0
  %2064 = vmatmul.mubr.f32.gmra.mrb[0].mxu0 %v736
  %v2065 = vpop.f32.mrb[0].mxu0
  %v2066 = vadd.f32 0.0, %v2065
  %v2067 = vpop.f32.mrb[0].mxu0
  %2068 = vmatprep.mubr.f32.mxu0 0.0
  %2069 = vmatmul.mubr.f32.gmra.mrb[0].mxu0 %v739
  %v2070 = vpop.f32.mrb[0].mxu0
  %v2071 = vadd.f32 0.0, %v2070
  %v2072 = vpop.f32.mrb[0].mxu0
  %2073 = vmatprep.mubr.f32.mxu0 0.0
  %2074 = vmatmul.mubr.f32.gmra.mrb[0].mxu0 %v742
  %v2075 = vpop.f32.mrb[0].mxu0
  %v2076 = vadd.f32 0.0, %v2075
  %v2077 = vpop.f32.mrb[0].mxu0
  %2078 = vdwg.mxu0
  %2083 = vrot.lane.b32.xlu0 %v1837, 96
  %v2084 = vpop.permute.xlu0 %2083
  %2085 = vrot.lane.b32.xlu0 %v1838, 96
  %v2086 = vpop.permute.xlu0 %2085
  %2087 = vrot.lane.b32.xlu0 %v1839, 96
  %v2088 = vpop.permute.xlu0 %2087
  %2089 = vrot.lane.b32.xlu0 %v1840, 96
  %v2090 = vpop.permute.xlu0 %2089
  %2095 = vmatprep.subr.mxu0 0.0
  %2096 = vmatpush1.msra.mxu0 %v2084
  %2097 = vmatprep.subr.mxu0 0.0
  %2098 = vmatpush1.msra.mxu0 %v2086
  %2099 = vmatprep.subr.mxu0 0.0
  %2100 = vmatpush1.msra.mxu0 %v2088
  %2101 = vmatprep.subr.mxu0 0.0
  %2102 = vmatpush1.msra.mxu0 %v2090
  %2103 = vmatprep.subr.mxu0 0.0
  %2104 = vmatpush1.msra.mxu0 0.0
  %2105 = vmatprep.subr.mxu0 0.0
  %2106 = vmatpush1.msra.mxu0 0.0
  %2107 = vmatprep.subr.mxu0 0.0
  %2108 = vmatpush1.msra.mxu0 0.0
  %2109 = vmatprep.subr.mxu0 0.0
  %2110 = vmatpush1.msra.mxu0 0.0
  %2111 = vmatprep.subr.mxu0 0.0
  %2112 = vmatpush1.msra.mxu0 0.0
  %2113 = vmatprep.subr.mxu0 0.0
  %2114 = vmatpush1.msra.mxu0 0.0
  %2115 = vmatprep.subr.mxu0 0.0
  %2116 = vmatpush1.msra.mxu0 0.0
  %2117 = vmatprep.subr.mxu0 0.0
  %2118 = vmatpush1.msra.mxu0 0.0
  %2119 = vmatprep.subr.mxu0 0.0
  %2120 = vmatpush1.msra.mxu0 0.0
  %2121 = vmatprep.subr.mxu0 0.0
  %2122 = vmatpush1.msra.mxu0 0.0
  %2123 = vmatprep.subr.mxu0 0.0
  %2124 = vmatpush1.msra.mxu0 0.0
  %2125 = vmatprep.subr.mxu0 0.0
  %2126 = vmatpush1.msra.mxu0 0.0
  %2127 = vmatprep.subr.mxu0 0.0
  %2128 = vmatpush1.msra.mxu0 0.0
  %2129 = vmatprep.subr.mxu0 0.0
  %2130 = vmatpush1.msra.mxu0 0.0
  %2131 = vmatprep.subr.mxu0 0.0
  %2132 = vmatpush1.msra.mxu0 0.0
  %2133 = vmatprep.subr.mxu0 0.0
  %2134 = vmatpush1.msra.mxu0 0.0
  %2135 = vmatprep.subr.mxu0 0.0
  %2136 = vmatpush1.msra.mxu0 0.0
  %2137 = vmatprep.subr.mxu0 0.0
  %2138 = vmatpush1.msra.mxu0 0.0
  %2139 = vmatprep.subr.mxu0 0.0
  %2140 = vmatpush1.msra.mxu0 0.0
  %2141 = vmatprep.subr.mxu0 0.0
  %2142 = vmatpush1.msra.mxu0 0.0
  %2143 = vmatprep.subr.mxu0 0.0
  %2144 = vmatpush1.msra.mxu0 0.0
  %2145 = vmatprep.subr.mxu0 0.0
  %2146 = vmatpush1.msra.mxu0 0.0
  %2147 = vmatprep.subr.mxu0 0.0
  %2148 = vmatpush1.msra.mxu0 0.0
  %2149 = vmatprep.subr.mxu0 0.0
  %2150 = vmatpush1.msra.mxu0 0.0
  %2151 = vmatprep.subr.mxu0 0.0
  %2152 = vmatpush1.msra.mxu0 0.0
  %2153 = vmatprep.subr.mxu0 0.0
  %2154 = vmatpush1.msra.mxu0 0.0
  %2155 = vmatprep.subr.mxu0 0.0
  %2156 = vmatpush1.msra.mxu0 0.0
  %2157 = vmatprep.subr.mxu0 0.0
  %2158 = vmatpush1.msra.mxu0 0.0
  %2159 = vmatprep.mubr.f32.mxu0 0.0
  %2160 = vmatmul.mubr.f32.gmra.mrb[0].mxu0 %v630
  %v2161 = vpop.f32.mrb[0].mxu0
  %v2162 = vadd.f32 0.0, %v2161
  %v2163 = vpop.f32.mrb[0].mxu0
  %2164 = vmatprep.mubr.f32.mxu0 0.0
  %2165 = vmatmul.mubr.f32.gmra.mrb[0].mxu0 %v633
  %v2166 = vpop.f32.mrb[0].mxu0
  %v2167 = vadd.f32 0.0, %v2166
  %v2168 = vpop.f32.mrb[0].mxu0
  %2169 = vmatprep.mubr.f32.mxu0 0.0
  %2170 = vmatmul.mubr.f32.gmra.mrb[0].mxu0 %v636
  %v2171 = vpop.f32.mrb[0].mxu0
  %v2172 = vadd.f32 0.0, %v2171
  %v2173 = vpop.f32.mrb[0].mxu0
  %2174 = vmatprep.mubr.f32.mxu0 0.0
  %2175 = vmatmul.mubr.f32.gmra.mrb[0].mxu0 %v639
  %v2176 = vpop.f32.mrb[0].mxu0
  %v2177 = vadd.f32 0.0, %v2176
  %v2178 = vpop.f32.mrb[0].mxu0
  %2179 = vmatprep.mubr.f32.mxu0 0.0
  %2180 = vmatmul.mubr.f32.gmra.mrb[0].mxu0 %v642
  %v2181 = vpop.f32.mrb[0].mxu0
  %v2182 = vadd.f32 0.0, %v2181
  %v2183 = vpop.f32.mrb[0].mxu0
  %2184 = vmatprep.mubr.f32.mxu0 0.0
  %2185 = vmatmul.mubr.f32.gmra.mrb[0].mxu0 %v645
  %v2186 = vpop.f32.mrb[0].mxu0
  %v2187 = vadd.f32 0.0, %v2186
  %v2188 = vpop.f32.mrb[0].mxu0
  %2189 = vmatprep.mubr.f32.mxu0 0.0
  %2190 = vmatmul.mubr.f32.gmra.mrb[0].mxu0 %v648
  %v2191 = vpop.f32.mrb[0].mxu0
  %v2192 = vadd.f32 0.0, %v2191
  %v2193 = vpop.f32.mrb[0].mxu0
  %2194 = vmatprep.mubr.f32.mxu0 0.0
  %2195 = vmatmul.mubr.f32.gmra.mrb[0].mxu0 %v724
  %v2196 = vpop.f32.mrb[0].mxu0
  %v2197 = vadd.f32 0.0, %v2196
  %v2198 = vpop.f32.mrb[0].mxu0
  %2199 = vmatprep.mubr.f32.mxu0 0.0
  %2200 = vmatmul.mubr.f32.gmra.mrb[0].mxu0 %v727
  %v2201 = vpop.f32.mrb[0].mxu0
  %v2202 = vadd.f32 0.0, %v2201
  %v2203 = vpop.f32.mrb[0].mxu0
  %2204 = vmatprep.mubr.f32.mxu0 0.0
  %2205 = vmatmul.mubr.f32.gmra.mrb[0].mxu0 %v730
  %v2206 = vpop.f32.mrb[0].mxu0
  %v2207 = vadd.f32 0.0, %v2206
  %v2208 = vpop.f32.mrb[0].mxu0
  %2209 = vmatprep.mubr.f32.mxu0 0.0
  %2210 = vmatmul.mubr.f32.gmra.mrb[0].mxu0 %v733
  %v2211 = vpop.f32.mrb[0].mxu0
  %v2212 = vadd.f32 0.0, %v2211
  %v2213 = vpop.f32.mrb[0].mxu0
  %2214 = vmatprep.mubr.f32.mxu0 0.0
  %2215 = vmatmul.mubr.f32.gmra.mrb[0].mxu0 %v736
  %v2216 = vpop.f32.mrb[0].mxu0
  %v2217 = vadd.f32 0.0, %v2216
  %v2218 = vpop.f32.mrb[0].mxu0
  %2219 = vmatprep.mubr.f32.mxu0 0.0
  %2220 = vmatmul.mubr.f32.gmra.mrb[0].mxu0 %v739
  %v2221 = vpop.f32.mrb[0].mxu0
  %v2222 = vadd.f32 0.0, %v2221
  %v2223 = vpop.f32.mrb[0].mxu0
  %2224 = vmatprep.mubr.f32.mxu0 0.0
  %2225 = vmatmul.mubr.f32.gmra.mrb[0].mxu0 %v742
  %v2226 = vpop.f32.mrb[0].mxu0
  %v2227 = vadd.f32 0.0, %v2226
  %v2228 = vpop.f32.mrb[0].mxu0
  %2229 = vdwg.mxu0
  %v2231 = vsel %vm43, %v1924, 0
  %v2234 = vsel %vm43, %v2011, 0
  %v2237 = vsel %vm43, %v2016, 0
  %v2240 = vsel %vm43, %v2021, 0
  %v2243 = vsel %vm43, %v2026, 0
  %v2246 = vsel %vm43, %v2031, 0
  %v2249 = vsel %vm43, %v2036, 0
  %v2252 = vsel %vm43, %v2041, 0
  %2254 = vmatprep.subr.mxu0 0.0
  %2255 = vmatpush1.xpose.msra.mxu0 %v2234
  %2256 = vmatprep.subr.mxu0 0.0
  %2257 = vmatpush1.xpose.msra.mxu0 %v2237
  %2258 = vmatprep.subr.mxu0 0.0
  %2259 = vmatpush1.xpose.msra.mxu0 %v2240
  %2260 = vmatprep.subr.mxu0 0.0
  %2261 = vmatpush1.xpose.msra.mxu0 %v2243
  %2262 = vmatprep.subr.mxu0 0.0
  %2263 = vmatpush1.xpose.msra.mxu0 %v2246
  %2264 = vmatprep.subr.mxu0 0.0
  %2265 = vmatpush1.xpose.msra.mxu0 %v2249
  %2266 = vmatprep.subr.mxu0 0.0
  %2267 = vmatpush1.xpose.msra.mxu0 %v2252
  %2268 = vmatprep.subr.mxu0 0.0
  %2269 = vmatpush1.xpose.msra.mxu0 0.0
  %2270 = vmatprep.subr.mxu0 0.0
  %2271 = vmatpush1.xpose.msra.mxu0 0.0
  %2272 = vmatprep.subr.mxu0 0.0
  %2273 = vmatpush1.xpose.msra.mxu0 0.0
  %2274 = vmatprep.subr.mxu0 0.0
  %2275 = vmatpush1.xpose.msra.mxu0 0.0
  %2276 = vmatprep.subr.mxu0 0.0
  %2277 = vmatpush1.xpose.msra.mxu0 0.0
  %2278 = vmatprep.subr.mxu0 0.0
  %2279 = vmatpush1.xpose.msra.mxu0 0.0
  %2280 = vmatprep.subr.mxu0 0.0
  %2281 = vmatpush1.xpose.msra.mxu0 0.0
  %2282 = vmatprep.subr.mxu0 0.0
  %2283 = vmatpush1.xpose.msra.mxu0 0.0
  %2284 = vmatprep.subr.mxu0 0.0
  %2285 = vmatpush1.xpose.msra.mxu0 0.0
  %2286 = vmatprep.subr.mxu0 0.0
  %2287 = vmatpush1.xpose.msra.mxu0 0.0
  %2288 = vmatprep.subr.mxu0 0.0
  %2289 = vmatpush1.xpose.msra.mxu0 0.0
  %2290 = vmatprep.subr.mxu0 0.0
  %2291 = vmatpush1.xpose.msra.mxu0 0.0
  %2292 = vmatprep.subr.mxu0 0.0
  %2293 = vmatpush1.xpose.msra.mxu0 0.0
  %2294 = vmatprep.subr.mxu0 0.0
  %2295 = vmatpush1.xpose.msra.mxu0 0.0
  %2296 = vmatprep.subr.mxu0 0.0
  %2297 = vmatpush1.xpose.msra.mxu0 0.0
  %2298 = vmatprep.subr.mxu0 0.0
  %2299 = vmatpush1.xpose.msra.mxu0 0.0
  %2300 = vmatprep.subr.mxu0 0.0
  %2301 = vmatpush1.xpose.msra.mxu0 0.0
  %2302 = vmatprep.subr.mxu0 0.0
  %2303 = vmatpush1.xpose.msra.mxu0 0.0
  %2304 = vmatprep.subr.mxu0 0.0
  %2305 = vmatpush1.xpose.msra.mxu0 0.0
  %2306 = vmatprep.subr.mxu0 0.0
  %2307 = vmatpush1.xpose.msra.mxu0 0.0
  %2308 = vmatprep.subr.mxu0 0.0
  %2309 = vmatpush1.xpose.msra.mxu0 0.0
  %2310 = vmatprep.subr.mxu0 0.0
  %2311 = vmatpush1.xpose.msra.mxu0 0.0
  %2312 = vmatprep.subr.mxu0 0.0
  %2313 = vmatpush1.xpose.msra.mxu0 0.0
  %2314 = vmatprep.subr.mxu0 0.0
  %2315 = vmatpush1.xpose.msra.mxu0 0.0
  %2316 = vmatprep.subr.mxu0 0.0
  %2317 = vmatpush1.xpose.msra.mxu0 0.0
  %2318 = vmatprep.mubr.f32.mxu0 0.0
  %2319 = vmatmul.mubr.f32.gmra.mrb[0].mxu0 %v2231
  %v2320 = vpop.f32.mrb[0].mxu0
  %v2321 = vadd.f32 0.0, %v2320
  %v2322 = vpop.f32.mrb[0].mxu0
  %2323 = vdwg.mxu0
  %v2325 = vsel %vm43, %v1929, 0
  %v2328 = vsel %vm43, %v2046, 0
  %v2331 = vsel %vm43, %v2051, 0
  %v2334 = vsel %vm43, %v2056, 0
  %v2337 = vsel %vm43, %v2061, 0
  %v2340 = vsel %vm43, %v2066, 0
  %v2343 = vsel %vm43, %v2071, 0
  %v2346 = vsel %vm43, %v2076, 0
  %2348 = vmatprep.subr.mxu0 0.0
  %2349 = vmatpush1.xpose.msra.mxu0 %v2328
  %2350 = vmatprep.subr.mxu0 0.0
  %2351 = vmatpush1.xpose.msra.mxu0 %v2331
  %2352 = vmatprep.subr.mxu0 0.0
  %2353 = vmatpush1.xpose.msra.mxu0 %v2334
  %2354 = vmatprep.subr.mxu0 0.0
  %2355 = vmatpush1.xpose.msra.mxu0 %v2337
  %2356 = vmatprep.subr.mxu0 0.0
  %2357 = vmatpush1.xpose.msra.mxu0 %v2340
  %2358 = vmatprep.subr.mxu0 0.0
  %2359 = vmatpush1.xpose.msra.mxu0 %v2343
  %2360 = vmatprep.subr.mxu0 0.0
  %2361 = vmatpush1.xpose.msra.mxu0 %v2346
  %2362 = vmatprep.subr.mxu0 0.0
  %2363 = vmatpush1.xpose.msra.mxu0 0.0
  %2364 = vmatprep.subr.mxu0 0.0
  %2365 = vmatpush1.xpose.msra.mxu0 0.0
  %2366 = vmatprep.subr.mxu0 0.0
  %2367 = vmatpush1.xpose.msra.mxu0 0.0
  %2368 = vmatprep.subr.mxu0 0.0
  %2369 = vmatpush1.xpose.msra.mxu0 0.0
  %2370 = vmatprep.subr.mxu0 0.0
  %2371 = vmatpush1.xpose.msra.mxu0 0.0
  %2372 = vmatprep.subr.mxu0 0.0
  %2373 = vmatpush1.xpose.msra.mxu0 0.0
  %2374 = vmatprep.subr.mxu0 0.0
  %2375 = vmatpush1.xpose.msra.mxu0 0.0
  %2376 = vmatprep.subr.mxu0 0.0
  %2377 = vmatpush1.xpose.msra.mxu0 0.0
  %2378 = vmatprep.subr.mxu0 0.0
  %2379 = vmatpush1.xpose.msra.mxu0 0.0
  %2380 = vmatprep.subr.mxu0 0.0
  %2381 = vmatpush1.xpose.msra.mxu0 0.0
  %2382 = vmatprep.subr.mxu0 0.0
  %2383 = vmatpush1.xpose.msra.mxu0 0.0
  %2384 = vmatprep.subr.mxu0 0.0
  %2385 = vmatpush1.xpose.msra.mxu0 0.0
  %2386 = vmatprep.subr.mxu0 0.0
  %2387 = vmatpush1.xpose.msra.mxu0 0.0
  %2388 = vmatprep.subr.mxu0 0.0
  %2389 = vmatpush1.xpose.msra.mxu0 0.0
  %2390 = vmatprep.subr.mxu0 0.0
  %2391 = vmatpush1.xpose.msra.mxu0 0.0
  %2392 = vmatprep.subr.mxu0 0.0
  %2393 = vmatpush1.xpose.msra.mxu0 0.0
  %2394 = vmatprep.subr.mxu0 0.0
  %2395 = vmatpush1.xpose.msra.mxu0 0.0
  %2396 = vmatprep.subr.mxu0 0.0
  %2397 = vmatpush1.xpose.msra.mxu0 0.0
  %2398 = vmatprep.subr.mxu0 0.0
  %2399 = vmatpush1.xpose.msra.mxu0 0.0
  %2400 = vmatprep.subr.mxu0 0.0
  %2401 = vmatpush1.xpose.msra.mxu0 0.0
  %2402 = vmatprep.subr.mxu0 0.0
  %2403 = vmatpush1.xpose.msra.mxu0 0.0
  %2404 = vmatprep.subr.mxu0 0.0
  %2405 = vmatpush1.xpose.msra.mxu0 0.0
  %2406 = vmatprep.subr.mxu0 0.0
  %2407 = vmatpush1.xpose.msra.mxu0 0.0
  %2408 = vmatprep.subr.mxu0 0.0
  %2409 = vmatpush1.xpose.msra.mxu0 0.0
  %2410 = vmatprep.subr.mxu0 0.0
  %2411 = vmatpush1.xpose.msra.mxu0 0.0
  %2412 = vmatprep.mubr.f32.mxu0 0.0
  %2413 = vmatmul.mubr.f32.gmra.mrb[0].mxu0 %v2325
  %v2414 = vpop.f32.mrb[0].mxu0
  %v2415 = vadd.f32 0.0, %v2414
  %v2416 = vpop.f32.mrb[0].mxu0
  %2417 = vdwg.mxu0
  %v2418 = vmul.f32 %v2321, 0.17677669
  %v2419 = vmul.f32 %v2415, 0.17677669
  %v2420 = vadd.f32 %v2418, %v1661
  %v2421 = vadd.f32 %v2419, %v1661
  %v2422 = vsel %vm475, %v2420, -inf
  %2423 = vmax.xlane.f32.xlu0 %v2422
  %v2424 = vpop.xlane.xlu0 %2423
  %v2425 = vsel %vm475, %v2421, -inf
  %2426 = vmax.xlane.f32.xlu0 %v2425
  %v2427 = vpop.xlane.xlu0 %2426
  %v2428 = vsub.f32 %v2420, %v2424
  %v2429 = vsub.f32 %v2421, %v2427
  %v2430 = vmul.f32 %v2428, 1.442695
  %v2431 = vpow.pop %v2430
  %v2432 = vmul.f32 %v2429, 1.442695
  %v2433 = vpow.pop %v2432
  %v2434 = vsel %vm475, %v2431, 0.0
  %2435 = vadd.xlane.f32.xlu0 %v2434
  %v2436 = vpop.xlane.xlu0 %2435
  %v2437 = vsel %vm475, %v2433, 0.0
  %2438 = vadd.xlane.f32.xlu0 %v2437
  %v2439 = vpop.xlane.xlu0 %2438
  %v2440 = vrcp.pop %v2436
  %v2441 = vmul.f32 %v2431, %v2440
  %v2442 = vrcp.pop %v2439
  %v2443 = vmul.f32 %v2433, %v2442
  %v2445 = vsel %vm475, %v2441, 0
  %2447 = vmatprep.subr.mxu0 0.0
  %2448 = vmatpush1.msra.mxu0 %v2162
  %2449 = vmatprep.subr.mxu0 0.0
  %2450 = vmatpush1.msra.mxu0 %v2167
  %2451 = vmatprep.subr.mxu0 0.0
  %2452 = vmatpush1.msra.mxu0 %v2172
  %2453 = vmatprep.subr.mxu0 0.0
  %2454 = vmatpush1.msra.mxu0 %v2177
  %2455 = vmatprep.subr.mxu0 0.0
  %2456 = vmatpush1.msra.mxu0 %v2182
  %2457 = vmatprep.subr.mxu0 0.0
  %2458 = vmatpush1.msra.mxu0 %v2187
  %2459 = vmatprep.subr.mxu0 0.0
  %2460 = vmatpush1.msra.mxu0 %v2192
  %2461 = vmatprep.subr.mxu0 0.0
  %2462 = vmatpush1.msra.mxu0 0.0
  %2463 = vmatprep.subr.mxu0 0.0
  %2464 = vmatpush1.msra.mxu0 0.0
  %2465 = vmatprep.subr.mxu0 0.0
  %2466 = vmatpush1.msra.mxu0 0.0
  %2467 = vmatprep.subr.mxu0 0.0
  %2468 = vmatpush1.msra.mxu0 0.0
  %2469 = vmatprep.subr.mxu0 0.0
  %2470 = vmatpush1.msra.mxu0 0.0
  %2471 = vmatprep.subr.mxu0 0.0
  %2472 = vmatpush1.msra.mxu0 0.0
  %2473 = vmatprep.subr.mxu0 0.0
  %2474 = vmatpush1.msra.mxu0 0.0
  %2475 = vmatprep.subr.mxu0 0.0
  %2476 = vmatpush1.msra.mxu0 0.0
  %2477 = vmatprep.subr.mxu0 0.0
  %2478 = vmatpush1.msra.mxu0 0.0
  %2479 = vmatprep.subr.mxu0 0.0
  %2480 = vmatpush1.msra.mxu0 0.0
  %2481 = vmatprep.subr.mxu0 0.0
  %2482 = vmatpush1.msra.mxu0 0.0
  %2483 = vmatprep.subr.mxu0 0.0
  %2484 = vmatpush1.msra.mxu0 0.0
  %2485 = vmatprep.subr.mxu0 0.0
  %2486 = vmatpush1.msra.mxu0 0.0
  %2487 = vmatprep.subr.mxu0 0.0
  %2488 = vmatpush1.msra.mxu0 0.0
  %2489 = vmatprep.subr.mxu0 0.0
  %2490 = vmatpush1.msra.mxu0 0.0
  %2491 = vmatprep.subr.mxu0 0.0
  %2492 = vmatpush1.msra.mxu0 0.0
  %2493 = vmatprep.subr.mxu0 0.0
  %2494 = vmatpush1.msra.mxu0 0.0
  %2495 = vmatprep.subr.mxu0 0.0
  %2496 = vmatpush1.msra.mxu0 0.0
  %2497 = vmatprep.subr.mxu0 0.0
  %2498 = vmatpush1.msra.mxu0 0.0
  %2499 = vmatprep.subr.mxu0 0.0
  %2500 = vmatpush1.msra.mxu0 0.0
  %2501 = vmatprep.subr.mxu0 0.0
  %2502 = vmatpush1.msra.mxu0 0.0
  %2503 = vmatprep.subr.mxu0 0.0
  %2504 = vmatpush1.msra.mxu0 0.0
  %2505 = vmatprep.subr.mxu0 0.0
  %2506 = vmatpush1.msra.mxu0 0.0
  %2507 = vmatprep.subr.mxu0 0.0
  %2508 = vmatpush1.msra.mxu0 0.0
  %2509 = vmatprep.subr.mxu0 0.0
  %2510 = vmatpush1.msra.mxu0 0.0
  %2511 = vmatprep.mubr.f32.mxu0 0.0
  %2512 = vmatmul.mubr.f32.gmra.mrb[0].mxu0 %v2445
  %v2513 = vpop.f32.mrb[0].mxu0
  %v2514 = vadd.f32 0.0, %v2513
  %v2515 = vpop.f32.mrb[0].mxu0
  %2516 = vdwg.mxu0
  %v2518 = vsel %vm475, %v2443, 0
  %2520 = vmatprep.subr.mxu0 0.0
  %2521 = vmatpush1.msra.mxu0 %v2197
  %2522 = vmatprep.subr.mxu0 0.0
  %2523 = vmatpush1.msra.mxu0 %v2202
  %2524 = vmatprep.subr.mxu0 0.0
  %2525 = vmatpush1.msra.mxu0 %v2207
  %2526 = vmatprep.subr.mxu0 0.0
  %2527 = vmatpush1.msra.mxu0 %v2212
  %2528 = vmatprep.subr.mxu0 0.0
  %2529 = vmatpush1.msra.mxu0 %v2217
  %2530 = vmatprep.subr.mxu0 0.0
  %2531 = vmatpush1.msra.mxu0 %v2222
  %2532 = vmatprep.subr.mxu0 0.0
  %2533 = vmatpush1.msra.mxu0 %v2227
  %2534 = vmatprep.subr.mxu0 0.0
  %2535 = vmatpush1.msra.mxu0 0.0
  %2536 = vmatprep.subr.mxu0 0.0
  %2537 = vmatpush1.msra.mxu0 0.0
  %2538 = vmatprep.subr.mxu0 0.0
  %2539 = vmatpush1.msra.mxu0 0.0
  %2540 = vmatprep.subr.mxu0 0.0
  %2541 = vmatpush1.msra.mxu0 0.0
  %2542 = vmatprep.subr.mxu0 0.0
  %2543 = vmatpush1.msra.mxu0 0.0
  %2544 = vmatprep.subr.mxu0 0.0
  %2545 = vmatpush1.msra.mxu0 0.0
  %2546 = vmatprep.subr.mxu0 0.0
  %2547 = vmatpush1.msra.mxu0 0.0
  %2548 = vmatprep.subr.mxu0 0.0
  %2549 = vmatpush1.msra.mxu0 0.0
  %2550 = vmatprep.subr.mxu0 0.0
  %2551 = vmatpush1.msra.mxu0 0.0
  %2552 = vmatprep.subr.mxu0 0.0
  %2553 = vmatpush1.msra.mxu0 0.0
  %2554 = vmatprep.subr.mxu0 0.0
  %2555 = vmatpush1.msra.mxu0 0.0
  %2556 = vmatprep.subr.mxu0 0.0
  %2557 = vmatpush1.msra.mxu0 0.0
  %2558 = vmatprep.subr.mxu0 0.0
  %2559 = vmatpush1.msra.mxu0 0.0
  %2560 = vmatprep.subr.mxu0 0.0
  %2561 = vmatpush1.msra.mxu0 0.0
  %2562 = vmatprep.subr.mxu0 0.0
  %2563 = vmatpush1.msra.mxu0 0.0
  %2564 = vmatprep.subr.mxu0 0.0
  %2565 = vmatpush1.msra.mxu0 0.0
  %2566 = vmatprep.subr.mxu0 0.0
  %2567 = vmatpush1.msra.mxu0 0.0
  %2568 = vmatprep.subr.mxu0 0.0
  %2569 = vmatpush1.msra.mxu0 0.0
  %2570 = vmatprep.subr.mxu0 0.0
  %2571 = vmatpush1.msra.mxu0 0.0
  %2572 = vmatprep.subr.mxu0 0.0
  %2573 = vmatpush1.msra.mxu0 0.0
  %2574 = vmatprep.subr.mxu0 0.0
  %2575 = vmatpush1.msra.mxu0 0.0
  %2576 = vmatprep.subr.mxu0 0.0
  %2577 = vmatpush1.msra.mxu0 0.0
  %2578 = vmatprep.subr.mxu0 0.0
  %2579 = vmatpush1.msra.mxu0 0.0
  %2580 = vmatprep.subr.mxu0 0.0
  %2581 = vmatpush1.msra.mxu0 0.0
  %2582 = vmatprep.subr.mxu0 0.0
  %2583 = vmatpush1.msra.mxu0 0.0
  %2584 = vmatprep.mubr.f32.mxu0 0.0
  %2585 = vmatmul.mubr.f32.gmra.mrb[0].mxu0 %v2518
  %v2586 = vpop.f32.mrb[0].mxu0
  %v2587 = vadd.f32 0.0, %v2586
  %v2588 = vpop.f32.mrb[0].mxu0
  %2589 = vdwg.mxu0
  %2590 = vrot.lane.b32.xlu0 %v1837, 32
  %v2591 = vpop.permute.xlu0 %2590
  %2592 = vrot.lane.b32.xlu0 %v1838, 32
  %v2593 = vpop.permute.xlu0 %2592
  %2594 = vrot.lane.b32.xlu0 %v1839, 32
  %v2595 = vpop.permute.xlu0 %2594
  %2596 = vrot.lane.b32.xlu0 %v1840, 32
  %v2597 = vpop.permute.xlu0 %2596
  %v2603 = vsel %vm43, %v2514, 0
  %v2606 = vsel %vm43, %v2587, 0
  %2608 = vmatprep.subr.mxu0 0.0
  %2609 = vmatpush1.msra.mxu0 %v2591
  %2610 = vmatprep.subr.mxu0 0.0
  %2611 = vmatpush1.msra.mxu0 %v2593
  %2612 = vmatprep.subr.mxu0 0.0
  %2613 = vmatpush1.msra.mxu0 %v2595
  %2614 = vmatprep.subr.mxu0 0.0
  %2615 = vmatpush1.msra.mxu0 %v2597
  %2616 = vmatprep.subr.mxu0 0.0
  %2617 = vmatpush1.msra.mxu0 0.0
  %2618 = vmatprep.subr.mxu0 0.0
  %2619 = vmatpush1.msra.mxu0 0.0
  %2620 = vmatprep.subr.mxu0 0.0
  %2621 = vmatpush1.msra.mxu0 0.0
  %2622 = vmatprep.subr.mxu0 0.0
  %2623 = vmatpush1.msra.mxu0 0.0
  %2624 = vmatprep.subr.mxu0 0.0
  %2625 = vmatpush1.msra.mxu0 0.0
  %2626 = vmatprep.subr.mxu0 0.0
  %2627 = vmatpush1.msra.mxu0 0.0
  %2628 = vmatprep.subr.mxu0 0.0
  %2629 = vmatpush1.msra.mxu0 0.0
  %2630 = vmatprep.subr.mxu0 0.0
  %2631 = vmatpush1.msra.mxu0 0.0
  %2632 = vmatprep.subr.mxu0 0.0
  %2633 = vmatpush1.msra.mxu0 0.0
  %2634 = vmatprep.subr.mxu0 0.0
  %2635 = vmatpush1.msra.mxu0 0.0
  %2636 = vmatprep.subr.mxu0 0.0
  %2637 = vmatpush1.msra.mxu0 0.0
  %2638 = vmatprep.subr.mxu0 0.0
  %2639 = vmatpush1.msra.mxu0 0.0
  %2640 = vmatprep.subr.mxu0 0.0
  %2641 = vmatpush1.msra.mxu0 0.0
  %2642 = vmatprep.subr.mxu0 0.0
  %2643 = vmatpush1.msra.mxu0 0.0
  %2644 = vmatprep.subr.mxu0 0.0
  %2645 = vmatpush1.msra.mxu0 0.0
  %2646 = vmatprep.subr.mxu0 0.0
  %2647 = vmatpush1.msra.mxu0 0.0
  %2648 = vmatprep.subr.mxu0 0.0
  %2649 = vmatpush1.msra.mxu0 0.0
  %2650 = vmatprep.subr.mxu0 0.0
  %2651 = vmatpush1.msra.mxu0 0.0
  %2652 = vmatprep.subr.mxu0 0.0
  %2653 = vmatpush1.msra.mxu0 0.0
  %2654 = vmatprep.subr.mxu0 0.0
  %2655 = vmatpush1.msra.mxu0 0.0
  %2656 = vmatprep.subr.mxu0 0.0
  %2657 = vmatpush1.msra.mxu0 0.0
  %2658 = vmatprep.subr.mxu0 0.0
  %2659 = vmatpush1.msra.mxu0 0.0
  %2660 = vmatprep.subr.mxu0 0.0
  %2661 = vmatpush1.msra.mxu0 0.0
  %2662 = vmatprep.subr.mxu0 0.0
  %2663 = vmatpush1.msra.mxu0 0.0
  %2664 = vmatprep.subr.mxu0 0.0
  %2665 = vmatpush1.msra.mxu0 0.0
  %2666 = vmatprep.subr.mxu0 0.0
  %2667 = vmatpush1.msra.mxu0 0.0
  %2668 = vmatprep.subr.mxu0 0.0
  %2669 = vmatpush1.msra.mxu0 0.0
  %2670 = vmatprep.subr.mxu0 0.0
  %2671 = vmatpush1.msra.mxu0 0.0
  %2672 = vmatprep.mubr.f32.mxu0 0.0
  %2673 = vmatmul.mubr.f32.gmra.mrb[0].mxu0 %v2603
  %v2674 = vpop.f32.mrb[0].mxu0
  %v2675 = vadd.f32 0.0, %v2674
  %v2676 = vpop.f32.mrb[0].mxu0
  %2677 = vmatprep.mubr.f32.mxu0 0.0
  %2678 = vmatmul.mubr.f32.gmra.mrb[0].mxu0 %v2606
  %v2679 = vpop.f32.mrb[0].mxu0
  %v2680 = vadd.f32 0.0, %v2679
  %v2681 = vpop.f32.mrb[0].mxu0
  %2682 = vdwg.mxu0
  %2687 = vrot.lane.b32.xlu0 %v1100, 64
  %v2688 = vpop.permute.xlu0 %2687
  %2689 = vrot.lane.b32.xlu0 %v1101, 64
  %v2690 = vpop.permute.xlu0 %2689
  %2691 = vrot.lane.b32.xlu0 %v1102, 64
  %v2692 = vpop.permute.xlu0 %2691
  %2693 = vrot.lane.b32.xlu0 %v1103, 64
  %v2694 = vpop.permute.xlu0 %2693
  %v2700 = vsel %vm43, %v1757, 0
  %v2703 = vsel %vm43, %v1830, 0
  %2705 = vmatprep.subr.mxu0 0.0
  %2706 = vmatpush1.msra.mxu0 %v2688
  %2707 = vmatprep.subr.mxu0 0.0
  %2708 = vmatpush1.msra.mxu0 %v2690
  %2709 = vmatprep.subr.mxu0 0.0
  %2710 = vmatpush1.msra.mxu0 %v2692
  %2711 = vmatprep.subr.mxu0 0.0
  %2712 = vmatpush1.msra.mxu0 %v2694
  %2713 = vmatprep.subr.mxu0 0.0
  %2714 = vmatpush1.msra.mxu0 0.0
  %2715 = vmatprep.subr.mxu0 0.0
  %2716 = vmatpush1.msra.mxu0 0.0
  %2717 = vmatprep.subr.mxu0 0.0
  %2718 = vmatpush1.msra.mxu0 0.0
  %2719 = vmatprep.subr.mxu0 0.0
  %2720 = vmatpush1.msra.mxu0 0.0
  %2721 = vmatprep.subr.mxu0 0.0
  %2722 = vmatpush1.msra.mxu0 0.0
  %2723 = vmatprep.subr.mxu0 0.0
  %2724 = vmatpush1.msra.mxu0 0.0
  %2725 = vmatprep.subr.mxu0 0.0
  %2726 = vmatpush1.msra.mxu0 0.0
  %2727 = vmatprep.subr.mxu0 0.0
  %2728 = vmatpush1.msra.mxu0 0.0
  %2729 = vmatprep.subr.mxu0 0.0
  %2730 = vmatpush1.msra.mxu0 0.0
  %2731 = vmatprep.subr.mxu0 0.0
  %2732 = vmatpush1.msra.mxu0 0.0
  %2733 = vmatprep.subr.mxu0 0.0
  %2734 = vmatpush1.msra.mxu0 0.0
  %2735 = vmatprep.subr.mxu0 0.0
  %2736 = vmatpush1.msra.mxu0 0.0
  %2737 = vmatprep.subr.mxu0 0.0
  %2738 = vmatpush1.msra.mxu0 0.0
  %2739 = vmatprep.subr.mxu0 0.0
  %2740 = vmatpush1.msra.mxu0 0.0
  %2741 = vmatprep.subr.mxu0 0.0
  %2742 = vmatpush1.msra.mxu0 0.0
  %2743 = vmatprep.subr.mxu0 0.0
  %2744 = vmatpush1.msra.mxu0 0.0
  %2745 = vmatprep.subr.mxu0 0.0
  %2746 = vmatpush1.msra.mxu0 0.0
  %2747 = vmatprep.subr.mxu0 0.0
  %2748 = vmatpush1.msra.mxu0 0.0
  %2749 = vmatprep.subr.mxu0 0.0
  %2750 = vmatpush1.msra.mxu0 0.0
  %2751 = vmatprep.subr.mxu0 0.0
  %2752 = vmatpush1.msra.mxu0 0.0
  %2753 = vmatprep.subr.mxu0 0.0
  %2754 = vmatpush1.msra.mxu0 0.0
  %2755 = vmatprep.subr.mxu0 0.0
  %2756 = vmatpush1.msra.mxu0 0.0
  %2757 = vmatprep.subr.mxu0 0.0
  %2758 = vmatpush1.msra.mxu0 0.0
  %2759 = vmatprep.subr.mxu0 0.0
  %2760 = vmatpush1.msra.mxu0 0.0
  %2761 = vmatprep.subr.mxu0 0.0
  %2762 = vmatpush1.msra.mxu0 0.0
  %2763 = vmatprep.subr.mxu0 0.0
  %2764 = vmatpush1.msra.mxu0 0.0
  %2765 = vmatprep.subr.mxu0 0.0
  %2766 = vmatpush1.msra.mxu0 0.0
  %2767 = vmatprep.subr.mxu0 0.0
  %2768 = vmatpush1.msra.mxu0 0.0
  %2769 = vmatprep.mubr.f32.mxu0 0.0
  %2770 = vmatmul.mubr.f32.gmra.mrb[0].mxu0 %v2700
  %v2771 = vpop.f32.mrb[0].mxu0
  %v2772 = vadd.f32 %v2675, %v2771
  %v2773 = vpop.f32.mrb[0].mxu0
  %2774 = vmatprep.mubr.f32.mxu0 0.0
  %2775 = vmatmul.mubr.f32.gmra.mrb[0].mxu0 %v2703
  %v2776 = vpop.f32.mrb[0].mxu0
  %v2777 = vadd.f32 %v2680, %v2776
  %v2778 = vpop.f32.mrb[0].mxu0
  %2779 = vdwg.mxu0
  %v2780 = vadd.f32 %v2772, %v22
  %v2781 = vadd.f32 %v2777, %v23
  %v2782 = vsel %vm43, %v2780, 0.0
  %2783 = vadd.xlane.f32.xlu0 %v2782
  %v2784 = vpop.xlane.xlu0 %2783
  %v2785 = vsel %vm43, %v2781, 0.0
  %2786 = vadd.xlane.f32.xlu0 %v2785
  %v2787 = vpop.xlane.xlu0 %2786
  %v2788 = vrcp.pop 32.0
  %v2789 = vmul.f32 %v2784, %v2788
  %v2790 = vmul.f32 %v2787, %v2788
  %v2791 = vsub.f32 %v2780, %v2789
  %v2792 = vsub.f32 %v2781, %v2790
  %v2793 = vmul.f32 %v2791, %v2791
  %v2794 = vmul.f32 %v2792, %v2792
  %v2795 = vsel %vm43, %v2793, 0.0
  %2796 = vadd.xlane.f32.xlu0 %v2795
  %v2797 = vpop.xlane.xlu0 %2796
  %v2798 = vsel %vm43, %v2794, 0.0
  %2799 = vadd.xlane.f32.xlu0 %v2798
  %v2800 = vpop.xlane.xlu0 %2799
  %v2801 = vmul.f32 %v2797, %v2788
  %v2802 = vmul.f32 %v2800, %v2788
  %v2803 = vadd.f32 %v2801, 1e-05
  %v2804 = vadd.f32 %v2802, 1e-05
  %v2805 = vrsqrt.pop %v2803
  %v2806 = vrsqrt.pop %v2804
  %v2807 = vmul.f32 %v2791, %v2805
  %v2808 = vmul.f32 %v2792, %v2806
  %v2809 = vmul.f32 %v2807, %v373
  %v2810 = vmul.f32 %v2808, %v373
  %2811 = vrot.lane.b32.xlu0 %v373, 96
  %v2812 = vpop.permute.xlu0 %2811
  %v2814 = vadd.f32 %v2809, %v2812
  %v2815 = vadd.f32 %v2810, %v2812
  %v2816 = vld [vmem:[%s3] sm:$0xff]
  %v2817 = vld [vmem:[%s3 + $0x20] sm:$0xff]
  %v2818 = vld [vmem:[%s3 + $0x40] sm:$0xff]
  %v2819 = vld [vmem:[%s3 + $0x60] sm:$0xff]
  %v2820 = vlaneseq
  %v2821 = vshrl.u32 %v2820, 7
  %v2822 = vsub.s32 0, %v2821
  %v2823 = vrot.slane %v40, %v2822
  %v2825 = vsel %vm43, %v2814, 0
  %v2828 = vsel %vm43, %v2815, 0
  %2830 = vmatprep.subr.mxu0 0.0
  %2831 = vmatpush1.msra.mxu0 %v2816
  %2832 = vmatprep.subr.mxu0 0.0
  %2833 = vmatpush1.msra.mxu0 %v2817
  %2834 = vmatprep.subr.mxu0 0.0
  %2835 = vmatpush1.msra.mxu0 %v2818
  %2836 = vmatprep.subr.mxu0 0.0
  %2837 = vmatpush1.msra.mxu0 %v2819
  %2838 = vmatprep.subr.mxu0 0.0
  %2839 = vmatpush1.msra.mxu0 0.0
  %2840 = vmatprep.subr.mxu0 0.0
  %2841 = vmatpush1.msra.mxu0 0.0
  %2842 = vmatprep.subr.mxu0 0.0
  %2843 = vmatpush1.msra.mxu0 0.0
  %2844 = vmatprep.subr.mxu0 0.0
  %2845 = vmatpush1.msra.mxu0 0.0
  %2846 = vmatprep.subr.mxu0 0.0
  %2847 = vmatpush1.msra.mxu0 0.0
  %2848 = vmatprep.subr.mxu0 0.0
  %2849 = vmatpush1.msra.mxu0 0.0
  %2850 = vmatprep.subr.mxu0 0.0
  %2851 = vmatpush1.msra.mxu0 0.0
  %2852 = vmatprep.subr.mxu0 0.0
  %2853 = vmatpush1.msra.mxu0 0.0
  %2854 = vmatprep.subr.mxu0 0.0
  %2855 = vmatpush1.msra.mxu0 0.0
  %2856 = vmatprep.subr.mxu0 0.0
  %2857 = vmatpush1.msra.mxu0 0.0
  %2858 = vmatprep.subr.mxu0 0.0
  %2859 = vmatpush1.msra.mxu0 0.0
  %2860 = vmatprep.subr.mxu0 0.0
  %2861 = vmatpush1.msra.mxu0 0.0
  %2862 = vmatprep.subr.mxu0 0.0
  %2863 = vmatpush1.msra.mxu0 0.0
  %2864 = vmatprep.subr.mxu0 0.0
  %2865 = vmatpush1.msra.mxu0 0.0
  %2866 = vmatprep.subr.mxu0 0.0
  %2867 = vmatpush1.msra.mxu0 0.0
  %2868 = vmatprep.subr.mxu0 0.0
  %2869 = vmatpush1.msra.mxu0 0.0
  %2870 = vmatprep.subr.mxu0 0.0
  %2871 = vmatpush1.msra.mxu0 0.0
  %2872 = vmatprep.subr.mxu0 0.0
  %2873 = vmatpush1.msra.mxu0 0.0
  %2874 = vmatprep.subr.mxu0 0.0
  %2875 = vmatpush1.msra.mxu0 0.0
  %2876 = vmatprep.subr.mxu0 0.0
  %2877 = vmatpush1.msra.mxu0 0.0
  %2878 = vmatprep.subr.mxu0 0.0
  %2879 = vmatpush1.msra.mxu0 0.0
  %2880 = vmatprep.subr.mxu0 0.0
  %2881 = vmatpush1.msra.mxu0 0.0
  %2882 = vmatprep.subr.mxu0 0.0
  %2883 = vmatpush1.msra.mxu0 0.0
  %2884 = vmatprep.subr.mxu0 0.0
  %2885 = vmatpush1.msra.mxu0 0.0
  %2886 = vmatprep.subr.mxu0 0.0
  %2887 = vmatpush1.msra.mxu0 0.0
  %2888 = vmatprep.subr.mxu0 0.0
  %2889 = vmatpush1.msra.mxu0 0.0
  %2890 = vmatprep.subr.mxu0 0.0
  %2891 = vmatpush1.msra.mxu0 0.0
  %2892 = vmatprep.subr.mxu0 0.0
  %2893 = vmatpush1.msra.mxu0 0.0
  %2894 = vmatprep.mubr.f32.mxu0 0.0
  %2895 = vmatmul.mubr.f32.gmra.mrb[0].mxu0 %v2825
  %v2896 = vpop.f32.mrb[0].mxu0
  %v2897 = vadd.f32 %v2823, %v2896
  %v2898 = vpop.f32.mrb[0].mxu0
  %2899 = vmatprep.mubr.f32.mxu0 0.0
  %2900 = vmatmul.mubr.f32.gmra.mrb[0].mxu0 %v2828
  %v2901 = vpop.f32.mrb[0].mxu0
  %v2902 = vadd.f32 %v2823, %v2901
  %v2903 = vpop.f32.mrb[0].mxu0
  %2904 = vdwg.mxu0
  %2905 = vst [vmem:[%s5] sm:$0xff] %v2897
  %2906 = vst [vmem:[%s5 + $0x8] sm:$0xff] %v2902
  // Predicated region
  $region22: #{fanet_forward.1} parent=0 // pred_check
    _
  $region23: #{fanet_forward.1} parent=0 // pred_check_branch
    %2908 = sbr.rel (0) target = $region25
  $region24: #{fanet_forward.1} parent=0 // pred_region
    _
  $region25: #{fanet_forward.1} parent=0 // pred_fallthru
    _
  // Predicated region
  $region26: #{fanet_forward.1} parent=0 // pred_check
    _
  $region27: #{fanet_forward.1} parent=0 // pred_check_branch
    %2910 = sbr.rel (0) target = $region29
  $region28: #{fanet_forward.1} parent=0 // pred_region
    _
  $region29: #{fanet_forward.1} parent=0 // pred_fallthru
    _
  // Predicated region
  $region30: #{fanet_forward.1} parent=0 // pred_check
    _
  $region31: #{fanet_forward.1} parent=0 // pred_check_branch
    %2912 = sbr.rel (0) target = $region33
  $region32: #{fanet_forward.1} parent=0 // pred_region
    _
  $region33: #{fanet_forward.1} parent=0 // pred_fallthru
    _
  // Predicated region
  $region34: #{fanet_forward.1} parent=0 // pred_check
    _
  $region35: #{fanet_forward.1} parent=0 // pred_check_branch
    %2914 = sbr.rel (0) target = $region37
  $region36: #{fanet_forward.1} parent=0 // pred_region
    _
  $region37: #{fanet_forward.1} parent=0 // pred_fallthru
    _

</llo_original>
